<compile_context>
chip_gen: v6e
topology: v6e:2x2x1
jax: 0.10.0
libtpu: 0.0.40
codegen_flags: <defaults>
</compile_context>

<pallas_src>
import functools

import jax
import jax.numpy as jnp
from jax import lax
from jax.experimental import pallas as pl
from jax.experimental.pallas import tpu as pltpu


def _bihilo_kernel(xq_ref, posq_ref, xkv_ref, poskv_ref,
                   wq_ref, bq_ref, wkv_ref, bkv_ref, wo_ref, bo_ref,
                   out_ref, *, num_heads):
    """One (batch, query-tile) step: both causal directions, all heads.

    xq_ref   : (1, TQ, C)  f32   query rows of this batch element
    posq_ref : (TQ, C)     f32   position embedding (query rows)
    xkv_ref  : (1, T, C)   f32   full sequence (keys / values)
    poskv_ref: (T, C)      f32   position embedding (full sequence)
    wq_ref   : (C, 2C)     bf16  [fwd_Wq | bwd_Wq]   (softmax scale pre-folded)
    bq_ref   : (1, 2C)     f32   [fwd_bq | bwd_bq]   (pre-scaled)
    wkv_ref  : (C, 4C)     bf16  [fwd_Wk | fwd_Wv | bwd_Wk | bwd_Wv]
    bkv_ref  : (1, 4C)     f32   matching biases
    wo_ref   : (2, C, C)   bf16  per-direction out_proj (applied as o @ w)
    bo_ref   : (1, 2C)     f32   [fwd out bias | bwd out bias]
    out_ref  : (1, TQ, 2C)       [forward_out | backward_out]
    """
    TQ, C = posq_ref.shape
    T = poskv_ref.shape[0]
    H = num_heads
    hd = C // H

    # Fused position-embedding add; bf16 MXU operands, f32 accumulation.
    xq = (xq_ref[0] + posq_ref[...]).astype(jnp.bfloat16)      # (TQ, C)
    xkv = (xkv_ref[0] + poskv_ref[...]).astype(jnp.bfloat16)   # (T, C)

    # Lane-dense fused projections, both directions in one matmul each.
    q_all = jnp.dot(xq, wq_ref[...], preferred_element_type=jnp.float32) + bq_ref[...]
    kv_all = jnp.dot(xkv, wkv_ref[...], preferred_element_type=jnp.float32) + bkv_ref[...]
    q_bf = q_all.astype(jnp.bfloat16)      # (TQ, 2C)
    kv_bf = kv_all.astype(jnp.bfloat16)    # (T, 4C)

    # Causal masks generated in-kernel (no (2,T,T) mask DMA / VMEM).
    q0 = pl.program_id(1) * TQ
    row = q0 + lax.broadcasted_iota(jnp.int32, (TQ, T), 0)
    col = lax.broadcasted_iota(jnp.int32, (TQ, T), 1)
    ninf = jnp.float32(-jnp.inf)
    zero = jnp.float32(0.0)
    masks = (jnp.where(row > col, ninf, zero),    # forward: attend to present+future
             jnp.where(row >= col, ninf, zero))   # backward: attend strictly to future

    head_outs = []
    for d in range(2):                 # 0 = forward-causal, 1 = backward-causal
        mask = masks[d]
        for h in range(H):
            q = q_bf[:, d * C + h * hd: d * C + (h + 1) * hd]                   # (TQ, hd)
            k = kv_bf[:, d * 2 * C + h * hd: d * 2 * C + (h + 1) * hd]          # (T, hd)
            v = kv_bf[:, d * 2 * C + C + h * hd: d * 2 * C + C + (h + 1) * hd]  # (T, hd)
            # q @ k^T without an explicit transpose (contract hd of both); bf16->f32.
            s = lax.dot_general(q, k, (((1,), (1,)), ((), ())),
                                preferred_element_type=jnp.float32)             # (TQ, T)
            s = s + mask
            m = jnp.max(s, axis=-1, keepdims=True)
            p = jnp.exp(s - m)          # softmax elementwise math stays f32 (v5e-safe)
            inv = pl.reciprocal(jnp.sum(p, axis=-1, keepdims=True), approx=True)
            # NOTE: the fully masked last row of the backward mask yields a NaN
            # row here, exactly like torch.nn.MultiheadAttention.
            # Normalize AFTER the PV matmul (TQ*hd scales instead of TQ*T).
            o_h = jnp.dot(p.astype(jnp.bfloat16), v,
                          preferred_element_type=jnp.float32) * inv             # (TQ, hd)
            head_outs.append(o_h)

    # One full-width (TQ,C)@(C,C) output projection per direction (kept separate
    # so the backward NaN row cannot pollute the forward half), then a single
    # lane-dense (TQ, 2C) store.
    o_fwd = jnp.concatenate(head_outs[:H], axis=-1).astype(jnp.bfloat16)   # (TQ, C)
    o_bwd = jnp.concatenate(head_outs[H:], axis=-1).astype(jnp.bfloat16)   # (TQ, C)
    y_fwd = jnp.dot(o_fwd, wo_ref[0], preferred_element_type=jnp.float32)
    y_bwd = jnp.dot(o_bwd, wo_ref[1], preferred_element_type=jnp.float32)
    out = jnp.concatenate([y_fwd, y_bwd], axis=-1) + bo_ref[...]           # (TQ, 2C)
    out_ref[0] = out.astype(out_ref.dtype)


def bidirectional_causal_hilo(x, pos, params, *, num_heads, q_tile=None):
    """Fused forward pass: returns concat([fwd_attn(x), bwd_attn(x)], axis=-1).

    `params` must come from pack_params() (call it ONCE at init, not per step).
    """
    B, T, C = x.shape
    w_q, b_q, w_kv, b_kv, w_o, b_o = params
    TQ = q_tile or min(T, 128)
    assert T % TQ == 0, "seq_len must be a multiple of the query tile"
    n_qt = T // TQ

    kernel = functools.partial(_bihilo_kernel, num_heads=num_heads)
    return pl.pallas_call(
        kernel,
        out_shape=jax.ShapeDtypeStruct((B, T, 2 * C), x.dtype),
        grid_spec=pltpu.PrefetchScalarGridSpec(
            num_scalar_prefetch=0,
            grid=(B, n_qt),
            in_specs=[
                pl.BlockSpec((1, TQ, C), lambda b, qi: (b, qi, 0)),   # x   (query tile)
                pl.BlockSpec((TQ, C), lambda b, qi: (qi, 0)),         # pos (query tile)
                pl.BlockSpec((1, T, C), lambda b, qi: (b, 0, 0)),     # x   (full, K/V)
                pl.BlockSpec((T, C), lambda b, qi: (0, 0)),           # pos (full)
                pl.BlockSpec((C, 2 * C), lambda b, qi: (0, 0)),       # W_q  fwd|bwd
                pl.BlockSpec((1, 2 * C), lambda b, qi: (0, 0)),       # b_q
                pl.BlockSpec((C, 4 * C), lambda b, qi: (0, 0)),       # W_kv fwd|bwd
                pl.BlockSpec((1, 4 * C), lambda b, qi: (0, 0)),       # b_kv
                pl.BlockSpec((2, C, C), lambda b, qi: (0, 0, 0)),     # W_o per direction
                pl.BlockSpec((1, 2 * C), lambda b, qi: (0, 0)),       # b_o
            ],
            out_specs=pl.BlockSpec((1, TQ, 2 * C), lambda b, qi: (b, qi, 0)),
        ),
        compiler_params=pltpu.CompilerParams(
            dimension_semantics=("parallel", "parallel")),
    )(x, pos, x, pos, w_q, b_q, w_kv, b_kv, w_o, b_o)


def make_mha_params(key, dim):
    """Synthetic nn.MultiheadAttention parameters in torch layout."""
    k1, k2, k3 = jax.random.split(key, 3)
    in_proj_w = jax.random.normal(k1, (3 * dim, dim), jnp.float32) * 0.05   # (3C, C)
    in_proj_b = jax.random.normal(k2, (3 * dim,), jnp.float32) * 0.05       # (3C,)
    out_w = jax.random.normal(k3, (dim, dim), jnp.float32) * 0.05           # (C, C)
    out_b = jnp.zeros((dim,), jnp.float32)    # torch zero-inits out_proj bias
    return in_proj_w, in_proj_b, out_w, out_b


def pack_params(fwd_raw, bwd_raw, dim, num_heads, mxu_dtype=jnp.bfloat16):
    """Pack torch-layout MHA params into lane-dense kernel operands (call ONCE)."""
    hd = dim // num_heads
    scale = hd ** (-0.5)                  # nn.MultiheadAttention internal q scaling

    def split(in_w, in_b):
        # torch applies x @ W^T; fold the softmax scale into the q columns.
        wq = in_w[:dim].T * scale
        wk = in_w[dim:2 * dim].T
        wv = in_w[2 * dim:].T
        bq = in_b[:dim] * scale
        bk = in_b[dim:2 * dim]
        bv = in_b[2 * dim:]
        return wq, wk, wv, bq, bk, bv

    fwq, fwk, fwv, fbq, fbk, fbv = split(fwd_raw[0], fwd_raw[1])
    bwq, bwk, bwv, bbq, bbk, bbv = split(bwd_raw[0], bwd_raw[1])

    w_q = jnp.concatenate([fwq, bwq], axis=1).astype(mxu_dtype)                 # (C, 2C)
    b_q = jnp.concatenate([fbq, bbq])[None, :].astype(jnp.float32)              # (1, 2C)
    w_kv = jnp.concatenate([fwk, fwv, bwk, bwv], axis=1).astype(mxu_dtype)      # (C, 4C)
    b_kv = jnp.concatenate([fbk, fbv, bbk, bbv])[None, :].astype(jnp.float32)   # (1, 4C)
    w_o = jnp.stack([fwd_raw[2].T, bwd_raw[2].T]).astype(mxu_dtype)             # (2, C, C)
    b_o = jnp.concatenate([fwd_raw[3], bwd_raw[3]])[None, :].astype(jnp.float32)  # (1, 2C)
    return w_q, b_q, w_kv, b_kv, w_o, b_o


if __name__ == "__main__":
    # small shapes consistent with the module: dim % num_heads == 0, T == seq_len
    B, seq_len, dim, num_heads = 2, 16, 64, 8

    key = jax.random.PRNGKey(0)
    kx, kf, kb = jax.random.split(key, 3)

    x = jax.random.normal(kx, (B, seq_len, dim), jnp.float32)
    pos_emb = jnp.zeros((1, seq_len, dim), jnp.float32)  # nn.Parameter(torch.zeros(1, seq_len, dim))

    fwd_raw = make_mha_params(kf, dim)                   # forward_attn weights
    bwd_raw = make_mha_params(kb, dim)                   # backward_attn weights
    params = pack_params(fwd_raw, bwd_raw, dim, num_heads)   # packed ONCE at init
    pos = pos_emb[0, :seq_len, :]                            # sliced ONCE at init

    out = bidirectional_causal_hilo(x, pos, params, num_heads=num_heads)
    out = jax.block_until_ready(out)

    assert out.shape == (B, seq_len, 2 * dim)
    # Forward half has no fully-masked rows -> must be finite.
    assert bool(jnp.isfinite(out[:, :, :dim]).all())
    # Backward half is finite except the fully-masked last row (NaN, like torch).
    assert bool(jnp.isfinite(out[:, :-1, dim:]).all())
    print("KERNEL_OK")
</pallas_src>

<mosaic_0001>
module attributes {stable_mosaic.version = 11 : i64} {
  func.func @_bihilo_kernel(%arg0: i32, %arg1: i32, %arg2: memref<1x16x64xf32, #tpu.memory_space<vmem>>, %arg3: memref<16x64xf32, #tpu.memory_space<vmem>>, %arg4: memref<1x16x64xf32, #tpu.memory_space<vmem>>, %arg5: memref<16x64xf32, #tpu.memory_space<vmem>>, %arg6: memref<64x128xbf16, #tpu.memory_space<vmem>>, %arg7: memref<1x128xf32, #tpu.memory_space<vmem>>, %arg8: memref<64x256xbf16, #tpu.memory_space<vmem>>, %arg9: memref<1x256xf32, #tpu.memory_space<vmem>>, %arg10: memref<2x64x64xbf16, #tpu.memory_space<vmem>>, %arg11: memref<1x128xf32, #tpu.memory_space<vmem>>, %arg12: memref<1x16x128xf32, #tpu.memory_space<vmem>>) attributes {dimension_semantics = [#tpu.dimension_semantics<parallel>, #tpu.dimension_semantics<parallel>], iteration_bounds = array<i64: 2, 1>, scalar_prefetch = 0 : i64, scratch_operands = 0 : i64, tpu.core_type = #tpu.core_type<tc>, window_params = [{transform_indices = @transform_0, window_bounds = array<i64: 1, 16, 64>}, {transform_indices = @transform_1, window_bounds = array<i64: 16, 64>}, {transform_indices = @transform_2, window_bounds = array<i64: 1, 16, 64>}, {pipeline_mode = #tpu.pipeline_mode<synchronous>, transform_indices = @transform_3, window_bounds = array<i64: 16, 64>}, {pipeline_mode = #tpu.pipeline_mode<synchronous>, transform_indices = @transform_4, window_bounds = array<i64: 64, 128>}, {pipeline_mode = #tpu.pipeline_mode<synchronous>, transform_indices = @transform_5, window_bounds = array<i64: 1, 128>}, {pipeline_mode = #tpu.pipeline_mode<synchronous>, transform_indices = @transform_6, window_bounds = array<i64: 64, 256>}, {pipeline_mode = #tpu.pipeline_mode<synchronous>, transform_indices = @transform_7, window_bounds = array<i64: 1, 256>}, {pipeline_mode = #tpu.pipeline_mode<synchronous>, transform_indices = @transform_8, window_bounds = array<i64: 2, 64, 64>}, {pipeline_mode = #tpu.pipeline_mode<synchronous>, transform_indices = @transform_9, window_bounds = array<i64: 1, 128>}, {transform_indices = @transform_10, window_bounds = array<i64: 1, 16, 128>}]} {
    %c0 = arith.constant 0 : index
    %c0_0 = arith.constant 0 : index
    %c0_1 = arith.constant 0 : index
    %0 = vector.load %arg2[%c0, %c0_0, %c0_1] : memref<1x16x64xf32, #tpu.memory_space<vmem>>, vector<1x16x64xf32>
    %1 = vector.shape_cast %0 : vector<1x16x64xf32> to vector<16x64xf32>
    %c0_2 = arith.constant 0 : index
    %c0_3 = arith.constant 0 : index
    %2 = vector.load %arg3[%c0_2, %c0_3] : memref<16x64xf32, #tpu.memory_space<vmem>>, vector<16x64xf32>
    %3 = arith.addf %1, %2 : vector<16x64xf32>
    %4 = arith.truncf %3 : vector<16x64xf32> to vector<16x64xbf16>
    %c0_4 = arith.constant 0 : index
    %c0_5 = arith.constant 0 : index
    %c0_6 = arith.constant 0 : index
    %5 = vector.load %arg4[%c0_4, %c0_5, %c0_6] : memref<1x16x64xf32, #tpu.memory_space<vmem>>, vector<1x16x64xf32>
    %6 = vector.shape_cast %5 : vector<1x16x64xf32> to vector<16x64xf32>
    %c0_7 = arith.constant 0 : index
    %c0_8 = arith.constant 0 : index
    %7 = vector.load %arg5[%c0_7, %c0_8] : memref<16x64xf32, #tpu.memory_space<vmem>>, vector<16x64xf32>
    %8 = arith.addf %6, %7 : vector<16x64xf32>
    %9 = arith.truncf %8 : vector<16x64xf32> to vector<16x64xbf16>
    %c0_9 = arith.constant 0 : index
    %c0_10 = arith.constant 0 : index
    %10 = vector.load %arg6[%c0_9, %c0_10] : memref<64x128xbf16, #tpu.memory_space<vmem>>, vector<64x128xbf16>
    %cst = arith.constant dense<0.000000e+00> : vector<16x128xf32>
    %11 = tpu.matmul %4, %10, %cst {dimension_numbers = #tpu.dot_dimension_numbers<[1], [0], [0], [1], [0, 0, 1, 1], [], []>} : vector<16x64xbf16>, vector<64x128xbf16>, vector<16x128xf32> -> vector<16x128xf32>
    %c0_11 = arith.constant 0 : index
    %c0_12 = arith.constant 0 : index
    %12 = vector.load %arg7[%c0_11, %c0_12] : memref<1x128xf32, #tpu.memory_space<vmem>>, vector<1x128xf32>
    %13 = vector.broadcast %12 : vector<1x128xf32> to vector<16x128xf32>
    %14 = arith.addf %11, %13 : vector<16x128xf32>
    %c0_13 = arith.constant 0 : index
    %c0_14 = arith.constant 0 : index
    %15 = vector.load %arg8[%c0_13, %c0_14] : memref<64x256xbf16, #tpu.memory_space<vmem>>, vector<64x256xbf16>
    %cst_15 = arith.constant dense<0.000000e+00> : vector<16x256xf32>
    %16 = tpu.matmul %9, %15, %cst_15 {dimension_numbers = #tpu.dot_dimension_numbers<[1], [0], [0], [1], [0, 0, 1, 1], [], []>} : vector<16x64xbf16>, vector<64x256xbf16>, vector<16x256xf32> -> vector<16x256xf32>
    %c0_16 = arith.constant 0 : index
    %c0_17 = arith.constant 0 : index
    %17 = vector.load %arg9[%c0_16, %c0_17] : memref<1x256xf32, #tpu.memory_space<vmem>>, vector<1x256xf32>
    %18 = vector.broadcast %17 : vector<1x256xf32> to vector<16x256xf32>
    %19 = arith.addf %16, %18 : vector<16x256xf32>
    %20 = arith.truncf %14 : vector<16x128xf32> to vector<16x128xbf16>
    %21 = arith.truncf %19 : vector<16x256xf32> to vector<16x256xbf16>
    %c16_i32 = arith.constant 16 : i32
    %22 = arith.muli %arg1, %c16_i32 : i32
    %23 = tpu.iota {dimensions = array<i32: 0>} : vector<16x16xi32>
    %24 = vector.broadcast %22 : i32 to vector<16x16xi32>
    %25 = arith.addi %24, %23 : vector<16x16xi32>
    %26 = tpu.iota {dimensions = array<i32: 1>} : vector<16x16xi32>
    %27 = arith.cmpi sgt, %25, %26 : vector<16x16xi32>
    %cst_18 = arith.constant 0xFF800000 : f32
    %cst_19 = arith.constant 0.000000e+00 : f32
    %28 = vector.broadcast %cst_18 : f32 to vector<16x16xf32>
    %29 = vector.broadcast %cst_19 : f32 to vector<16x16xf32>
    %30 = arith.select %27, %28, %29 : vector<16x16xi1>, vector<16x16xf32>
    %31 = arith.cmpi sge, %25, %26 : vector<16x16xi32>
    %cst_20 = arith.constant 0xFF800000 : f32
    %cst_21 = arith.constant 0.000000e+00 : f32
    %32 = vector.broadcast %cst_20 : f32 to vector<16x16xf32>
    %33 = vector.broadcast %cst_21 : f32 to vector<16x16xf32>
    %34 = arith.select %31, %32, %33 : vector<16x16xi1>, vector<16x16xf32>
    %35 = vector.extract_strided_slice %20 {offsets = [0, 0], sizes = [16, 8], strides = [1, 1]} : vector<16x128xbf16> to vector<16x8xbf16>
    %36 = vector.extract_strided_slice %21 {offsets = [0, 0], sizes = [16, 8], strides = [1, 1]} : vector<16x256xbf16> to vector<16x8xbf16>
    %37 = vector.extract_strided_slice %21 {offsets = [0, 64], sizes = [16, 8], strides = [1, 1]} : vector<16x256xbf16> to vector<16x8xbf16>
    %cst_22 = arith.constant dense<0.000000e+00> : vector<16x16xf32>
    %38 = tpu.matmul %35, %36, %cst_22 {dimension_numbers = #tpu.dot_dimension_numbers<[1], [1], [0], [0], [0, 0, 1, 0], [], []>} : vector<16x8xbf16>, vector<16x8xbf16>, vector<16x16xf32> -> vector<16x16xf32>
    %39 = arith.addf %38, %30 : vector<16x16xf32>
    %cst_23 = arith.constant dense<0xFF800000> : vector<16xf32>
    %40 = vector.multi_reduction <maximumf>, %39, %cst_23 [1] : vector<16x16xf32> to vector<16xf32>
    %41 = vector.shape_cast %40 : vector<16xf32> to vector<16x1xf32>
    %42 = vector.broadcast %41 : vector<16x1xf32> to vector<16x16xf32>
    %43 = arith.subf %39, %42 : vector<16x16xf32>
    %44 = math.exp %43 : vector<16x16xf32>
    %cst_24 = arith.constant dense<0.000000e+00> : vector<16xf32>
    %45 = vector.multi_reduction <add>, %44, %cst_24 [1] : vector<16x16xf32> to vector<16xf32>
    %46 = vector.shape_cast %45 : vector<16xf32> to vector<16x1xf32>
    %47 = tpu.reciprocal %46 {approx = true} : vector<16x1xf32> -> vector<16x1xf32>
    %48 = arith.truncf %44 : vector<16x16xf32> to vector<16x16xbf16>
    %cst_25 = arith.constant dense<0.000000e+00> : vector<16x8xf32>
    %49 = tpu.matmul %48, %37, %cst_25 {dimension_numbers = #tpu.dot_dimension_numbers<[1], [0], [0], [1], [0, 0, 1, 1], [], []>} : vector<16x16xbf16>, vector<16x8xbf16>, vector<16x8xf32> -> vector<16x8xf32>
    %50 = vector.broadcast %47 : vector<16x1xf32> to vector<16x8xf32>
    %51 = arith.mulf %49, %50 : vector<16x8xf32>
    %52 = vector.extract_strided_slice %20 {offsets = [0, 8], sizes = [16, 8], strides = [1, 1]} : vector<16x128xbf16> to vector<16x8xbf16>
    %53 = vector.extract_strided_slice %21 {offsets = [0, 8], sizes = [16, 8], strides = [1, 1]} : vector<16x256xbf16> to vector<16x8xbf16>
    %54 = vector.extract_strided_slice %21 {offsets = [0, 72], sizes = [16, 8], strides = [1, 1]} : vector<16x256xbf16> to vector<16x8xbf16>
    %cst_26 = arith.constant dense<0.000000e+00> : vector<16x16xf32>
    %55 = tpu.matmul %52, %53, %cst_26 {dimension_numbers = #tpu.dot_dimension_numbers<[1], [1], [0], [0], [0, 0, 1, 0], [], []>} : vector<16x8xbf16>, vector<16x8xbf16>, vector<16x16xf32> -> vector<16x16xf32>
    %56 = arith.addf %55, %30 : vector<16x16xf32>
    %cst_27 = arith.constant dense<0xFF800000> : vector<16xf32>
    %57 = vector.multi_reduction <maximumf>, %56, %cst_27 [1] : vector<16x16xf32> to vector<16xf32>
    %58 = vector.shape_cast %57 : vector<16xf32> to vector<16x1xf32>
    %59 = vector.broadcast %58 : vector<16x1xf32> to vector<16x16xf32>
    %60 = arith.subf %56, %59 : vector<16x16xf32>
    %61 = math.exp %60 : vector<16x16xf32>
    %cst_28 = arith.constant dense<0.000000e+00> : vector<16xf32>
    %62 = vector.multi_reduction <add>, %61, %cst_28 [1] : vector<16x16xf32> to vector<16xf32>
    %63 = vector.shape_cast %62 : vector<16xf32> to vector<16x1xf32>
    %64 = tpu.reciprocal %63 {approx = true} : vector<16x1xf32> -> vector<16x1xf32>
    %65 = arith.truncf %61 : vector<16x16xf32> to vector<16x16xbf16>
    %cst_29 = arith.constant dense<0.000000e+00> : vector<16x8xf32>
    %66 = tpu.matmul %65, %54, %cst_29 {dimension_numbers = #tpu.dot_dimension_numbers<[1], [0], [0], [1], [0, 0, 1, 1], [], []>} : vector<16x16xbf16>, vector<16x8xbf16>, vector<16x8xf32> -> vector<16x8xf32>
    %67 = vector.broadcast %64 : vector<16x1xf32> to vector<16x8xf32>
    %68 = arith.mulf %66, %67 : vector<16x8xf32>
    %69 = vector.extract_strided_slice %20 {offsets = [0, 16], sizes = [16, 8], strides = [1, 1]} : vector<16x128xbf16> to vector<16x8xbf16>
    %70 = vector.extract_strided_slice %21 {offsets = [0, 16], sizes = [16, 8], strides = [1, 1]} : vector<16x256xbf16> to vector<16x8xbf16>
    %71 = vector.extract_strided_slice %21 {offsets = [0, 80], sizes = [16, 8], strides = [1, 1]} : vector<16x256xbf16> to vector<16x8xbf16>
    %cst_30 = arith.constant dense<0.000000e+00> : vector<16x16xf32>
    %72 = tpu.matmul %69, %70, %cst_30 {dimension_numbers = #tpu.dot_dimension_numbers<[1], [1], [0], [0], [0, 0, 1, 0], [], []>} : vector<16x8xbf16>, vector<16x8xbf16>, vector<16x16xf32> -> vector<16x16xf32>
    %73 = arith.addf %72, %30 : vector<16x16xf32>
    %cst_31 = arith.constant dense<0xFF800000> : vector<16xf32>
    %74 = vector.multi_reduction <maximumf>, %73, %cst_31 [1] : vector<16x16xf32> to vector<16xf32>
    %75 = vector.shape_cast %74 : vector<16xf32> to vector<16x1xf32>
    %76 = vector.broadcast %75 : vector<16x1xf32> to vector<16x16xf32>
    %77 = arith.subf %73, %76 : vector<16x16xf32>
    %78 = math.exp %77 : vector<16x16xf32>
    %cst_32 = arith.constant dense<0.000000e+00> : vector<16xf32>
    %79 = vector.multi_reduction <add>, %78, %cst_32 [1] : vector<16x16xf32> to vector<16xf32>
    %80 = vector.shape_cast %79 : vector<16xf32> to vector<16x1xf32>
    %81 = tpu.reciprocal %80 {approx = true} : vector<16x1xf32> -> vector<16x1xf32>
    %82 = arith.truncf %78 : vector<16x16xf32> to vector<16x16xbf16>
    %cst_33 = arith.constant dense<0.000000e+00> : vector<16x8xf32>
    %83 = tpu.matmul %82, %71, %cst_33 {dimension_numbers = #tpu.dot_dimension_numbers<[1], [0], [0], [1], [0, 0, 1, 1], [], []>} : vector<16x16xbf16>, vector<16x8xbf16>, vector<16x8xf32> -> vector<16x8xf32>
    %84 = vector.broadcast %81 : vector<16x1xf32> to vector<16x8xf32>
    %85 = arith.mulf %83, %84 : vector<16x8xf32>
    %86 = vector.extract_strided_slice %20 {offsets = [0, 24], sizes = [16, 8], strides = [1, 1]} : vector<16x128xbf16> to vector<16x8xbf16>
    %87 = vector.extract_strided_slice %21 {offsets = [0, 24], sizes = [16, 8], strides = [1, 1]} : vector<16x256xbf16> to vector<16x8xbf16>
    %88 = vector.extract_strided_slice %21 {offsets = [0, 88], sizes = [16, 8], strides = [1, 1]} : vector<16x256xbf16> to vector<16x8xbf16>
    %cst_34 = arith.constant dense<0.000000e+00> : vector<16x16xf32>
    %89 = tpu.matmul %86, %87, %cst_34 {dimension_numbers = #tpu.dot_dimension_numbers<[1], [1], [0], [0], [0, 0, 1, 0], [], []>} : vector<16x8xbf16>, vector<16x8xbf16>, vector<16x16xf32> -> vector<16x16xf32>
    %90 = arith.addf %89, %30 : vector<16x16xf32>
    %cst_35 = arith.constant dense<0xFF800000> : vector<16xf32>
    %91 = vector.multi_reduction <maximumf>, %90, %cst_35 [1] : vector<16x16xf32> to vector<16xf32>
    %92 = vector.shape_cast %91 : vector<16xf32> to vector<16x1xf32>
    %93 = vector.broadcast %92 : vector<16x1xf32> to vector<16x16xf32>
    %94 = arith.subf %90, %93 : vector<16x16xf32>
    %95 = math.exp %94 : vector<16x16xf32>
    %cst_36 = arith.constant dense<0.000000e+00> : vector<16xf32>
    %96 = vector.multi_reduction <add>, %95, %cst_36 [1] : vector<16x16xf32> to vector<16xf32>
    %97 = vector.shape_cast %96 : vector<16xf32> to vector<16x1xf32>
    %98 = tpu.reciprocal %97 {approx = true} : vector<16x1xf32> -> vector<16x1xf32>
    %99 = arith.truncf %95 : vector<16x16xf32> to vector<16x16xbf16>
    %cst_37 = arith.constant dense<0.000000e+00> : vector<16x8xf32>
    %100 = tpu.matmul %99, %88, %cst_37 {dimension_numbers = #tpu.dot_dimension_numbers<[1], [0], [0], [1], [0, 0, 1, 1], [], []>} : vector<16x16xbf16>, vector<16x8xbf16>, vector<16x8xf32> -> vector<16x8xf32>
    %101 = vector.broadcast %98 : vector<16x1xf32> to vector<16x8xf32>
    %102 = arith.mulf %100, %101 : vector<16x8xf32>
    %103 = vector.extract_strided_slice %20 {offsets = [0, 32], sizes = [16, 8], strides = [1, 1]} : vector<16x128xbf16> to vector<16x8xbf16>
    %104 = vector.extract_strided_slice %21 {offsets = [0, 32], sizes = [16, 8], strides = [1, 1]} : vector<16x256xbf16> to vector<16x8xbf16>
    %105 = vector.extract_strided_slice %21 {offsets = [0, 96], sizes = [16, 8], strides = [1, 1]} : vector<16x256xbf16> to vector<16x8xbf16>
    %cst_38 = arith.constant dense<0.000000e+00> : vector<16x16xf32>
    %106 = tpu.matmul %103, %104, %cst_38 {dimension_numbers = #tpu.dot_dimension_numbers<[1], [1], [0], [0], [0, 0, 1, 0], [], []>} : vector<16x8xbf16>, vector<16x8xbf16>, vector<16x16xf32> -> vector<16x16xf32>
    %107 = arith.addf %106, %30 : vector<16x16xf32>
    %cst_39 = arith.constant dense<0xFF800000> : vector<16xf32>
    %108 = vector.multi_reduction <maximumf>, %107, %cst_39 [1] : vector<16x16xf32> to vector<16xf32>
    %109 = vector.shape_cast %108 : vector<16xf32> to vector<16x1xf32>
    %110 = vector.broadcast %109 : vector<16x1xf32> to vector<16x16xf32>
    %111 = arith.subf %107, %110 : vector<16x16xf32>
    %112 = math.exp %111 : vector<16x16xf32>
    %cst_40 = arith.constant dense<0.000000e+00> : vector<16xf32>
    %113 = vector.multi_reduction <add>, %112, %cst_40 [1] : vector<16x16xf32> to vector<16xf32>
    %114 = vector.shape_cast %113 : vector<16xf32> to vector<16x1xf32>
    %115 = tpu.reciprocal %114 {approx = true} : vector<16x1xf32> -> vector<16x1xf32>
    %116 = arith.truncf %112 : vector<16x16xf32> to vector<16x16xbf16>
    %cst_41 = arith.constant dense<0.000000e+00> : vector<16x8xf32>
    %117 = tpu.matmul %116, %105, %cst_41 {dimension_numbers = #tpu.dot_dimension_numbers<[1], [0], [0], [1], [0, 0, 1, 1], [], []>} : vector<16x16xbf16>, vector<16x8xbf16>, vector<16x8xf32> -> vector<16x8xf32>
    %118 = vector.broadcast %115 : vector<16x1xf32> to vector<16x8xf32>
    %119 = arith.mulf %117, %118 : vector<16x8xf32>
    %120 = vector.extract_strided_slice %20 {offsets = [0, 40], sizes = [16, 8], strides = [1, 1]} : vector<16x128xbf16> to vector<16x8xbf16>
    %121 = vector.extract_strided_slice %21 {offsets = [0, 40], sizes = [16, 8], strides = [1, 1]} : vector<16x256xbf16> to vector<16x8xbf16>
    %122 = vector.extract_strided_slice %21 {offsets = [0, 104], sizes = [16, 8], strides = [1, 1]} : vector<16x256xbf16> to vector<16x8xbf16>
    %cst_42 = arith.constant dense<0.000000e+00> : vector<16x16xf32>
    %123 = tpu.matmul %120, %121, %cst_42 {dimension_numbers = #tpu.dot_dimension_numbers<[1], [1], [0], [0], [0, 0, 1, 0], [], []>} : vector<16x8xbf16>, vector<16x8xbf16>, vector<16x16xf32> -> vector<16x16xf32>
    %124 = arith.addf %123, %30 : vector<16x16xf32>
    %cst_43 = arith.constant dense<0xFF800000> : vector<16xf32>
    %125 = vector.multi_reduction <maximumf>, %124, %cst_43 [1] : vector<16x16xf32> to vector<16xf32>
    %126 = vector.shape_cast %125 : vector<16xf32> to vector<16x1xf32>
    %127 = vector.broadcast %126 : vector<16x1xf32> to vector<16x16xf32>
    %128 = arith.subf %124, %127 : vector<16x16xf32>
    %129 = math.exp %128 : vector<16x16xf32>
    %cst_44 = arith.constant dense<0.000000e+00> : vector<16xf32>
    %130 = vector.multi_reduction <add>, %129, %cst_44 [1] : vector<16x16xf32> to vector<16xf32>
    %131 = vector.shape_cast %130 : vector<16xf32> to vector<16x1xf32>
    %132 = tpu.reciprocal %131 {approx = true} : vector<16x1xf32> -> vector<16x1xf32>
    %133 = arith.truncf %129 : vector<16x16xf32> to vector<16x16xbf16>
    %cst_45 = arith.constant dense<0.000000e+00> : vector<16x8xf32>
    %134 = tpu.matmul %133, %122, %cst_45 {dimension_numbers = #tpu.dot_dimension_numbers<[1], [0], [0], [1], [0, 0, 1, 1], [], []>} : vector<16x16xbf16>, vector<16x8xbf16>, vector<16x8xf32> -> vector<16x8xf32>
    %135 = vector.broadcast %132 : vector<16x1xf32> to vector<16x8xf32>
    %136 = arith.mulf %134, %135 : vector<16x8xf32>
    %137 = vector.extract_strided_slice %20 {offsets = [0, 48], sizes = [16, 8], strides = [1, 1]} : vector<16x128xbf16> to vector<16x8xbf16>
    %138 = vector.extract_strided_slice %21 {offsets = [0, 48], sizes = [16, 8], strides = [1, 1]} : vector<16x256xbf16> to vector<16x8xbf16>
    %139 = vector.extract_strided_slice %21 {offsets = [0, 112], sizes = [16, 8], strides = [1, 1]} : vector<16x256xbf16> to vector<16x8xbf16>
    %cst_46 = arith.constant dense<0.000000e+00> : vector<16x16xf32>
    %140 = tpu.matmul %137, %138, %cst_46 {dimension_numbers = #tpu.dot_dimension_numbers<[1], [1], [0], [0], [0, 0, 1, 0], [], []>} : vector<16x8xbf16>, vector<16x8xbf16>, vector<16x16xf32> -> vector<16x16xf32>
    %141 = arith.addf %140, %30 : vector<16x16xf32>
    %cst_47 = arith.constant dense<0xFF800000> : vector<16xf32>
    %142 = vector.multi_reduction <maximumf>, %141, %cst_47 [1] : vector<16x16xf32> to vector<16xf32>
    %143 = vector.shape_cast %142 : vector<16xf32> to vector<16x1xf32>
    %144 = vector.broadcast %143 : vector<16x1xf32> to vector<16x16xf32>
    %145 = arith.subf %141, %144 : vector<16x16xf32>
    %146 = math.exp %145 : vector<16x16xf32>
    %cst_48 = arith.constant dense<0.000000e+00> : vector<16xf32>
    %147 = vector.multi_reduction <add>, %146, %cst_48 [1] : vector<16x16xf32> to vector<16xf32>
    %148 = vector.shape_cast %147 : vector<16xf32> to vector<16x1xf32>
    %149 = tpu.reciprocal %148 {approx = true} : vector<16x1xf32> -> vector<16x1xf32>
    %150 = arith.truncf %146 : vector<16x16xf32> to vector<16x16xbf16>
    %cst_49 = arith.constant dense<0.000000e+00> : vector<16x8xf32>
    %151 = tpu.matmul %150, %139, %cst_49 {dimension_numbers = #tpu.dot_dimension_numbers<[1], [0], [0], [1], [0, 0, 1, 1], [], []>} : vector<16x16xbf16>, vector<16x8xbf16>, vector<16x8xf32> -> vector<16x8xf32>
    %152 = vector.broadcast %149 : vector<16x1xf32> to vector<16x8xf32>
    %153 = arith.mulf %151, %152 : vector<16x8xf32>
    %154 = vector.extract_strided_slice %20 {offsets = [0, 56], sizes = [16, 8], strides = [1, 1]} : vector<16x128xbf16> to vector<16x8xbf16>
    %155 = vector.extract_strided_slice %21 {offsets = [0, 56], sizes = [16, 8], strides = [1, 1]} : vector<16x256xbf16> to vector<16x8xbf16>
    %156 = vector.extract_strided_slice %21 {offsets = [0, 120], sizes = [16, 8], strides = [1, 1]} : vector<16x256xbf16> to vector<16x8xbf16>
    %cst_50 = arith.constant dense<0.000000e+00> : vector<16x16xf32>
    %157 = tpu.matmul %154, %155, %cst_50 {dimension_numbers = #tpu.dot_dimension_numbers<[1], [1], [0], [0], [0, 0, 1, 0], [], []>} : vector<16x8xbf16>, vector<16x8xbf16>, vector<16x16xf32> -> vector<16x16xf32>
    %158 = arith.addf %157, %30 : vector<16x16xf32>
    %cst_51 = arith.constant dense<0xFF800000> : vector<16xf32>
    %159 = vector.multi_reduction <maximumf>, %158, %cst_51 [1] : vector<16x16xf32> to vector<16xf32>
    %160 = vector.shape_cast %159 : vector<16xf32> to vector<16x1xf32>
    %161 = vector.broadcast %160 : vector<16x1xf32> to vector<16x16xf32>
    %162 = arith.subf %158, %161 : vector<16x16xf32>
    %163 = math.exp %162 : vector<16x16xf32>
    %cst_52 = arith.constant dense<0.000000e+00> : vector<16xf32>
    %164 = vector.multi_reduction <add>, %163, %cst_52 [1] : vector<16x16xf32> to vector<16xf32>
    %165 = vector.shape_cast %164 : vector<16xf32> to vector<16x1xf32>
    %166 = tpu.reciprocal %165 {approx = true} : vector<16x1xf32> -> vector<16x1xf32>
    %167 = arith.truncf %163 : vector<16x16xf32> to vector<16x16xbf16>
    %cst_53 = arith.constant dense<0.000000e+00> : vector<16x8xf32>
    %168 = tpu.matmul %167, %156, %cst_53 {dimension_numbers = #tpu.dot_dimension_numbers<[1], [0], [0], [1], [0, 0, 1, 1], [], []>} : vector<16x16xbf16>, vector<16x8xbf16>, vector<16x8xf32> -> vector<16x8xf32>
    %169 = vector.broadcast %166 : vector<16x1xf32> to vector<16x8xf32>
    %170 = arith.mulf %168, %169 : vector<16x8xf32>
    %171 = vector.extract_strided_slice %20 {offsets = [0, 64], sizes = [16, 8], strides = [1, 1]} : vector<16x128xbf16> to vector<16x8xbf16>
    %172 = vector.extract_strided_slice %21 {offsets = [0, 128], sizes = [16, 8], strides = [1, 1]} : vector<16x256xbf16> to vector<16x8xbf16>
    %173 = vector.extract_strided_slice %21 {offsets = [0, 192], sizes = [16, 8], strides = [1, 1]} : vector<16x256xbf16> to vector<16x8xbf16>
    %cst_54 = arith.constant dense<0.000000e+00> : vector<16x16xf32>
    %174 = tpu.matmul %171, %172, %cst_54 {dimension_numbers = #tpu.dot_dimension_numbers<[1], [1], [0], [0], [0, 0, 1, 0], [], []>} : vector<16x8xbf16>, vector<16x8xbf16>, vector<16x16xf32> -> vector<16x16xf32>
    %175 = arith.addf %174, %34 : vector<16x16xf32>
    %cst_55 = arith.constant dense<0xFF800000> : vector<16xf32>
    %176 = vector.multi_reduction <maximumf>, %175, %cst_55 [1] : vector<16x16xf32> to vector<16xf32>
    %177 = vector.shape_cast %176 : vector<16xf32> to vector<16x1xf32>
    %178 = vector.broadcast %177 : vector<16x1xf32> to vector<16x16xf32>
    %179 = arith.subf %175, %178 : vector<16x16xf32>
    %180 = math.exp %179 : vector<16x16xf32>
    %cst_56 = arith.constant dense<0.000000e+00> : vector<16xf32>
    %181 = vector.multi_reduction <add>, %180, %cst_56 [1] : vector<16x16xf32> to vector<16xf32>
    %182 = vector.shape_cast %181 : vector<16xf32> to vector<16x1xf32>
    %183 = tpu.reciprocal %182 {approx = true} : vector<16x1xf32> -> vector<16x1xf32>
    %184 = arith.truncf %180 : vector<16x16xf32> to vector<16x16xbf16>
    %cst_57 = arith.constant dense<0.000000e+00> : vector<16x8xf32>
    %185 = tpu.matmul %184, %173, %cst_57 {dimension_numbers = #tpu.dot_dimension_numbers<[1], [0], [0], [1], [0, 0, 1, 1], [], []>} : vector<16x16xbf16>, vector<16x8xbf16>, vector<16x8xf32> -> vector<16x8xf32>
    %186 = vector.broadcast %183 : vector<16x1xf32> to vector<16x8xf32>
    %187 = arith.mulf %185, %186 : vector<16x8xf32>
    %188 = vector.extract_strided_slice %20 {offsets = [0, 72], sizes = [16, 8], strides = [1, 1]} : vector<16x128xbf16> to vector<16x8xbf16>
    %189 = vector.extract_strided_slice %21 {offsets = [0, 136], sizes = [16, 8], strides = [1, 1]} : vector<16x256xbf16> to vector<16x8xbf16>
    %190 = vector.extract_strided_slice %21 {offsets = [0, 200], sizes = [16, 8], strides = [1, 1]} : vector<16x256xbf16> to vector<16x8xbf16>
    %cst_58 = arith.constant dense<0.000000e+00> : vector<16x16xf32>
    %191 = tpu.matmul %188, %189, %cst_58 {dimension_numbers = #tpu.dot_dimension_numbers<[1], [1], [0], [0], [0, 0, 1, 0], [], []>} : vector<16x8xbf16>, vector<16x8xbf16>, vector<16x16xf32> -> vector<16x16xf32>
    %192 = arith.addf %191, %34 : vector<16x16xf32>
    %cst_59 = arith.constant dense<0xFF800000> : vector<16xf32>
    %193 = vector.multi_reduction <maximumf>, %192, %cst_59 [1] : vector<16x16xf32> to vector<16xf32>
    %194 = vector.shape_cast %193 : vector<16xf32> to vector<16x1xf32>
    %195 = vector.broadcast %194 : vector<16x1xf32> to vector<16x16xf32>
    %196 = arith.subf %192, %195 : vector<16x16xf32>
    %197 = math.exp %196 : vector<16x16xf32>
    %cst_60 = arith.constant dense<0.000000e+00> : vector<16xf32>
    %198 = vector.multi_reduction <add>, %197, %cst_60 [1] : vector<16x16xf32> to vector<16xf32>
    %199 = vector.shape_cast %198 : vector<16xf32> to vector<16x1xf32>
    %200 = tpu.reciprocal %199 {approx = true} : vector<16x1xf32> -> vector<16x1xf32>
    %201 = arith.truncf %197 : vector<16x16xf32> to vector<16x16xbf16>
    %cst_61 = arith.constant dense<0.000000e+00> : vector<16x8xf32>
    %202 = tpu.matmul %201, %190, %cst_61 {dimension_numbers = #tpu.dot_dimension_numbers<[1], [0], [0], [1], [0, 0, 1, 1], [], []>} : vector<16x16xbf16>, vector<16x8xbf16>, vector<16x8xf32> -> vector<16x8xf32>
    %203 = vector.broadcast %200 : vector<16x1xf32> to vector<16x8xf32>
    %204 = arith.mulf %202, %203 : vector<16x8xf32>
    %205 = vector.extract_strided_slice %20 {offsets = [0, 80], sizes = [16, 8], strides = [1, 1]} : vector<16x128xbf16> to vector<16x8xbf16>
    %206 = vector.extract_strided_slice %21 {offsets = [0, 144], sizes = [16, 8], strides = [1, 1]} : vector<16x256xbf16> to vector<16x8xbf16>
    %207 = vector.extract_strided_slice %21 {offsets = [0, 208], sizes = [16, 8], strides = [1, 1]} : vector<16x256xbf16> to vector<16x8xbf16>
    %cst_62 = arith.constant dense<0.000000e+00> : vector<16x16xf32>
    %208 = tpu.matmul %205, %206, %cst_62 {dimension_numbers = #tpu.dot_dimension_numbers<[1], [1], [0], [0], [0, 0, 1, 0], [], []>} : vector<16x8xbf16>, vector<16x8xbf16>, vector<16x16xf32> -> vector<16x16xf32>
    %209 = arith.addf %208, %34 : vector<16x16xf32>
    %cst_63 = arith.constant dense<0xFF800000> : vector<16xf32>
    %210 = vector.multi_reduction <maximumf>, %209, %cst_63 [1] : vector<16x16xf32> to vector<16xf32>
    %211 = vector.shape_cast %210 : vector<16xf32> to vector<16x1xf32>
    %212 = vector.broadcast %211 : vector<16x1xf32> to vector<16x16xf32>
    %213 = arith.subf %209, %212 : vector<16x16xf32>
    %214 = math.exp %213 : vector<16x16xf32>
    %cst_64 = arith.constant dense<0.000000e+00> : vector<16xf32>
    %215 = vector.multi_reduction <add>, %214, %cst_64 [1] : vector<16x16xf32> to vector<16xf32>
    %216 = vector.shape_cast %215 : vector<16xf32> to vector<16x1xf32>
    %217 = tpu.reciprocal %216 {approx = true} : vector<16x1xf32> -> vector<16x1xf32>
    %218 = arith.truncf %214 : vector<16x16xf32> to vector<16x16xbf16>
    %cst_65 = arith.constant dense<0.000000e+00> : vector<16x8xf32>
    %219 = tpu.matmul %218, %207, %cst_65 {dimension_numbers = #tpu.dot_dimension_numbers<[1], [0], [0], [1], [0, 0, 1, 1], [], []>} : vector<16x16xbf16>, vector<16x8xbf16>, vector<16x8xf32> -> vector<16x8xf32>
    %220 = vector.broadcast %217 : vector<16x1xf32> to vector<16x8xf32>
    %221 = arith.mulf %219, %220 : vector<16x8xf32>
    %222 = vector.extract_strided_slice %20 {offsets = [0, 88], sizes = [16, 8], strides = [1, 1]} : vector<16x128xbf16> to vector<16x8xbf16>
    %223 = vector.extract_strided_slice %21 {offsets = [0, 152], sizes = [16, 8], strides = [1, 1]} : vector<16x256xbf16> to vector<16x8xbf16>
    %224 = vector.extract_strided_slice %21 {offsets = [0, 216], sizes = [16, 8], strides = [1, 1]} : vector<16x256xbf16> to vector<16x8xbf16>
    %cst_66 = arith.constant dense<0.000000e+00> : vector<16x16xf32>
    %225 = tpu.matmul %222, %223, %cst_66 {dimension_numbers = #tpu.dot_dimension_numbers<[1], [1], [0], [0], [0, 0, 1, 0], [], []>} : vector<16x8xbf16>, vector<16x8xbf16>, vector<16x16xf32> -> vector<16x16xf32>
    %226 = arith.addf %225, %34 : vector<16x16xf32>
    %cst_67 = arith.constant dense<0xFF800000> : vector<16xf32>
    %227 = vector.multi_reduction <maximumf>, %226, %cst_67 [1] : vector<16x16xf32> to vector<16xf32>
    %228 = vector.shape_cast %227 : vector<16xf32> to vector<16x1xf32>
    %229 = vector.broadcast %228 : vector<16x1xf32> to vector<16x16xf32>
    %230 = arith.subf %226, %229 : vector<16x16xf32>
    %231 = math.exp %230 : vector<16x16xf32>
    %cst_68 = arith.constant dense<0.000000e+00> : vector<16xf32>
    %232 = vector.multi_reduction <add>, %231, %cst_68 [1] : vector<16x16xf32> to vector<16xf32>
    %233 = vector.shape_cast %232 : vector<16xf32> to vector<16x1xf32>
    %234 = tpu.reciprocal %233 {approx = true} : vector<16x1xf32> -> vector<16x1xf32>
    %235 = arith.truncf %231 : vector<16x16xf32> to vector<16x16xbf16>
    %cst_69 = arith.constant dense<0.000000e+00> : vector<16x8xf32>
    %236 = tpu.matmul %235, %224, %cst_69 {dimension_numbers = #tpu.dot_dimension_numbers<[1], [0], [0], [1], [0, 0, 1, 1], [], []>} : vector<16x16xbf16>, vector<16x8xbf16>, vector<16x8xf32> -> vector<16x8xf32>
    %237 = vector.broadcast %234 : vector<16x1xf32> to vector<16x8xf32>
    %238 = arith.mulf %236, %237 : vector<16x8xf32>
    %239 = vector.extract_strided_slice %20 {offsets = [0, 96], sizes = [16, 8], strides = [1, 1]} : vector<16x128xbf16> to vector<16x8xbf16>
    %240 = vector.extract_strided_slice %21 {offsets = [0, 160], sizes = [16, 8], strides = [1, 1]} : vector<16x256xbf16> to vector<16x8xbf16>
    %241 = vector.extract_strided_slice %21 {offsets = [0, 224], sizes = [16, 8], strides = [1, 1]} : vector<16x256xbf16> to vector<16x8xbf16>
    %cst_70 = arith.constant dense<0.000000e+00> : vector<16x16xf32>
    %242 = tpu.matmul %239, %240, %cst_70 {dimension_numbers = #tpu.dot_dimension_numbers<[1], [1], [0], [0], [0, 0, 1, 0], [], []>} : vector<16x8xbf16>, vector<16x8xbf16>, vector<16x16xf32> -> vector<16x16xf32>
    %243 = arith.addf %242, %34 : vector<16x16xf32>
    %cst_71 = arith.constant dense<0xFF800000> : vector<16xf32>
    %244 = vector.multi_reduction <maximumf>, %243, %cst_71 [1] : vector<16x16xf32> to vector<16xf32>
    %245 = vector.shape_cast %244 : vector<16xf32> to vector<16x1xf32>
    %246 = vector.broadcast %245 : vector<16x1xf32> to vector<16x16xf32>
    %247 = arith.subf %243, %246 : vector<16x16xf32>
    %248 = math.exp %247 : vector<16x16xf32>
    %cst_72 = arith.constant dense<0.000000e+00> : vector<16xf32>
    %249 = vector.multi_reduction <add>, %248, %cst_72 [1] : vector<16x16xf32> to vector<16xf32>
    %250 = vector.shape_cast %249 : vector<16xf32> to vector<16x1xf32>
    %251 = tpu.reciprocal %250 {approx = true} : vector<16x1xf32> -> vector<16x1xf32>
    %252 = arith.truncf %248 : vector<16x16xf32> to vector<16x16xbf16>
    %cst_73 = arith.constant dense<0.000000e+00> : vector<16x8xf32>
    %253 = tpu.matmul %252, %241, %cst_73 {dimension_numbers = #tpu.dot_dimension_numbers<[1], [0], [0], [1], [0, 0, 1, 1], [], []>} : vector<16x16xbf16>, vector<16x8xbf16>, vector<16x8xf32> -> vector<16x8xf32>
    %254 = vector.broadcast %251 : vector<16x1xf32> to vector<16x8xf32>
    %255 = arith.mulf %253, %254 : vector<16x8xf32>
    %256 = vector.extract_strided_slice %20 {offsets = [0, 104], sizes = [16, 8], strides = [1, 1]} : vector<16x128xbf16> to vector<16x8xbf16>
    %257 = vector.extract_strided_slice %21 {offsets = [0, 168], sizes = [16, 8], strides = [1, 1]} : vector<16x256xbf16> to vector<16x8xbf16>
    %258 = vector.extract_strided_slice %21 {offsets = [0, 232], sizes = [16, 8], strides = [1, 1]} : vector<16x256xbf16> to vector<16x8xbf16>
    %cst_74 = arith.constant dense<0.000000e+00> : vector<16x16xf32>
    %259 = tpu.matmul %256, %257, %cst_74 {dimension_numbers = #tpu.dot_dimension_numbers<[1], [1], [0], [0], [0, 0, 1, 0], [], []>} : vector<16x8xbf16>, vector<16x8xbf16>, vector<16x16xf32> -> vector<16x16xf32>
    %260 = arith.addf %259, %34 : vector<16x16xf32>
    %cst_75 = arith.constant dense<0xFF800000> : vector<16xf32>
    %261 = vector.multi_reduction <maximumf>, %260, %cst_75 [1] : vector<16x16xf32> to vector<16xf32>
    %262 = vector.shape_cast %261 : vector<16xf32> to vector<16x1xf32>
    %263 = vector.broadcast %262 : vector<16x1xf32> to vector<16x16xf32>
    %264 = arith.subf %260, %263 : vector<16x16xf32>
    %265 = math.exp %264 : vector<16x16xf32>
    %cst_76 = arith.constant dense<0.000000e+00> : vector<16xf32>
    %266 = vector.multi_reduction <add>, %265, %cst_76 [1] : vector<16x16xf32> to vector<16xf32>
    %267 = vector.shape_cast %266 : vector<16xf32> to vector<16x1xf32>
    %268 = tpu.reciprocal %267 {approx = true} : vector<16x1xf32> -> vector<16x1xf32>
    %269 = arith.truncf %265 : vector<16x16xf32> to vector<16x16xbf16>
    %cst_77 = arith.constant dense<0.000000e+00> : vector<16x8xf32>
    %270 = tpu.matmul %269, %258, %cst_77 {dimension_numbers = #tpu.dot_dimension_numbers<[1], [0], [0], [1], [0, 0, 1, 1], [], []>} : vector<16x16xbf16>, vector<16x8xbf16>, vector<16x8xf32> -> vector<16x8xf32>
    %271 = vector.broadcast %268 : vector<16x1xf32> to vector<16x8xf32>
    %272 = arith.mulf %270, %271 : vector<16x8xf32>
    %273 = vector.extract_strided_slice %20 {offsets = [0, 112], sizes = [16, 8], strides = [1, 1]} : vector<16x128xbf16> to vector<16x8xbf16>
    %274 = vector.extract_strided_slice %21 {offsets = [0, 176], sizes = [16, 8], strides = [1, 1]} : vector<16x256xbf16> to vector<16x8xbf16>
    %275 = vector.extract_strided_slice %21 {offsets = [0, 240], sizes = [16, 8], strides = [1, 1]} : vector<16x256xbf16> to vector<16x8xbf16>
    %cst_78 = arith.constant dense<0.000000e+00> : vector<16x16xf32>
    %276 = tpu.matmul %273, %274, %cst_78 {dimension_numbers = #tpu.dot_dimension_numbers<[1], [1], [0], [0], [0, 0, 1, 0], [], []>} : vector<16x8xbf16>, vector<16x8xbf16>, vector<16x16xf32> -> vector<16x16xf32>
    %277 = arith.addf %276, %34 : vector<16x16xf32>
    %cst_79 = arith.constant dense<0xFF800000> : vector<16xf32>
    %278 = vector.multi_reduction <maximumf>, %277, %cst_79 [1] : vector<16x16xf32> to vector<16xf32>
    %279 = vector.shape_cast %278 : vector<16xf32> to vector<16x1xf32>
    %280 = vector.broadcast %279 : vector<16x1xf32> to vector<16x16xf32>
    %281 = arith.subf %277, %280 : vector<16x16xf32>
    %282 = math.exp %281 : vector<16x16xf32>
    %cst_80 = arith.constant dense<0.000000e+00> : vector<16xf32>
    %283 = vector.multi_reduction <add>, %282, %cst_80 [1] : vector<16x16xf32> to vector<16xf32>
    %284 = vector.shape_cast %283 : vector<16xf32> to vector<16x1xf32>
    %285 = tpu.reciprocal %284 {approx = true} : vector<16x1xf32> -> vector<16x1xf32>
    %286 = arith.truncf %282 : vector<16x16xf32> to vector<16x16xbf16>
    %cst_81 = arith.constant dense<0.000000e+00> : vector<16x8xf32>
    %287 = tpu.matmul %286, %275, %cst_81 {dimension_numbers = #tpu.dot_dimension_numbers<[1], [0], [0], [1], [0, 0, 1, 1], [], []>} : vector<16x16xbf16>, vector<16x8xbf16>, vector<16x8xf32> -> vector<16x8xf32>
    %288 = vector.broadcast %285 : vector<16x1xf32> to vector<16x8xf32>
    %289 = arith.mulf %287, %288 : vector<16x8xf32>
    %290 = vector.extract_strided_slice %20 {offsets = [0, 120], sizes = [16, 8], strides = [1, 1]} : vector<16x128xbf16> to vector<16x8xbf16>
    %291 = vector.extract_strided_slice %21 {offsets = [0, 184], sizes = [16, 8], strides = [1, 1]} : vector<16x256xbf16> to vector<16x8xbf16>
    %292 = vector.extract_strided_slice %21 {offsets = [0, 248], sizes = [16, 8], strides = [1, 1]} : vector<16x256xbf16> to vector<16x8xbf16>
    %cst_82 = arith.constant dense<0.000000e+00> : vector<16x16xf32>
    %293 = tpu.matmul %290, %291, %cst_82 {dimension_numbers = #tpu.dot_dimension_numbers<[1], [1], [0], [0], [0, 0, 1, 0], [], []>} : vector<16x8xbf16>, vector<16x8xbf16>, vector<16x16xf32> -> vector<16x16xf32>
    %294 = arith.addf %293, %34 : vector<16x16xf32>
    %cst_83 = arith.constant dense<0xFF800000> : vector<16xf32>
    %295 = vector.multi_reduction <maximumf>, %294, %cst_83 [1] : vector<16x16xf32> to vector<16xf32>
    %296 = vector.shape_cast %295 : vector<16xf32> to vector<16x1xf32>
    %297 = vector.broadcast %296 : vector<16x1xf32> to vector<16x16xf32>
    %298 = arith.subf %294, %297 : vector<16x16xf32>
    %299 = math.exp %298 : vector<16x16xf32>
    %cst_84 = arith.constant dense<0.000000e+00> : vector<16xf32>
    %300 = vector.multi_reduction <add>, %299, %cst_84 [1] : vector<16x16xf32> to vector<16xf32>
    %301 = vector.shape_cast %300 : vector<16xf32> to vector<16x1xf32>
    %302 = tpu.reciprocal %301 {approx = true} : vector<16x1xf32> -> vector<16x1xf32>
    %303 = arith.truncf %299 : vector<16x16xf32> to vector<16x16xbf16>
    %cst_85 = arith.constant dense<0.000000e+00> : vector<16x8xf32>
    %304 = tpu.matmul %303, %292, %cst_85 {dimension_numbers = #tpu.dot_dimension_numbers<[1], [0], [0], [1], [0, 0, 1, 1], [], []>} : vector<16x16xbf16>, vector<16x8xbf16>, vector<16x8xf32> -> vector<16x8xf32>
    %305 = vector.broadcast %302 : vector<16x1xf32> to vector<16x8xf32>
    %306 = arith.mulf %304, %305 : vector<16x8xf32>
    %307 = tpu.concatenate %51, %68, %85, %102, %119, %136, %153, %170 in 1 : vector<16x8xf32>, vector<16x8xf32>, vector<16x8xf32>, vector<16x8xf32>, vector<16x8xf32>, vector<16x8xf32>, vector<16x8xf32>, vector<16x8xf32> -> vector<16x64xf32>
    %308 = arith.truncf %307 : vector<16x64xf32> to vector<16x64xbf16>
    %309 = tpu.concatenate %187, %204, %221, %238, %255, %272, %289, %306 in 1 : vector<16x8xf32>, vector<16x8xf32>, vector<16x8xf32>, vector<16x8xf32>, vector<16x8xf32>, vector<16x8xf32>, vector<16x8xf32>, vector<16x8xf32> -> vector<16x64xf32>
    %310 = arith.truncf %309 : vector<16x64xf32> to vector<16x64xbf16>
    %c0_86 = arith.constant 0 : index
    %c0_87 = arith.constant 0 : index
    %c0_88 = arith.constant 0 : index
    %311 = vector.load %arg10[%c0_86, %c0_87, %c0_88] : memref<2x64x64xbf16, #tpu.memory_space<vmem>>, vector<1x64x64xbf16>
    %312 = vector.shape_cast %311 : vector<1x64x64xbf16> to vector<64x64xbf16>
    %cst_89 = arith.constant dense<0.000000e+00> : vector<16x64xf32>
    %313 = tpu.matmul %308, %312, %cst_89 {dimension_numbers = #tpu.dot_dimension_numbers<[1], [0], [0], [1], [0, 0, 1, 1], [], []>} : vector<16x64xbf16>, vector<64x64xbf16>, vector<16x64xf32> -> vector<16x64xf32>
    %c1 = arith.constant 1 : index
    %c0_90 = arith.constant 0 : index
    %c0_91 = arith.constant 0 : index
    %314 = vector.load %arg10[%c1, %c0_90, %c0_91] : memref<2x64x64xbf16, #tpu.memory_space<vmem>>, vector<1x64x64xbf16>
    %315 = vector.shape_cast %314 : vector<1x64x64xbf16> to vector<64x64xbf16>
    %cst_92 = arith.constant dense<0.000000e+00> : vector<16x64xf32>
    %316 = tpu.matmul %310, %315, %cst_92 {dimension_numbers = #tpu.dot_dimension_numbers<[1], [0], [0], [1], [0, 0, 1, 1], [], []>} : vector<16x64xbf16>, vector<64x64xbf16>, vector<16x64xf32> -> vector<16x64xf32>
    %317 = tpu.concatenate %313, %316 in 1 : vector<16x64xf32>, vector<16x64xf32> -> vector<16x128xf32>
    %c0_93 = arith.constant 0 : index
    %c0_94 = arith.constant 0 : index
    %318 = vector.load %arg11[%c0_93, %c0_94] : memref<1x128xf32, #tpu.memory_space<vmem>>, vector<1x128xf32>
    %319 = vector.broadcast %318 : vector<1x128xf32> to vector<16x128xf32>
    %320 = arith.addf %317, %319 : vector<16x128xf32>
    %c0_95 = arith.constant 0 : index
    %c0_96 = arith.constant 0 : index
    %c0_97 = arith.constant 0 : index
    %321 = vector.load %arg12[%c0_95, %c0_96, %c0_97] : memref<1x16x128xf32, #tpu.memory_space<vmem>>, vector<1x16x128xf32>
    %322 = vector.shape_cast %321 : vector<1x16x128xf32> to vector<16x128xf32>
    %323 = vector.shape_cast %320 : vector<16x128xf32> to vector<1x16x128xf32>
    tpu.vector_store %arg12[%c0_95, %c0_96, %c0_97], %323 {strides = array<i32>} : memref<1x16x128xf32, #tpu.memory_space<vmem>>, vector<1x16x128xf32>,
    return
  }
  func.func @transform_0(%arg0: i32, %arg1: i32) -> (i32, i32, i32) {
    %c0_i32 = arith.constant 0 : i32
    %c0_i32_0 = arith.constant 0 : i32
    return %arg0, %arg1, %c0_i32 : i32, i32, i32
  }
  func.func @transform_1(%arg0: i32, %arg1: i32) -> (i32, i32) {
    %c0_i32 = arith.constant 0 : i32
    %c0_i32_0 = arith.constant 0 : i32
    return %arg1, %c0_i32 : i32, i32
  }
  func.func @transform_2(%arg0: i32, %arg1: i32) -> (i32, i32, i32) {
    %c0_i32 = arith.constant 0 : i32
    %c0_i32_0 = arith.constant 0 : i32
    %c0_i32_1 = arith.constant 0 : i32
    return %arg0, %c0_i32, %c0_i32_0 : i32, i32, i32
  }
  func.func @transform_3(%arg0: i32, %arg1: i32) -> (i32, i32) {
    %c0_i32 = arith.constant 0 : i32
    %c0_i32_0 = arith.constant 0 : i32
    %c0_i32_1 = arith.constant 0 : i32
    return %c0_i32, %c0_i32_0 : i32, i32
  }
  func.func @transform_4(%arg0: i32, %arg1: i32) -> (i32, i32) {
    %c0_i32 = arith.constant 0 : i32
    %c0_i32_0 = arith.constant 0 : i32
    %c0_i32_1 = arith.constant 0 : i32
    return %c0_i32, %c0_i32_0 : i32, i32
  }
  func.func @transform_5(%arg0: i32, %arg1: i32) -> (i32, i32) {
    %c0_i32 = arith.constant 0 : i32
    %c0_i32_0 = arith.constant 0 : i32
    %c0_i32_1 = arith.constant 0 : i32
    return %c0_i32, %c0_i32_0 : i32, i32
  }
  func.func @transform_6(%arg0: i32, %arg1: i32) -> (i32, i32) {
    %c0_i32 = arith.constant 0 : i32
    %c0_i32_0 = arith.constant 0 : i32
    %c0_i32_1 = arith.constant 0 : i32
    return %c0_i32, %c0_i32_0 : i32, i32
  }
  func.func @transform_7(%arg0: i32, %arg1: i32) -> (i32, i32) {
    %c0_i32 = arith.constant 0 : i32
    %c0_i32_0 = arith.constant 0 : i32
    %c0_i32_1 = arith.constant 0 : i32
    return %c0_i32, %c0_i32_0 : i32, i32
  }
  func.func @transform_8(%arg0: i32, %arg1: i32) -> (i32, i32, i32) {
    %c0_i32 = arith.constant 0 : i32
    %c0_i32_0 = arith.constant 0 : i32
    %c0_i32_1 = arith.constant 0 : i32
    %c0_i32_2 = arith.constant 0 : i32
    return %c0_i32, %c0_i32_0, %c0_i32_1 : i32, i32, i32
  }
  func.func @transform_9(%arg0: i32, %arg1: i32) -> (i32, i32) {
    %c0_i32 = arith.constant 0 : i32
    %c0_i32_0 = arith.constant 0 : i32
    %c0_i32_1 = arith.constant 0 : i32
    return %c0_i32, %c0_i32_0 : i32, i32
  }
  func.func @transform_10(%arg0: i32, %arg1: i32) -> (i32, i32, i32) {
    %c0_i32 = arith.constant 0 : i32
    %c0_i32_0 = arith.constant 0 : i32
    return %arg0, %arg1, %c0_i32 : i32, i32, i32
  }
}

</mosaic_0001>

<llo_original>
// kernel: tpu_custom_call.1
$region0: #{tpu_custom_call.1}
  #allocation0 [shape = 'u32[]', space=smem, size = 0x4, offset = 0x4, fixed_abs, tag = 'smem constant byte address 0x4 - core index']
  #allocation1 [shape = 'u32[144,128]{1,0:T(1,128)}', space=vmem, size = 0x12000, scoped, tag = 'internal scratch']
  %s0 = inlined_call_operand.hbm [shape: f32[2,16,64], index: 0, kind: input, shape index: {}]
  %s1 = inlined_call_operand.hbm [shape: f32[16,64], index: 1, kind: input, shape index: {}]
  %s2 = inlined_call_operand.hbm [shape: f32[2,16,64], index: 2, kind: input, shape index: {}]
  %s3 = inlined_call_operand.hbm [shape: f32[16,64], index: 3, kind: input, shape index: {}]
  %s4 = inlined_call_operand.hbm [shape: bf16[64,128], index: 4, kind: input, shape index: {}]
  %s5 = inlined_call_operand.vmem [shape: f32[1,128], index: 5, kind: input, shape index: {}]
  %s6 = inlined_call_operand.hbm [shape: bf16[64,256], index: 6, kind: input, shape index: {}]
  %s7 = inlined_call_operand.vmem [shape: f32[1,256], index: 7, kind: input, shape index: {}]
  %s8 = inlined_call_operand.hbm [shape: bf16[2,64,64], index: 8, kind: input, shape index: {}]
  %s9 = inlined_call_operand.vmem [shape: f32[1,128], index: 9, kind: input, shape index: {}]
  %s10 = inlined_call_operand.hbm [shape: f32[2,16,128], index: 10, kind: output, shape index: {}]
  %s11 = sld [smem:[#allocation0]]
  $region101: #{tpu_custom_call.1} parent=0
    _
  %s13 = ssub.s32 1, %s11
  %s14 = scalar_select 0, %s13, %s11
  $region1: #{tpu_custom_call.1} parent=0
    #allocation2 [shape = 'u8[16384]{0}', space=vmem, size = 0x4000, scoped, tag = 'input window, operand 0']
    #allocation3 [shape = 's32[2]{0}', space=sflag, size = 0x8, scoped, tag = 'scoped memory for tpu_custom_call.1']
    #allocation4 [shape = 's32[2]{0}', space=sflag, size = 0x8, scoped, tag = 'scoped memory for tpu_custom_call.1']
    #allocation5 [shape = 'u8[8192]{0}', space=vmem, size = 0x2000, scoped, tag = 'input window, operand 1, single buffered']
    #allocation6 [shape = 's32[1]{0}', space=sflag, size = 0x4, scoped, tag = 'scoped memory for tpu_custom_call.1']
    #allocation7 [shape = 'u8[16384]{0}', space=vmem, size = 0x4000, scoped, tag = 'input window, operand 2']
    #allocation8 [shape = 'u8[8192]{0}', space=vmem, size = 0x2000, scoped, tag = 'input window, operand 3, single buffered']
    #allocation9 [shape = 'u8[16384]{0}', space=vmem, size = 0x4000, scoped, tag = 'input window, operand 4, single buffered']
    #allocation10 [shape = 's32[1]{0}', space=sflag, size = 0x4, scoped, tag = 'scoped memory for tpu_custom_call.1']
    #allocation11 [shape = 'u8[32768]{0}', space=vmem, size = 0x8000, scoped, tag = 'input window, operand 6, single buffered']
    #allocation12 [shape = 'u8[32768]{0}', space=vmem, size = 0x8000, scoped, tag = 'input window, operand 8, single buffered']
    #allocation13 [shape = 's32[1]{0}', space=sflag, size = 0x4, scoped, tag = 'scoped memory for tpu_custom_call.1']
    #allocation14 [shape = 'u8[16384]{0}', space=vmem, size = 0x4000, scoped, tag = 'output window, operand 0']
    %15 = vsyncpa [#allocation3], 0
    %s16 = scalar_lea.sflag [#allocation3], 1
    %17 = vsyncpa %s16, 0
    %18 = vsyncpa [#allocation6], 0
    %19 = vsyncpa [#allocation10], 0
    %20 = vsyncpa [#allocation13], 0
    %21 = vsyncpa [#allocation4], 0
    %s22 = scalar_lea.sflag [#allocation4], 1
    %23 = vsyncpa %s22, 0
    loop: start=0, step=1, limit=4
    $region2: #{tpu_custom_call.1} parent=1 // loop_pre_header
      _
    $region3: #{tpu_custom_call.1} parent=1 // loop_header
      %s25 = sphi 0, %s29
      %p26 = scmp.ge.s32.totalorder %s25, 4
      %s32 = sphi 0, %s44
      %s33 = sphi 0, %s40
      %s34 = sphi 0, %s32
      %s35 = sphi 0, %s33
      %s36 = sphi 0, %s34
      %s37 = sphi 0, %s35
      %s49 = sphi 0, %s51
      %s52 = sphi 0, %s49
      %s53 = sphi 0, %s52
      %s69 = sphi 0, %s53
      %s75 = sphi 0, %s77
      %s78 = sphi 0, %s75
      %s79 = sphi 0, %s78
      %s95 = sphi 0, %s79
      %s101 = sphi 0, %s103
      %s104 = sphi 0, %s101
      %s105 = sphi 0, %s104
      %s121 = sphi 0, %s105
      %s125 = sphi 0, %s125
      %s127 = sphi 0, %s125
      %s128 = sphi 0, %s127
      %s142 = sphi 0, %s128
      %s146 = sphi 0, %s146
      %s148 = sphi 0, %s146
      %s149 = sphi 0, %s148
      %s163 = sphi 0, %s149
      %s167 = sphi 0, %s167
      %s169 = sphi 0, %s167
      %s170 = sphi 0, %s169
      %s184 = sphi 0, %s170
      %s188 = sphi 0, %s188
      %s190 = sphi 0, %s188
      %s191 = sphi 0, %s190
      %s205 = sphi 0, %s191
      %s209 = sphi 0, %s209
      %s211 = sphi 0, %s209
      %s212 = sphi 0, %s211
      %s226 = sphi 0, %s212
      %s230 = sphi 0, %s230
      %s232 = sphi 0, %s230
      %s233 = sphi 0, %s232
      %s247 = sphi 0, %s233
      %s251 = sphi 0, %s251
      %s253 = sphi 0, %s251
      %s254 = sphi 0, %s253
      %s268 = sphi 0, %s254
      %s276 = sphi 0, %s278
      %s279 = sphi 0, %s276
      %s280 = sphi 0, %s279
      %s296 = sphi 0, %s280
    $region4: #{tpu_custom_call.1} parent=1 // loop_header_branch
      %28 = sbr.rel (%p26) target = $region8
    $region5: #{tpu_custom_call.1} parent=1 // loop_body
      %s30 = ssub.s32 %s25, 1
      %s31 = ssub.s32 %s25, 2
      %s38 = sadd.s32 1, %s33
      %p39 = scmp.ge.s32.totalorder %s38, 1
      %s40 = scalar_select %p39, 0, %s38
      %s41 = sadd.s32 1, %s32
      %s42 = scalar_select %p39, %s41, %s32
      %p43 = scmp.ge.s32.totalorder %s42, 2
      %s44 = scalar_select %p43, 0, %s42
      %s45 = ssub.s32 %s32, %s44
      %s46 = ssub.s32 %s33, %s40
      %s47 = sor.u32 %s45, %s46
      %p48 = scmp.eq.s32.totalorder %s47, 0
      %s50 = sadd.s32 %s49, 1
      %s51 = scalar_select %p48, %s49, %s50
      %p54 = pneg %p48
      %p55 = scmp.eq.s32.totalorder %s25, 1
      %p56 = por %p54, %p55
      %p57 = scmp.ne.s32.totalorder %s49, %s52
      %p58 = scmp.eq.s32.totalorder %s25, 0
      %p59 = por %p57, %p58
      %p60 = scmp.ne.s32.totalorder %s49, %s52
      %p61 = scmp.eq.s32.totalorder %s30, 1
      %p62 = por %p60, %p61
      %p63 = scmp.ne.s32.totalorder %s52, %s53
      %p64 = scmp.eq.s32.totalorder %s30, 0
      %p65 = por %p63, %p64
      %p66 = scmp.ne.s32.totalorder %s52, %s53
      %p67 = scmp.eq.s32.totalorder %s31, 1
      %p68 = por %p66, %p67
      %p70 = scmp.ne.s32.totalorder %s53, %s69
      %p71 = scmp.eq.s32.totalorder %s31, 0
      %p72 = por %p70, %p71
      %s73 = ssub.s32 %s33, %s40
      %p74 = scmp.eq.s32.totalorder %s73, 0
      %s76 = sadd.s32 %s75, 1
      %s77 = scalar_select %p74, %s75, %s76
      %p80 = pneg %p74
      %p81 = scmp.eq.s32.totalorder %s25, 1
      %p82 = por %p80, %p81
      %p83 = scmp.ne.s32.totalorder %s75, %s78
      %p84 = scmp.eq.s32.totalorder %s25, 0
      %p85 = por %p83, %p84
      %p86 = scmp.ne.s32.totalorder %s75, %s78
      %p87 = scmp.eq.s32.totalorder %s30, 1
      %p88 = por %p86, %p87
      %p89 = scmp.ne.s32.totalorder %s78, %s79
      %p90 = scmp.eq.s32.totalorder %s30, 0
      %p91 = por %p89, %p90
      %p92 = scmp.ne.s32.totalorder %s78, %s79
      %p93 = scmp.eq.s32.totalorder %s31, 1
      %p94 = por %p92, %p93
      %p96 = scmp.ne.s32.totalorder %s79, %s95
      %p97 = scmp.eq.s32.totalorder %s31, 0
      %p98 = por %p96, %p97
      %s99 = ssub.s32 %s32, %s44
      %p100 = scmp.eq.s32.totalorder %s99, 0
      %s102 = sadd.s32 %s101, 1
      %s103 = scalar_select %p100, %s101, %s102
      %p106 = pneg %p100
      %p107 = scmp.eq.s32.totalorder %s25, 1
      %p108 = por %p106, %p107
      %p109 = scmp.ne.s32.totalorder %s101, %s104
      %p110 = scmp.eq.s32.totalorder %s25, 0
      %p111 = por %p109, %p110
      %p112 = scmp.ne.s32.totalorder %s101, %s104
      %p113 = scmp.eq.s32.totalorder %s30, 1
      %p114 = por %p112, %p113
      %p115 = scmp.ne.s32.totalorder %s104, %s105
      %p116 = scmp.eq.s32.totalorder %s30, 0
      %p117 = por %p115, %p116
      %p118 = scmp.ne.s32.totalorder %s104, %s105
      %p119 = scmp.eq.s32.totalorder %s31, 1
      %p120 = por %p118, %p119
      %p122 = scmp.ne.s32.totalorder %s105, %s121
      %p123 = scmp.eq.s32.totalorder %s31, 0
      %p124 = por %p122, %p123
      %s126 = sadd.s32 %s125, 1
      %p129 = scmp.eq.s32.totalorder %s25, 1
      %p130 = scmp.ne.s32.totalorder %s125, %s127
      %p131 = scmp.eq.s32.totalorder %s25, 0
      %p132 = por %p130, %p131
      %p133 = scmp.ne.s32.totalorder %s125, %s127
      %p134 = scmp.eq.s32.totalorder %s30, 1
      %p135 = por %p133, %p134
      %p136 = scmp.ne.s32.totalorder %s127, %s128
      %p137 = scmp.eq.s32.totalorder %s30, 0
      %p138 = por %p136, %p137
      %p139 = scmp.ne.s32.totalorder %s127, %s128
      %p140 = scmp.eq.s32.totalorder %s31, 1
      %p141 = por %p139, %p140
      %p143 = scmp.ne.s32.totalorder %s128, %s142
      %p144 = scmp.eq.s32.totalorder %s31, 0
      %p145 = por %p143, %p144
      %s147 = sadd.s32 %s146, 1
      %p150 = scmp.eq.s32.totalorder %s25, 1
      %p151 = scmp.ne.s32.totalorder %s146, %s148
      %p152 = scmp.eq.s32.totalorder %s25, 0
      %p153 = por %p151, %p152
      %p154 = scmp.ne.s32.totalorder %s146, %s148
      %p155 = scmp.eq.s32.totalorder %s30, 1
      %p156 = por %p154, %p155
      %p157 = scmp.ne.s32.totalorder %s148, %s149
      %p158 = scmp.eq.s32.totalorder %s30, 0
      %p159 = por %p157, %p158
      %p160 = scmp.ne.s32.totalorder %s148, %s149
      %p161 = scmp.eq.s32.totalorder %s31, 1
      %p162 = por %p160, %p161
      %p164 = scmp.ne.s32.totalorder %s149, %s163
      %p165 = scmp.eq.s32.totalorder %s31, 0
      %p166 = por %p164, %p165
      %s168 = sadd.s32 %s167, 1
      %p171 = scmp.eq.s32.totalorder %s25, 1
      %p172 = scmp.ne.s32.totalorder %s167, %s169
      %p173 = scmp.eq.s32.totalorder %s25, 0
      %p174 = por %p172, %p173
      %p175 = scmp.ne.s32.totalorder %s167, %s169
      %p176 = scmp.eq.s32.totalorder %s30, 1
      %p177 = por %p175, %p176
      %p178 = scmp.ne.s32.totalorder %s169, %s170
      %p179 = scmp.eq.s32.totalorder %s30, 0
      %p180 = por %p178, %p179
      %p181 = scmp.ne.s32.totalorder %s169, %s170
      %p182 = scmp.eq.s32.totalorder %s31, 1
      %p183 = por %p181, %p182
      %p185 = scmp.ne.s32.totalorder %s170, %s184
      %p186 = scmp.eq.s32.totalorder %s31, 0
      %p187 = por %p185, %p186
      %s189 = sadd.s32 %s188, 1
      %p192 = scmp.eq.s32.totalorder %s25, 1
      %p193 = scmp.ne.s32.totalorder %s188, %s190
      %p194 = scmp.eq.s32.totalorder %s25, 0
      %p195 = por %p193, %p194
      %p196 = scmp.ne.s32.totalorder %s188, %s190
      %p197 = scmp.eq.s32.totalorder %s30, 1
      %p198 = por %p196, %p197
      %p199 = scmp.ne.s32.totalorder %s190, %s191
      %p200 = scmp.eq.s32.totalorder %s30, 0
      %p201 = por %p199, %p200
      %p202 = scmp.ne.s32.totalorder %s190, %s191
      %p203 = scmp.eq.s32.totalorder %s31, 1
      %p204 = por %p202, %p203
      %p206 = scmp.ne.s32.totalorder %s191, %s205
      %p207 = scmp.eq.s32.totalorder %s31, 0
      %p208 = por %p206, %p207
      %s210 = sadd.s32 %s209, 1
      %p213 = scmp.eq.s32.totalorder %s25, 1
      %p214 = scmp.ne.s32.totalorder %s209, %s211
      %p215 = scmp.eq.s32.totalorder %s25, 0
      %p216 = por %p214, %p215
      %p217 = scmp.ne.s32.totalorder %s209, %s211
      %p218 = scmp.eq.s32.totalorder %s30, 1
      %p219 = por %p217, %p218
      %p220 = scmp.ne.s32.totalorder %s211, %s212
      %p221 = scmp.eq.s32.totalorder %s30, 0
      %p222 = por %p220, %p221
      %p223 = scmp.ne.s32.totalorder %s211, %s212
      %p224 = scmp.eq.s32.totalorder %s31, 1
      %p225 = por %p223, %p224
      %p227 = scmp.ne.s32.totalorder %s212, %s226
      %p228 = scmp.eq.s32.totalorder %s31, 0
      %p229 = por %p227, %p228
      %s231 = sadd.s32 %s230, 1
      %p234 = scmp.eq.s32.totalorder %s25, 1
      %p235 = scmp.ne.s32.totalorder %s230, %s232
      %p236 = scmp.eq.s32.totalorder %s25, 0
      %p237 = por %p235, %p236
      %p238 = scmp.ne.s32.totalorder %s230, %s232
      %p239 = scmp.eq.s32.totalorder %s30, 1
      %p240 = por %p238, %p239
      %p241 = scmp.ne.s32.totalorder %s232, %s233
      %p242 = scmp.eq.s32.totalorder %s30, 0
      %p243 = por %p241, %p242
      %p244 = scmp.ne.s32.totalorder %s232, %s233
      %p245 = scmp.eq.s32.totalorder %s31, 1
      %p246 = por %p244, %p245
      %p248 = scmp.ne.s32.totalorder %s233, %s247
      %p249 = scmp.eq.s32.totalorder %s31, 0
      %p250 = por %p248, %p249
      %s252 = sadd.s32 %s251, 1
      %p255 = scmp.eq.s32.totalorder %s25, 1
      %p256 = scmp.ne.s32.totalorder %s251, %s253
      %p257 = scmp.eq.s32.totalorder %s25, 0
      %p258 = por %p256, %p257
      %p259 = scmp.ne.s32.totalorder %s251, %s253
      %p260 = scmp.eq.s32.totalorder %s30, 1
      %p261 = por %p259, %p260
      %p262 = scmp.ne.s32.totalorder %s253, %s254
      %p263 = scmp.eq.s32.totalorder %s30, 0
      %p264 = por %p262, %p263
      %p265 = scmp.ne.s32.totalorder %s253, %s254
      %p266 = scmp.eq.s32.totalorder %s31, 1
      %p267 = por %p265, %p266
      %p269 = scmp.ne.s32.totalorder %s254, %s268
      %p270 = scmp.eq.s32.totalorder %s31, 0
      %p271 = por %p269, %p270
      %s272 = ssub.s32 %s32, %s44
      %s273 = ssub.s32 %s33, %s40
      %s274 = sor.u32 %s272, %s273
      %p275 = scmp.eq.s32.totalorder %s274, 0
      %s277 = sadd.s32 %s276, 1
      %s278 = scalar_select %p275, %s276, %s277
      %p281 = pneg %p275
      %p282 = scmp.eq.s32.totalorder %s25, 1
      %p283 = por %p281, %p282
      %p284 = scmp.ne.s32.totalorder %s276, %s279
      %p285 = scmp.eq.s32.totalorder %s25, 0
      %p286 = por %p284, %p285
      %p287 = scmp.ne.s32.totalorder %s276, %s279
      %p288 = scmp.eq.s32.totalorder %s30, 1
      %p289 = por %p287, %p288
      %p290 = scmp.ne.s32.totalorder %s279, %s280
      %p291 = scmp.eq.s32.totalorder %s30, 0
      %p292 = por %p290, %p291
      %p293 = scmp.ne.s32.totalorder %s279, %s280
      %p294 = scmp.eq.s32.totalorder %s31, 1
      %p295 = por %p293, %p294
      %p297 = scmp.ne.s32.totalorder %s280, %s296
      %p298 = scmp.eq.s32.totalorder %s31, 0
      %p299 = por %p297, %p298
      %p300 = scmp.le.s32.totalorder 1, %s25
      %p301 = scmp.lt.s32.totalorder %s25, 3
      %p302 = pnand %p300, %p301
      %p303 = pneg %p302
      // Predicated region
      $region9: #{tpu_custom_call.1} parent=5 // pred_check
        _
      $region10: #{tpu_custom_call.1} parent=5 // pred_check_branch
        %305 = sbr.rel (%p302) target = $region12
      $region11: #{tpu_custom_call.1} parent=5 // pred_region
        %s306 = ssub.s32 %s25, 1
        // Predicated region
        $region13: #{tpu_custom_call.1} parent=11 // pred_check
          %p307 = pneg %p91
        $region14: #{tpu_custom_call.1} parent=11 // pred_check_branch
          %309 = sbr.rel (%p307) target = $region16
        $region15: #{tpu_custom_call.1} parent=11 // pred_region
          %s310 = smul.u32 2, %s35
          %s312 = ssub.s32 256, 256
          %313 = vsyncadd [#allocation6], %s312
          %s314 = smul.addr %s310, 128
          %s315 = scalar_lea.hbm %s1, %s314
          %s316 = sshll.u32 [#allocation5], 4
          %s317 = int_to_ptr.vmem [resolvable:$true] %s316
          %322 = dma.hbm_to_vmem [thread:$0]  %s315, 256, %s317, [#allocation6], 128, 128, 8
        $region16: #{tpu_custom_call.1} parent=11 // pred_fallthru
          _
        // Predicated region
        $region17: #{tpu_custom_call.1} parent=11 // pred_check
          %p323 = pneg %p138
        $region18: #{tpu_custom_call.1} parent=11 // pred_check_branch
          %325 = sbr.rel (%p323) target = $region20
        $region19: #{tpu_custom_call.1} parent=11 // pred_region
          %s327 = ssub.s32 256, 256
          %328 = vsyncadd [#allocation6], %s327
          %s329 = sshll.u32 [#allocation8], 4
          %s330 = int_to_ptr.vmem [resolvable:$true] %s329
          %335 = dma.hbm_to_vmem [thread:$0]  %s3, 256, %s330, [#allocation6], 128, 128, 8
        $region20: #{tpu_custom_call.1} parent=11 // pred_fallthru
          _
        // Predicated region
        $region21: #{tpu_custom_call.1} parent=11 // pred_check
          %p336 = pneg %p159
        $region22: #{tpu_custom_call.1} parent=11 // pred_check_branch
          %338 = sbr.rel (%p336) target = $region24
        $region23: #{tpu_custom_call.1} parent=11 // pred_region
          %s340 = ssub.s32 512, 512
          %341 = vsyncadd [#allocation10], %s340
          %s342 = sshll.u32 [#allocation9], 4
          %s343 = int_to_ptr.vmem [resolvable:$true] %s342
          %348 = dma.hbm_to_vmem [thread:$0]  %s4, 512, %s343, [#allocation10], 64, 64, 4
        $region24: #{tpu_custom_call.1} parent=11 // pred_fallthru
          _
        // Predicated region
        $region25: #{tpu_custom_call.1} parent=11 // pred_check
          %p349 = pneg %p180
        $region26: #{tpu_custom_call.1} parent=11 // pred_check_branch
          %351 = sbr.rel (%p349) target = $region28
        $region27: #{tpu_custom_call.1} parent=11 // pred_region
          _
        $region28: #{tpu_custom_call.1} parent=11 // pred_fallthru
          _
        // Predicated region
        $region29: #{tpu_custom_call.1} parent=11 // pred_check
          %p352 = pneg %p201
        $region30: #{tpu_custom_call.1} parent=11 // pred_check_branch
          %354 = sbr.rel (%p352) target = $region32
        $region31: #{tpu_custom_call.1} parent=11 // pred_region
          %s356 = ssub.s32 1024, 1024
          %357 = vsyncadd [#allocation10], %s356
          %s358 = sshll.u32 [#allocation11], 4
          %s359 = int_to_ptr.vmem [resolvable:$true] %s358
          %364 = dma.hbm_to_vmem [thread:$0]  %s6, 1024, %s359, [#allocation10], 128, 128, 8
        $region32: #{tpu_custom_call.1} parent=11 // pred_fallthru
          _
        // Predicated region
        $region33: #{tpu_custom_call.1} parent=11 // pred_check
          %p365 = pneg %p222
        $region34: #{tpu_custom_call.1} parent=11 // pred_check_branch
          %367 = sbr.rel (%p365) target = $region36
        $region35: #{tpu_custom_call.1} parent=11 // pred_region
          _
        $region36: #{tpu_custom_call.1} parent=11 // pred_fallthru
          _
        // Predicated region
        $region37: #{tpu_custom_call.1} parent=11 // pred_check
          %p368 = pneg %p243
        $region38: #{tpu_custom_call.1} parent=11 // pred_check_branch
          %370 = sbr.rel (%p368) target = $region40
        $region39: #{tpu_custom_call.1} parent=11 // pred_region
          %s372 = ssub.s32 1024, 1024
          %373 = vsyncadd [#allocation13], %s372
          %s374 = sshll.u32 [#allocation12], 4
          %s375 = int_to_ptr.vmem [resolvable:$true] %s374
          %380 = dma.hbm_to_vmem [thread:$0]  %s8, 1024, %s375, [#allocation13], 64, 64, 4
        $region40: #{tpu_custom_call.1} parent=11 // pred_fallthru
          _
        // Predicated region
        $region41: #{tpu_custom_call.1} parent=11 // pred_check
          %p381 = pneg %p264
        $region42: #{tpu_custom_call.1} parent=11 // pred_check_branch
          %383 = sbr.rel (%p381) target = $region44
        $region43: #{tpu_custom_call.1} parent=11 // pred_region
          _
        $region44: #{tpu_custom_call.1} parent=11 // pred_fallthru
          _
      $region12: #{tpu_custom_call.1} parent=5 // pred_fallthru
        _
      %p384 = scmp.lt.s32.totalorder %s25, 2
      // Predicated region
      $region45: #{tpu_custom_call.1} parent=5 // pred_check
        %p385 = pneg %p384
      $region46: #{tpu_custom_call.1} parent=5 // pred_check_branch
        %387 = sbr.rel (%p385) target = $region48
      $region47: #{tpu_custom_call.1} parent=5 // pred_region
        // Predicated region
        $region49: #{tpu_custom_call.1} parent=47 // pred_check
          %p388 = pneg %p59
        $region50: #{tpu_custom_call.1} parent=47 // pred_check_branch
          %390 = sbr.rel (%p388) target = $region52
        $region51: #{tpu_custom_call.1} parent=47 // pred_region
          %s391 = sand.u32 %s25, 1
          %s392 = scalar_lea.sflag [#allocation3], %s391
          %s393 = sand.u32 %s49, 1
          %s394 = smul.addr %s393, 16
          %s395 = scalar_lea.vmem [#allocation2], %s394
          %s396 = smul.u32 2, %s33
          %s398 = ssub.s32 256, 256
          %399 = vsyncadd %s392, %s398
          %s400 = smul.addr %s32, 2
          %s401 = sadd.s32 %s396, %s400
          %s402 = smul.addr %s401, 128
          %s403 = scalar_lea.hbm %s0, %s402
          %s404 = sshll.u32 %s395, 4
          %s405 = int_to_ptr.vmem [resolvable:$true] %s404
          %410 = dma.hbm_to_vmem [thread:$0]  %s403, 256, %s405, %s392, 128, 128, 8
        $region52: #{tpu_custom_call.1} parent=47 // pred_fallthru
          _
        // Predicated region
        $region53: #{tpu_custom_call.1} parent=47 // pred_check
          %p411 = pneg %p111
        $region54: #{tpu_custom_call.1} parent=47 // pred_check_branch
          %413 = sbr.rel (%p411) target = $region56
        $region55: #{tpu_custom_call.1} parent=47 // pred_region
          %s414 = sand.u32 %s25, 1
          %s415 = scalar_lea.sflag [#allocation3], %s414
          %s416 = sand.u32 %s101, 1
          %s417 = smul.addr %s416, 16
          %s418 = scalar_lea.vmem [#allocation7], %s417
          %s420 = ssub.s32 256, 256
          %421 = vsyncadd %s415, %s420
          %s422 = smul.addr %s32, 2
          %s423 = smul.addr %s422, 128
          %s424 = scalar_lea.hbm %s2, %s423
          %s425 = sshll.u32 %s418, 4
          %s426 = int_to_ptr.vmem [resolvable:$true] %s425
          %431 = dma.hbm_to_vmem [thread:$0]  %s424, 256, %s426, %s415, 128, 128, 8
        $region56: #{tpu_custom_call.1} parent=47 // pred_fallthru
          _
      $region48: #{tpu_custom_call.1} parent=5 // pred_fallthru
        _
      %p432 = scmp.le.s32.totalorder 1, %s25
      %p433 = scmp.lt.s32.totalorder %s25, 3
      %p434 = pnand %p432, %p433
      %p435 = pneg %p434
      // Predicated region
      $region57: #{tpu_custom_call.1} parent=5 // pred_check
        _
      $region58: #{tpu_custom_call.1} parent=5 // pred_check_branch
        %437 = sbr.rel (%p434) target = $region60
      $region59: #{tpu_custom_call.1} parent=5 // pred_region
        %s438 = ssub.s32 %s25, 1
        %s439 = sand.u32 %s30, 1
        %s440 = scalar_lea.sflag [#allocation3], %s439
        %s441 = sand.u32 %s52, 1
        %s442 = smul.addr %s441, 16
        %s443 = scalar_lea.vmem [#allocation2], %s442
        // Predicated region
        $region61: #{tpu_custom_call.1} parent=59 // pred_check
          %p444 = pneg %p65
        $region62: #{tpu_custom_call.1} parent=59 // pred_check_branch
          %446 = sbr.rel (%p444) target = $region64
        $region63: #{tpu_custom_call.1} parent=59 // pred_region
          %447 = dma.done %s440, 256
        $region64: #{tpu_custom_call.1} parent=59 // pred_fallthru
          _
        // Predicated region
        $region65: #{tpu_custom_call.1} parent=59 // pred_check
          %p448 = pneg %p91
        $region66: #{tpu_custom_call.1} parent=59 // pred_check_branch
          %450 = sbr.rel (%p448) target = $region68
        $region67: #{tpu_custom_call.1} parent=59 // pred_region
          %451 = dma.done [#allocation6], 256
        $region68: #{tpu_custom_call.1} parent=59 // pred_fallthru
          _
        %s452 = sand.u32 %s30, 1
        %s453 = scalar_lea.sflag [#allocation3], %s452
        %s454 = sand.u32 %s104, 1
        %s455 = smul.addr %s454, 16
        %s456 = scalar_lea.vmem [#allocation7], %s455
        // Predicated region
        $region69: #{tpu_custom_call.1} parent=59 // pred_check
          %p457 = pneg %p117
        $region70: #{tpu_custom_call.1} parent=59 // pred_check_branch
          %459 = sbr.rel (%p457) target = $region72
        $region71: #{tpu_custom_call.1} parent=59 // pred_region
          %460 = dma.done %s453, 256
        $region72: #{tpu_custom_call.1} parent=59 // pred_fallthru
          _
        // Predicated region
        $region73: #{tpu_custom_call.1} parent=59 // pred_check
          %p461 = pneg %p138
        $region74: #{tpu_custom_call.1} parent=59 // pred_check_branch
          %463 = sbr.rel (%p461) target = $region76
        $region75: #{tpu_custom_call.1} parent=59 // pred_region
          %464 = dma.done [#allocation6], 256
        $region76: #{tpu_custom_call.1} parent=59 // pred_fallthru
          _
        // Predicated region
        $region77: #{tpu_custom_call.1} parent=59 // pred_check
          %p465 = pneg %p159
        $region78: #{tpu_custom_call.1} parent=59 // pred_check_branch
          %467 = sbr.rel (%p465) target = $region80
        $region79: #{tpu_custom_call.1} parent=59 // pred_region
          %468 = dma.done [#allocation10], 512
        $region80: #{tpu_custom_call.1} parent=59 // pred_fallthru
          _
        // Predicated region
        $region81: #{tpu_custom_call.1} parent=59 // pred_check
          %p469 = pneg %p201
        $region82: #{tpu_custom_call.1} parent=59 // pred_check_branch
          %471 = sbr.rel (%p469) target = $region84
        $region83: #{tpu_custom_call.1} parent=59 // pred_region
          %472 = dma.done [#allocation10], 1024
        $region84: #{tpu_custom_call.1} parent=59 // pred_fallthru
          _
        // Predicated region
        $region85: #{tpu_custom_call.1} parent=59 // pred_check
          %p473 = pneg %p243
        $region86: #{tpu_custom_call.1} parent=59 // pred_check_branch
          %475 = sbr.rel (%p473) target = $region88
        $region87: #{tpu_custom_call.1} parent=59 // pred_region
          %476 = dma.done [#allocation13], 1024
        $region88: #{tpu_custom_call.1} parent=59 // pred_fallthru
          _
        %s477 = sand.u32 %s30, 1
        %s478 = scalar_lea.sflag [#allocation3], %s477
        %s479 = sand.u32 %s52, 1
        %s480 = smul.addr %s479, 16
        %s481 = scalar_lea.vmem [#allocation2], %s480
        %p482 = pneg %p65
        %p483 = pneg %p62
        %p484 = pneg %p91
        %p485 = pneg %p88
        %s486 = sand.u32 %s30, 1
        %s487 = scalar_lea.sflag [#allocation3], %s486
        %s488 = sand.u32 %s104, 1
        %s489 = smul.addr %s488, 16
        %s490 = scalar_lea.vmem [#allocation7], %s489
        %p491 = pneg %p117
        %p492 = pneg %p114
        %p493 = pneg %p138
        %p494 = pneg %p135
        %p495 = pneg %p159
        %p496 = pneg %p156
        %p497 = pneg %p180
        %p498 = pneg %p177
        %p499 = pneg %p201
        %p500 = pneg %p198
        %p501 = pneg %p222
        %p502 = pneg %p219
        %p503 = pneg %p243
        %p504 = pneg %p240
        %p505 = pneg %p264
        %p506 = pneg %p261
        %p507 = pneg %p292
        %p508 = pneg %p289
        %s509 = sand.u32 %s279, 1
        %s510 = scalar_lea.sflag [#allocation4], %s509
        %s511 = sand.u32 %s279, 1
        %s512 = smul.addr %s511, 16
        %s513 = scalar_lea.vmem [#allocation14], %s512
        %s514 = smul.u32 2, %s35
        %s515 = smul.u32 2, %s35
        %s516 = smul.u32 2, %s35
        %v518 = vld [vmem:[%s443] sm:$0xff]
        %v519 = vld [vmem:[%s443 + $0x8] sm:$0xff]
        %v520 = vld [vmem:[#allocation5] sm:$0xff]
        %v521 = vld [vmem:[#allocation5 + $0x8] sm:$0xff]
        %v522 = vadd.f32 %v518, %v520
        %v523 = vadd.f32 %v519, %v521
        %v524 = vpack.c.bf16 %v523, %v522
        %v525 = vld [vmem:[%s456] sm:$0xff]
        %v526 = vld [vmem:[%s456 + $0x8] sm:$0xff]
        %v527 = vld [vmem:[#allocation8] sm:$0xff]
        %v528 = vld [vmem:[#allocation8 + $0x8] sm:$0xff]
        %v529 = vadd.f32 %v525, %v527
        %v530 = vadd.f32 %v526, %v528
        %v531 = vpack.c.bf16 %v530, %v529
        %v532 = vld [vmem:[#allocation9] sm:$0xf]
        %v533 = vld [vmem:[#allocation9 + $0x4] sm:$0xf]
        %v534 = vld [vmem:[#allocation9 + $0x8] sm:$0xf]
        %v535 = vld [vmem:[#allocation9 + $0xc] sm:$0xf]
        %v536 = vld [vmem:[#allocation9 + $0x10] sm:$0xf]
        %v537 = vld [vmem:[#allocation9 + $0x14] sm:$0xf]
        %v538 = vld [vmem:[#allocation9 + $0x18] sm:$0xf]
        %v539 = vld [vmem:[#allocation9 + $0x1c] sm:$0xf]
        %v540 = vld [vmem:[%s5] sm:$0x1]
        %v542 = vlaneseq
        %v543 = vshrl.u32 %v542, 7
        %v544 = vsub.s32 0, %v543
        %v545 = vrot.slane %v540, %v544
        %v555 = vunpack.c.l.b16 %v532
        %v556 = vunpack.c.l.b16 %v533
        %v557 = vunpack.c.l.b16 %v534
        %v558 = vunpack.c.l.b16 %v535
        %v559 = vunpack.c.l.b16 %v536
        %v560 = vunpack.c.l.b16 %v537
        %v561 = vunpack.c.l.b16 %v538
        %v562 = vunpack.c.l.b16 %v539
        %v563 = vpack.c.b16 %v556, %v555
        %v564 = vpack.c.b16 %v558, %v557
        %v565 = vpack.c.b16 %v560, %v559
        %v566 = vpack.c.b16 %v562, %v561
        %vm571 = vcmask 523264
        %v573 = vsel %vm571, %v524, 0
        %575 = vmatprep.subr.bf16.mxu0 0
        %576 = vmatpush1.bf16.msra.mxu0 0
        %577 = vmatprep.subr.bf16.mxu0 0
        %578 = vmatpush1.bf16.msra.mxu0 0
        %579 = vmatprep.subr.bf16.mxu0 0
        %580 = vmatpush1.bf16.msra.mxu0 0
        %581 = vmatprep.subr.bf16.mxu0 0
        %582 = vmatpush1.bf16.msra.mxu0 0
        %583 = vmatprep.subr.bf16.mxu0 0
        %584 = vmatpush1.bf16.msra.mxu0 %v566
        %585 = vmatprep.subr.bf16.mxu0 0
        %586 = vmatpush1.bf16.msra.mxu0 %v565
        %587 = vmatprep.subr.bf16.mxu0 0
        %588 = vmatpush1.bf16.msra.mxu0 %v564
        %589 = vmatprep.subr.bf16.mxu0 0
        %590 = vmatpush1.bf16.msra.mxu0 %v563
        %591 = vmatprep.subr.bf16.mxu0 0
        %592 = vmatpush2.bf16.msra.mxu0 0
        %593 = vmatprep.subr.bf16.mxu0 0
        %594 = vmatpush2.bf16.msra.mxu0 0
        %595 = vmatprep.subr.bf16.mxu0 0
        %596 = vmatpush2.bf16.msra.mxu0 0
        %597 = vmatprep.subr.bf16.mxu0 0
        %598 = vmatpush2.bf16.msra.mxu0 0
        %599 = vmatprep.subr.bf16.mxu0 0
        %600 = vmatpush2.bf16.msra.mxu0 0
        %601 = vmatprep.subr.bf16.mxu0 0
        %602 = vmatpush2.bf16.msra.mxu0 0
        %603 = vmatprep.subr.bf16.mxu0 0
        %604 = vmatpush2.bf16.msra.mxu0 0
        %605 = vmatprep.subr.bf16.mxu0 0
        %606 = vmatpush2.bf16.msra.mxu0 0
        %607 = vmatprep.mubr.bf16.mxu0 0
        %608 = vmatmul.mubr.bf16.gmra.mxu0 %v573
        %v609 = vpop.f32.mrf.mxu0
        %v610 = vadd.f32 %v545, %v609
        %v611 = vpop.f32.mrf.mxu0
        %v612 = vpop.f32.mrf.mxu0
        %v613 = vadd.f32 %v545, %v612
        %v614 = vpop.f32.mrf.mxu0
        %615 = vdwg.mxu0
        %v616 = vld [vmem:[#allocation11] sm:$0xff]
        %v617 = vld [vmem:[#allocation11 + $0x8] sm:$0xff]
        %v618 = vld [vmem:[#allocation11 + $0x10] sm:$0xff]
        %v619 = vld [vmem:[#allocation11 + $0x18] sm:$0xff]
        %v620 = vld [vmem:[#allocation11 + $0x20] sm:$0xff]
        %v621 = vld [vmem:[#allocation11 + $0x28] sm:$0xff]
        %v622 = vld [vmem:[#allocation11 + $0x30] sm:$0xff]
        %v623 = vld [vmem:[#allocation11 + $0x38] sm:$0xff]
        %v624 = vld [vmem:[%s7] sm:$0x3]
        %v626 = vlaneseq
        %v627 = vshrl.u32 %v626, 7
        %v628 = vsub.s32 0, %v627
        %v629 = vrot.slane %v624, %v628
        %v630 = vlaneseq
        %v631 = vshrl.u32 %v630, 7
        %v632 = vsub.s32 1, %v631
        %v633 = vrot.slane %v624, %v632
        %v644 = vunpack.c.l.b16 %v616
        %v645 = vunpack.c.h.b16 %v616
        %v646 = vunpack.c.l.b16 %v617
        %v647 = vunpack.c.h.b16 %v617
        %v648 = vunpack.c.l.b16 %v618
        %v649 = vunpack.c.h.b16 %v618
        %v650 = vunpack.c.l.b16 %v619
        %v651 = vunpack.c.h.b16 %v619
        %v652 = vunpack.c.l.b16 %v620
        %v653 = vunpack.c.h.b16 %v620
        %v654 = vunpack.c.l.b16 %v621
        %v655 = vunpack.c.h.b16 %v621
        %v656 = vunpack.c.l.b16 %v622
        %v657 = vunpack.c.h.b16 %v622
        %v658 = vunpack.c.l.b16 %v623
        %v659 = vunpack.c.h.b16 %v623
        %v660 = vpack.c.b16 %v646, %v644
        %v661 = vpack.c.b16 %v647, %v645
        %v662 = vpack.c.b16 %v650, %v648
        %v663 = vpack.c.b16 %v651, %v649
        %v664 = vpack.c.b16 %v654, %v652
        %v665 = vpack.c.b16 %v655, %v653
        %v666 = vpack.c.b16 %v658, %v656
        %v667 = vpack.c.b16 %v659, %v657
        %v677 = vsel %vm571, %v531, 0
        %679 = vmatprep.subr.bf16.mxu0 0
        %680 = vmatpush1.bf16.msra.mxu0 0
        %681 = vmatprep.subr.bf16.mxu0 0
        %682 = vmatpush1.bf16.msra.mxu0 0
        %683 = vmatprep.subr.bf16.mxu0 0
        %684 = vmatpush1.bf16.msra.mxu0 0
        %685 = vmatprep.subr.bf16.mxu0 0
        %686 = vmatpush1.bf16.msra.mxu0 0
        %687 = vmatprep.subr.bf16.mxu0 %v667
        %688 = vmatpush1.bf16.msra.mxu0 %v666
        %689 = vmatprep.subr.bf16.mxu0 %v665
        %690 = vmatpush1.bf16.msra.mxu0 %v664
        %691 = vmatprep.subr.bf16.mxu0 %v663
        %692 = vmatpush1.bf16.msra.mxu0 %v662
        %693 = vmatprep.subr.bf16.mxu0 %v661
        %694 = vmatpush1.bf16.msra.mxu0 %v660
        %695 = vmatprep.subr.bf16.mxu0 0
        %696 = vmatpush2.bf16.msra.mxu0 0
        %697 = vmatprep.subr.bf16.mxu0 0
        %698 = vmatpush2.bf16.msra.mxu0 0
        %699 = vmatprep.subr.bf16.mxu0 0
        %700 = vmatpush2.bf16.msra.mxu0 0
        %701 = vmatprep.subr.bf16.mxu0 0
        %702 = vmatpush2.bf16.msra.mxu0 0
        %703 = vmatprep.subr.bf16.mxu0 0
        %704 = vmatpush2.bf16.msra.mxu0 0
        %705 = vmatprep.subr.bf16.mxu0 0
        %706 = vmatpush2.bf16.msra.mxu0 0
        %707 = vmatprep.subr.bf16.mxu0 0
        %708 = vmatpush2.bf16.msra.mxu0 0
        %709 = vmatprep.subr.bf16.mxu0 0
        %710 = vmatpush2.bf16.msra.mxu0 0
        %711 = vmatprep.mubr.bf16.mxu0 0
        %712 = vmatmul.mubr.bf16.gmra.mxu0 %v677
        %v713 = vpop.f32.mrf.mxu0
        %v714 = vadd.f32 %v629, %v713
        %v715 = vpop.f32.mrf.mxu0
        %v716 = vadd.f32 %v633, %v715
        %v717 = vpop.f32.mrf.mxu0
        %v718 = vadd.f32 %v629, %v717
        %v719 = vpop.f32.mrf.mxu0
        %v720 = vadd.f32 %v633, %v719
        %721 = vdwg.mxu0
        %v722 = vpack.c.bf16 %v613, %v610
        %v723 = vpack.c.bf16 %v718, %v714
        %v724 = vpack.c.bf16 %v720, %v716
        %s725 = smul.u32 %s35, 16
        %v726 = vlaneseq
        %v727 = vshrl.u32 %v726, 7
        %v728 = vadd.s32 %v727, 8
        %v729 = vstv %s725
        %v730 = vadd.s32 %v729, %v727
        %v731 = vadd.s32 %v729, %v728
        %v732 = vlaneseq
        %v733 = vand.u32 %v732, 127
        %vm734 = vcmp.gt.s32.totalorder %v730, %v733
        %vm735 = vcmp.gt.s32.totalorder %v731, %v733
        %v736 = vsel %vm734, -inf, 0.0
        %v737 = vsel %vm735, -inf, 0.0
        %vm738 = vcmp.ge.s32.totalorder %v730, %v733
        %vm739 = vcmp.ge.s32.totalorder %v731, %v733
        %v740 = vsel %vm738, -inf, 0.0
        %v741 = vsel %vm739, -inf, 0.0
        %vm742 = vcmask 64512
        %v744 = vsel %vm742, %v722, 0
        %v747 = vsel %vm742, %v723, 0
        %749 = vmatprep.subr.bf16.mxu0 0
        %750 = vmatpush1.bf16.xpose.msra.mxu0 0
        %751 = vmatprep.subr.bf16.mxu0 0
        %752 = vmatpush1.bf16.xpose.msra.mxu0 0
        %753 = vmatprep.subr.bf16.mxu0 0
        %754 = vmatpush1.bf16.xpose.msra.mxu0 0
        %755 = vmatprep.subr.bf16.mxu0 0
        %756 = vmatpush1.bf16.xpose.msra.mxu0 0
        %757 = vmatprep.subr.bf16.mxu0 0
        %758 = vmatpush1.bf16.xpose.msra.mxu0 0
        %759 = vmatprep.subr.bf16.mxu0 0
        %760 = vmatpush1.bf16.xpose.msra.mxu0 0
        %761 = vmatprep.subr.bf16.mxu0 0
        %762 = vmatpush1.bf16.xpose.msra.mxu0 0
        %763 = vmatprep.subr.bf16.mxu0 0
        %764 = vmatpush1.bf16.xpose.msra.mxu0 %v747
        %765 = vmatprep.subr.bf16.mxu0 0
        %766 = vmatpush2.bf16.xpose.msra.mxu0 0
        %767 = vmatprep.subr.bf16.mxu0 0
        %768 = vmatpush2.bf16.xpose.msra.mxu0 0
        %769 = vmatprep.subr.bf16.mxu0 0
        %770 = vmatpush2.bf16.xpose.msra.mxu0 0
        %771 = vmatprep.subr.bf16.mxu0 0
        %772 = vmatpush2.bf16.xpose.msra.mxu0 0
        %773 = vmatprep.subr.bf16.mxu0 0
        %774 = vmatpush2.bf16.xpose.msra.mxu0 0
        %775 = vmatprep.subr.bf16.mxu0 0
        %776 = vmatpush2.bf16.xpose.msra.mxu0 0
        %777 = vmatprep.subr.bf16.mxu0 0
        %778 = vmatpush2.bf16.xpose.msra.mxu0 0
        %779 = vmatprep.subr.bf16.mxu0 0
        %780 = vmatpush2.bf16.xpose.msra.mxu0 0
        %781 = vmatprep.mubr.bf16.mxu0 0
        %782 = vmatmul.mubr.bf16.gmra.mxu0 %v744
        %v783 = vpop.f32.mrf.mxu0
        %v784 = vadd.f32 %v736, %v783
        %v785 = vpop.f32.mrf.mxu0
        %v786 = vpop.f32.mrf.mxu0
        %v787 = vadd.f32 %v737, %v786
        %v788 = vpop.f32.mrf.mxu0
        %789 = vdwg.mxu0
        %vm790 = vcmask 130048
        %v791 = vsel %vm790, %v784, -inf
        %792 = vmax.xlane.f32.xlu0 %v791
        %v793 = vpop.xlane.xlu0 %792
        %v794 = vsel %vm790, %v787, -inf
        %795 = vmax.xlane.f32.xlu0 %v794
        %v796 = vpop.xlane.xlu0 %795
        %v797 = vsub.f32 %v784, %v793
        %v798 = vsub.f32 %v787, %v796
        %v799 = vmul.f32 %v797, 1.442695
        %v800 = vpow.pop %v799
        %v801 = vmul.f32 %v798, 1.442695
        %v802 = vpow.pop %v801
        %v803 = vsel %vm790, %v800, 0.0
        %804 = vadd.xlane.f32.xlu0 %v803
        %v805 = vpop.xlane.xlu0 %804
        %v806 = vsel %vm790, %v802, 0.0
        %807 = vadd.xlane.f32.xlu0 %v806
        %v808 = vpop.xlane.xlu0 %807
        %v809 = vrcp.pop %v805
        %v810 = vrcp.pop %v808
        %v811 = vpack.c.bf16 %v802, %v800
        %813 = vrot.lane.b32.xlu0 %v723, 64
        %v814 = vpop.permute.xlu0 %813
        %v817 = vsel %vm790, %v811, 0
        %819 = vmatprep.subr.bf16.mxu0 0
        %820 = vmatpush1.bf16.msra.mxu0 0
        %821 = vmatprep.subr.bf16.mxu0 0
        %822 = vmatpush1.bf16.msra.mxu0 0
        %823 = vmatprep.subr.bf16.mxu0 0
        %824 = vmatpush1.bf16.msra.mxu0 0
        %825 = vmatprep.subr.bf16.mxu0 0
        %826 = vmatpush1.bf16.msra.mxu0 0
        %827 = vmatprep.subr.bf16.mxu0 0
        %828 = vmatpush1.bf16.msra.mxu0 0
        %829 = vmatprep.subr.bf16.mxu0 0
        %830 = vmatpush1.bf16.msra.mxu0 0
        %831 = vmatprep.subr.bf16.mxu0 0
        %832 = vmatpush1.bf16.msra.mxu0 0
        %833 = vmatprep.subr.bf16.mxu0 0
        %834 = vmatpush1.bf16.msra.mxu0 %v814
        %835 = vmatprep.subr.bf16.mxu0 0
        %836 = vmatpush2.bf16.msra.mxu0 0
        %837 = vmatprep.subr.bf16.mxu0 0
        %838 = vmatpush2.bf16.msra.mxu0 0
        %839 = vmatprep.subr.bf16.mxu0 0
        %840 = vmatpush2.bf16.msra.mxu0 0
        %841 = vmatprep.subr.bf16.mxu0 0
        %842 = vmatpush2.bf16.msra.mxu0 0
        %843 = vmatprep.subr.bf16.mxu0 0
        %844 = vmatpush2.bf16.msra.mxu0 0
        %845 = vmatprep.subr.bf16.mxu0 0
        %846 = vmatpush2.bf16.msra.mxu0 0
        %847 = vmatprep.subr.bf16.mxu0 0
        %848 = vmatpush2.bf16.msra.mxu0 0
        %849 = vmatprep.subr.bf16.mxu0 0
        %850 = vmatpush2.bf16.msra.mxu0 0
        %851 = vmatprep.mubr.bf16.mxu0 0
        %852 = vmatmul.mubr.bf16.gmra.mxu0 %v817
        %v853 = vpop.f32.mrf.mxu0
        %v854 = vadd.f32 0.0, %v853
        %v855 = vpop.f32.mrf.mxu0
        %v856 = vpop.f32.mrf.mxu0
        %v857 = vadd.f32 0.0, %v856
        %v858 = vpop.f32.mrf.mxu0
        %859 = vdwg.mxu0
        %v860 = vmul.f32 %v854, %v809
        %v861 = vmul.f32 %v857, %v810
        %863 = vrot.lane.b32.xlu0 %v722, 120
        %v864 = vpop.permute.xlu0 %863
        %865 = vrot.lane.b32.xlu0 %v723, 120
        %v866 = vpop.permute.xlu0 %865
        %v868 = vsel %vm742, %v864, 0
        %v871 = vsel %vm742, %v866, 0
        %873 = vmatprep.subr.bf16.mxu0 0
        %874 = vmatpush1.bf16.xpose.msra.mxu0 0
        %875 = vmatprep.subr.bf16.mxu0 0
        %876 = vmatpush1.bf16.xpose.msra.mxu0 0
        %877 = vmatprep.subr.bf16.mxu0 0
        %878 = vmatpush1.bf16.xpose.msra.mxu0 0
        %879 = vmatprep.subr.bf16.mxu0 0
        %880 = vmatpush1.bf16.xpose.msra.mxu0 0
        %881 = vmatprep.subr.bf16.mxu0 0
        %882 = vmatpush1.bf16.xpose.msra.mxu0 0
        %883 = vmatprep.subr.bf16.mxu0 0
        %884 = vmatpush1.bf16.xpose.msra.mxu0 0
        %885 = vmatprep.subr.bf16.mxu0 0
        %886 = vmatpush1.bf16.xpose.msra.mxu0 0
        %887 = vmatprep.subr.bf16.mxu0 0
        %888 = vmatpush1.bf16.xpose.msra.mxu0 %v871
        %889 = vmatprep.subr.bf16.mxu0 0
        %890 = vmatpush2.bf16.xpose.msra.mxu0 0
        %891 = vmatprep.subr.bf16.mxu0 0
        %892 = vmatpush2.bf16.xpose.msra.mxu0 0
        %893 = vmatprep.subr.bf16.mxu0 0
        %894 = vmatpush2.bf16.xpose.msra.mxu0 0
        %895 = vmatprep.subr.bf16.mxu0 0
        %896 = vmatpush2.bf16.xpose.msra.mxu0 0
        %897 = vmatprep.subr.bf16.mxu0 0
        %898 = vmatpush2.bf16.xpose.msra.mxu0 0
        %899 = vmatprep.subr.bf16.mxu0 0
        %900 = vmatpush2.bf16.xpose.msra.mxu0 0
        %901 = vmatprep.subr.bf16.mxu0 0
        %902 = vmatpush2.bf16.xpose.msra.mxu0 0
        %903 = vmatprep.subr.bf16.mxu0 0
        %904 = vmatpush2.bf16.xpose.msra.mxu0 0
        %905 = vmatprep.mubr.bf16.mxu0 0
        %906 = vmatmul.mubr.bf16.gmra.mxu0 %v868
        %v907 = vpop.f32.mrf.mxu0
        %v908 = vadd.f32 %v736, %v907
        %v909 = vpop.f32.mrf.mxu0
        %v910 = vpop.f32.mrf.mxu0
        %v911 = vadd.f32 %v737, %v910
        %v912 = vpop.f32.mrf.mxu0
        %913 = vdwg.mxu0
        %v914 = vsel %vm790, %v908, -inf
        %915 = vmax.xlane.f32.xlu0 %v914
        %v916 = vpop.xlane.xlu0 %915
        %v917 = vsel %vm790, %v911, -inf
        %918 = vmax.xlane.f32.xlu0 %v917
        %v919 = vpop.xlane.xlu0 %918
        %v920 = vsub.f32 %v908, %v916
        %v921 = vsub.f32 %v911, %v919
        %v922 = vmul.f32 %v920, 1.442695
        %v923 = vpow.pop %v922
        %v924 = vmul.f32 %v921, 1.442695
        %v925 = vpow.pop %v924
        %v926 = vsel %vm790, %v923, 0.0
        %927 = vadd.xlane.f32.xlu0 %v926
        %v928 = vpop.xlane.xlu0 %927
        %v929 = vsel %vm790, %v925, 0.0
        %930 = vadd.xlane.f32.xlu0 %v929
        %v931 = vpop.xlane.xlu0 %930
        %v932 = vrcp.pop %v928
        %v933 = vrcp.pop %v931
        %v934 = vpack.c.bf16 %v925, %v923
        %935 = vrot.lane.b32.xlu0 %v723, 56
        %v936 = vpop.permute.xlu0 %935
        %v939 = vsel %vm790, %v934, 0
        %941 = vmatprep.subr.bf16.mxu0 0
        %942 = vmatpush1.bf16.msra.mxu0 0
        %943 = vmatprep.subr.bf16.mxu0 0
        %944 = vmatpush1.bf16.msra.mxu0 0
        %945 = vmatprep.subr.bf16.mxu0 0
        %946 = vmatpush1.bf16.msra.mxu0 0
        %947 = vmatprep.subr.bf16.mxu0 0
        %948 = vmatpush1.bf16.msra.mxu0 0
        %949 = vmatprep.subr.bf16.mxu0 0
        %950 = vmatpush1.bf16.msra.mxu0 0
        %951 = vmatprep.subr.bf16.mxu0 0
        %952 = vmatpush1.bf16.msra.mxu0 0
        %953 = vmatprep.subr.bf16.mxu0 0
        %954 = vmatpush1.bf16.msra.mxu0 0
        %955 = vmatprep.subr.bf16.mxu0 0
        %956 = vmatpush1.bf16.msra.mxu0 %v936
        %957 = vmatprep.subr.bf16.mxu0 0
        %958 = vmatpush2.bf16.msra.mxu0 0
        %959 = vmatprep.subr.bf16.mxu0 0
        %960 = vmatpush2.bf16.msra.mxu0 0
        %961 = vmatprep.subr.bf16.mxu0 0
        %962 = vmatpush2.bf16.msra.mxu0 0
        %963 = vmatprep.subr.bf16.mxu0 0
        %964 = vmatpush2.bf16.msra.mxu0 0
        %965 = vmatprep.subr.bf16.mxu0 0
        %966 = vmatpush2.bf16.msra.mxu0 0
        %967 = vmatprep.subr.bf16.mxu0 0
        %968 = vmatpush2.bf16.msra.mxu0 0
        %969 = vmatprep.subr.bf16.mxu0 0
        %970 = vmatpush2.bf16.msra.mxu0 0
        %971 = vmatprep.subr.bf16.mxu0 0
        %972 = vmatpush2.bf16.msra.mxu0 0
        %973 = vmatprep.mubr.bf16.mxu0 0
        %974 = vmatmul.mubr.bf16.gmra.mxu0 %v939
        %v975 = vpop.f32.mrf.mxu0
        %v976 = vadd.f32 0.0, %v975
        %v977 = vpop.f32.mrf.mxu0
        %v978 = vpop.f32.mrf.mxu0
        %v979 = vadd.f32 0.0, %v978
        %v980 = vpop.f32.mrf.mxu0
        %981 = vdwg.mxu0
        %v982 = vmul.f32 %v976, %v932
        %v983 = vmul.f32 %v979, %v933
        %984 = vrot.lane.b32.xlu0 %v722, 112
        %v985 = vpop.permute.xlu0 %984
        %986 = vrot.lane.b32.xlu0 %v723, 112
        %v987 = vpop.permute.xlu0 %986
        %v989 = vsel %vm742, %v985, 0
        %v992 = vsel %vm742, %v987, 0
        %994 = vmatprep.subr.bf16.mxu0 0
        %995 = vmatpush1.bf16.xpose.msra.mxu0 0
        %996 = vmatprep.subr.bf16.mxu0 0
        %997 = vmatpush1.bf16.xpose.msra.mxu0 0
        %998 = vmatprep.subr.bf16.mxu0 0
        %999 = vmatpush1.bf16.xpose.msra.mxu0 0
        %1000 = vmatprep.subr.bf16.mxu0 0
        %1001 = vmatpush1.bf16.xpose.msra.mxu0 0
        %1002 = vmatprep.subr.bf16.mxu0 0
        %1003 = vmatpush1.bf16.xpose.msra.mxu0 0
        %1004 = vmatprep.subr.bf16.mxu0 0
        %1005 = vmatpush1.bf16.xpose.msra.mxu0 0
        %1006 = vmatprep.subr.bf16.mxu0 0
        %1007 = vmatpush1.bf16.xpose.msra.mxu0 0
        %1008 = vmatprep.subr.bf16.mxu0 0
        %1009 = vmatpush1.bf16.xpose.msra.mxu0 %v992
        %1010 = vmatprep.subr.bf16.mxu0 0
        %1011 = vmatpush2.bf16.xpose.msra.mxu0 0
        %1012 = vmatprep.subr.bf16.mxu0 0
        %1013 = vmatpush2.bf16.xpose.msra.mxu0 0
        %1014 = vmatprep.subr.bf16.mxu0 0
        %1015 = vmatpush2.bf16.xpose.msra.mxu0 0
        %1016 = vmatprep.subr.bf16.mxu0 0
        %1017 = vmatpush2.bf16.xpose.msra.mxu0 0
        %1018 = vmatprep.subr.bf16.mxu0 0
        %1019 = vmatpush2.bf16.xpose.msra.mxu0 0
        %1020 = vmatprep.subr.bf16.mxu0 0
        %1021 = vmatpush2.bf16.xpose.msra.mxu0 0
        %1022 = vmatprep.subr.bf16.mxu0 0
        %1023 = vmatpush2.bf16.xpose.msra.mxu0 0
        %1024 = vmatprep.subr.bf16.mxu0 0
        %1025 = vmatpush2.bf16.xpose.msra.mxu0 0
        %1026 = vmatprep.mubr.bf16.mxu0 0
        %1027 = vmatmul.mubr.bf16.gmra.mxu0 %v989
        %v1028 = vpop.f32.mrf.mxu0
        %v1029 = vadd.f32 %v736, %v1028
        %v1030 = vpop.f32.mrf.mxu0
        %v1031 = vpop.f32.mrf.mxu0
        %v1032 = vadd.f32 %v737, %v1031
        %v1033 = vpop.f32.mrf.mxu0
        %1034 = vdwg.mxu0
        %v1035 = vsel %vm790, %v1029, -inf
        %1036 = vmax.xlane.f32.xlu0 %v1035
        %v1037 = vpop.xlane.xlu0 %1036
        %v1038 = vsel %vm790, %v1032, -inf
        %1039 = vmax.xlane.f32.xlu0 %v1038
        %v1040 = vpop.xlane.xlu0 %1039
        %v1041 = vsub.f32 %v1029, %v1037
        %v1042 = vsub.f32 %v1032, %v1040
        %v1043 = vmul.f32 %v1041, 1.442695
        %v1044 = vpow.pop %v1043
        %v1045 = vmul.f32 %v1042, 1.442695
        %v1046 = vpow.pop %v1045
        %v1047 = vsel %vm790, %v1044, 0.0
        %1048 = vadd.xlane.f32.xlu0 %v1047
        %v1049 = vpop.xlane.xlu0 %1048
        %v1050 = vsel %vm790, %v1046, 0.0
        %1051 = vadd.xlane.f32.xlu0 %v1050
        %v1052 = vpop.xlane.xlu0 %1051
        %v1053 = vrcp.pop %v1049
        %v1054 = vrcp.pop %v1052
        %v1055 = vpack.c.bf16 %v1046, %v1044
        %1056 = vrot.lane.b32.xlu0 %v723, 48
        %v1057 = vpop.permute.xlu0 %1056
        %v1060 = vsel %vm790, %v1055, 0
        %1062 = vmatprep.subr.bf16.mxu0 0
        %1063 = vmatpush1.bf16.msra.mxu0 0
        %1064 = vmatprep.subr.bf16.mxu0 0
        %1065 = vmatpush1.bf16.msra.mxu0 0
        %1066 = vmatprep.subr.bf16.mxu0 0
        %1067 = vmatpush1.bf16.msra.mxu0 0
        %1068 = vmatprep.subr.bf16.mxu0 0
        %1069 = vmatpush1.bf16.msra.mxu0 0
        %1070 = vmatprep.subr.bf16.mxu0 0
        %1071 = vmatpush1.bf16.msra.mxu0 0
        %1072 = vmatprep.subr.bf16.mxu0 0
        %1073 = vmatpush1.bf16.msra.mxu0 0
        %1074 = vmatprep.subr.bf16.mxu0 0
        %1075 = vmatpush1.bf16.msra.mxu0 0
        %1076 = vmatprep.subr.bf16.mxu0 0
        %1077 = vmatpush1.bf16.msra.mxu0 %v1057
        %1078 = vmatprep.subr.bf16.mxu0 0
        %1079 = vmatpush2.bf16.msra.mxu0 0
        %1080 = vmatprep.subr.bf16.mxu0 0
        %1081 = vmatpush2.bf16.msra.mxu0 0
        %1082 = vmatprep.subr.bf16.mxu0 0
        %1083 = vmatpush2.bf16.msra.mxu0 0
        %1084 = vmatprep.subr.bf16.mxu0 0
        %1085 = vmatpush2.bf16.msra.mxu0 0
        %1086 = vmatprep.subr.bf16.mxu0 0
        %1087 = vmatpush2.bf16.msra.mxu0 0
        %1088 = vmatprep.subr.bf16.mxu0 0
        %1089 = vmatpush2.bf16.msra.mxu0 0
        %1090 = vmatprep.subr.bf16.mxu0 0
        %1091 = vmatpush2.bf16.msra.mxu0 0
        %1092 = vmatprep.subr.bf16.mxu0 0
        %1093 = vmatpush2.bf16.msra.mxu0 0
        %1094 = vmatprep.mubr.bf16.mxu0 0
        %1095 = vmatmul.mubr.bf16.gmra.mxu0 %v1060
        %v1096 = vpop.f32.mrf.mxu0
        %v1097 = vadd.f32 0.0, %v1096
        %v1098 = vpop.f32.mrf.mxu0
        %v1099 = vpop.f32.mrf.mxu0
        %v1100 = vadd.f32 0.0, %v1099
        %v1101 = vpop.f32.mrf.mxu0
        %1102 = vdwg.mxu0
        %v1103 = vmul.f32 %v1097, %v1053
        %v1104 = vmul.f32 %v1100, %v1054
        %1105 = vrot.lane.b32.xlu0 %v722, 104
        %v1106 = vpop.permute.xlu0 %1105
        %1107 = vrot.lane.b32.xlu0 %v723, 104
        %v1108 = vpop.permute.xlu0 %1107
        %v1110 = vsel %vm742, %v1106, 0
        %v1113 = vsel %vm742, %v1108, 0
        %1115 = vmatprep.subr.bf16.mxu0 0
        %1116 = vmatpush1.bf16.xpose.msra.mxu0 0
        %1117 = vmatprep.subr.bf16.mxu0 0
        %1118 = vmatpush1.bf16.xpose.msra.mxu0 0
        %1119 = vmatprep.subr.bf16.mxu0 0
        %1120 = vmatpush1.bf16.xpose.msra.mxu0 0
        %1121 = vmatprep.subr.bf16.mxu0 0
        %1122 = vmatpush1.bf16.xpose.msra.mxu0 0
        %1123 = vmatprep.subr.bf16.mxu0 0
        %1124 = vmatpush1.bf16.xpose.msra.mxu0 0
        %1125 = vmatprep.subr.bf16.mxu0 0
        %1126 = vmatpush1.bf16.xpose.msra.mxu0 0
        %1127 = vmatprep.subr.bf16.mxu0 0
        %1128 = vmatpush1.bf16.xpose.msra.mxu0 0
        %1129 = vmatprep.subr.bf16.mxu0 0
        %1130 = vmatpush1.bf16.xpose.msra.mxu0 %v1113
        %1131 = vmatprep.subr.bf16.mxu0 0
        %1132 = vmatpush2.bf16.xpose.msra.mxu0 0
        %1133 = vmatprep.subr.bf16.mxu0 0
        %1134 = vmatpush2.bf16.xpose.msra.mxu0 0
        %1135 = vmatprep.subr.bf16.mxu0 0
        %1136 = vmatpush2.bf16.xpose.msra.mxu0 0
        %1137 = vmatprep.subr.bf16.mxu0 0
        %1138 = vmatpush2.bf16.xpose.msra.mxu0 0
        %1139 = vmatprep.subr.bf16.mxu0 0
        %1140 = vmatpush2.bf16.xpose.msra.mxu0 0
        %1141 = vmatprep.subr.bf16.mxu0 0
        %1142 = vmatpush2.bf16.xpose.msra.mxu0 0
        %1143 = vmatprep.subr.bf16.mxu0 0
        %1144 = vmatpush2.bf16.xpose.msra.mxu0 0
        %1145 = vmatprep.subr.bf16.mxu0 0
        %1146 = vmatpush2.bf16.xpose.msra.mxu0 0
        %1147 = vmatprep.mubr.bf16.mxu0 0
        %1148 = vmatmul.mubr.bf16.gmra.mxu0 %v1110
        %v1149 = vpop.f32.mrf.mxu0
        %v1150 = vadd.f32 %v736, %v1149
        %v1151 = vpop.f32.mrf.mxu0
        %v1152 = vpop.f32.mrf.mxu0
        %v1153 = vadd.f32 %v737, %v1152
        %v1154 = vpop.f32.mrf.mxu0
        %1155 = vdwg.mxu0
        %v1156 = vsel %vm790, %v1150, -inf
        %1157 = vmax.xlane.f32.xlu0 %v1156
        %v1158 = vpop.xlane.xlu0 %1157
        %v1159 = vsel %vm790, %v1153, -inf
        %1160 = vmax.xlane.f32.xlu0 %v1159
        %v1161 = vpop.xlane.xlu0 %1160
        %v1162 = vsub.f32 %v1150, %v1158
        %v1163 = vsub.f32 %v1153, %v1161
        %v1164 = vmul.f32 %v1162, 1.442695
        %v1165 = vpow.pop %v1164
        %v1166 = vmul.f32 %v1163, 1.442695
        %v1167 = vpow.pop %v1166
        %v1168 = vsel %vm790, %v1165, 0.0
        %1169 = vadd.xlane.f32.xlu0 %v1168
        %v1170 = vpop.xlane.xlu0 %1169
        %v1171 = vsel %vm790, %v1167, 0.0
        %1172 = vadd.xlane.f32.xlu0 %v1171
        %v1173 = vpop.xlane.xlu0 %1172
        %v1174 = vrcp.pop %v1170
        %v1175 = vrcp.pop %v1173
        %v1176 = vpack.c.bf16 %v1167, %v1165
        %1177 = vrot.lane.b32.xlu0 %v723, 40
        %v1178 = vpop.permute.xlu0 %1177
        %v1181 = vsel %vm790, %v1176, 0
        %1183 = vmatprep.subr.bf16.mxu0 0
        %1184 = vmatpush1.bf16.msra.mxu0 0
        %1185 = vmatprep.subr.bf16.mxu0 0
        %1186 = vmatpush1.bf16.msra.mxu0 0
        %1187 = vmatprep.subr.bf16.mxu0 0
        %1188 = vmatpush1.bf16.msra.mxu0 0
        %1189 = vmatprep.subr.bf16.mxu0 0
        %1190 = vmatpush1.bf16.msra.mxu0 0
        %1191 = vmatprep.subr.bf16.mxu0 0
        %1192 = vmatpush1.bf16.msra.mxu0 0
        %1193 = vmatprep.subr.bf16.mxu0 0
        %1194 = vmatpush1.bf16.msra.mxu0 0
        %1195 = vmatprep.subr.bf16.mxu0 0
        %1196 = vmatpush1.bf16.msra.mxu0 0
        %1197 = vmatprep.subr.bf16.mxu0 0
        %1198 = vmatpush1.bf16.msra.mxu0 %v1178
        %1199 = vmatprep.subr.bf16.mxu0 0
        %1200 = vmatpush2.bf16.msra.mxu0 0
        %1201 = vmatprep.subr.bf16.mxu0 0
        %1202 = vmatpush2.bf16.msra.mxu0 0
        %1203 = vmatprep.subr.bf16.mxu0 0
        %1204 = vmatpush2.bf16.msra.mxu0 0
        %1205 = vmatprep.subr.bf16.mxu0 0
        %1206 = vmatpush2.bf16.msra.mxu0 0
        %1207 = vmatprep.subr.bf16.mxu0 0
        %1208 = vmatpush2.bf16.msra.mxu0 0
        %1209 = vmatprep.subr.bf16.mxu0 0
        %1210 = vmatpush2.bf16.msra.mxu0 0
        %1211 = vmatprep.subr.bf16.mxu0 0
        %1212 = vmatpush2.bf16.msra.mxu0 0
        %1213 = vmatprep.subr.bf16.mxu0 0
        %1214 = vmatpush2.bf16.msra.mxu0 0
        %1215 = vmatprep.mubr.bf16.mxu0 0
        %1216 = vmatmul.mubr.bf16.gmra.mxu0 %v1181
        %v1217 = vpop.f32.mrf.mxu0
        %v1218 = vadd.f32 0.0, %v1217
        %v1219 = vpop.f32.mrf.mxu0
        %v1220 = vpop.f32.mrf.mxu0
        %v1221 = vadd.f32 0.0, %v1220
        %v1222 = vpop.f32.mrf.mxu0
        %1223 = vdwg.mxu0
        %v1224 = vmul.f32 %v1218, %v1174
        %v1225 = vmul.f32 %v1221, %v1175
        %1226 = vrot.lane.b32.xlu0 %v722, 96
        %v1227 = vpop.permute.xlu0 %1226
        %1228 = vrot.lane.b32.xlu0 %v723, 96
        %v1229 = vpop.permute.xlu0 %1228
        %v1231 = vsel %vm742, %v1227, 0
        %v1234 = vsel %vm742, %v1229, 0
        %1236 = vmatprep.subr.bf16.mxu0 0
        %1237 = vmatpush1.bf16.xpose.msra.mxu0 0
        %1238 = vmatprep.subr.bf16.mxu0 0
        %1239 = vmatpush1.bf16.xpose.msra.mxu0 0
        %1240 = vmatprep.subr.bf16.mxu0 0
        %1241 = vmatpush1.bf16.xpose.msra.mxu0 0
        %1242 = vmatprep.subr.bf16.mxu0 0
        %1243 = vmatpush1.bf16.xpose.msra.mxu0 0
        %1244 = vmatprep.subr.bf16.mxu0 0
        %1245 = vmatpush1.bf16.xpose.msra.mxu0 0
        %1246 = vmatprep.subr.bf16.mxu0 0
        %1247 = vmatpush1.bf16.xpose.msra.mxu0 0
        %1248 = vmatprep.subr.bf16.mxu0 0
        %1249 = vmatpush1.bf16.xpose.msra.mxu0 0
        %1250 = vmatprep.subr.bf16.mxu0 0
        %1251 = vmatpush1.bf16.xpose.msra.mxu0 %v1234
        %1252 = vmatprep.subr.bf16.mxu0 0
        %1253 = vmatpush2.bf16.xpose.msra.mxu0 0
        %1254 = vmatprep.subr.bf16.mxu0 0
        %1255 = vmatpush2.bf16.xpose.msra.mxu0 0
        %1256 = vmatprep.subr.bf16.mxu0 0
        %1257 = vmatpush2.bf16.xpose.msra.mxu0 0
        %1258 = vmatprep.subr.bf16.mxu0 0
        %1259 = vmatpush2.bf16.xpose.msra.mxu0 0
        %1260 = vmatprep.subr.bf16.mxu0 0
        %1261 = vmatpush2.bf16.xpose.msra.mxu0 0
        %1262 = vmatprep.subr.bf16.mxu0 0
        %1263 = vmatpush2.bf16.xpose.msra.mxu0 0
        %1264 = vmatprep.subr.bf16.mxu0 0
        %1265 = vmatpush2.bf16.xpose.msra.mxu0 0
        %1266 = vmatprep.subr.bf16.mxu0 0
        %1267 = vmatpush2.bf16.xpose.msra.mxu0 0
        %1268 = vmatprep.mubr.bf16.mxu0 0
        %1269 = vmatmul.mubr.bf16.gmra.mxu0 %v1231
        %v1270 = vpop.f32.mrf.mxu0
        %v1271 = vadd.f32 %v736, %v1270
        %v1272 = vpop.f32.mrf.mxu0
        %v1273 = vpop.f32.mrf.mxu0
        %v1274 = vadd.f32 %v737, %v1273
        %v1275 = vpop.f32.mrf.mxu0
        %1276 = vdwg.mxu0
        %v1277 = vsel %vm790, %v1271, -inf
        %1278 = vmax.xlane.f32.xlu0 %v1277
        %v1279 = vpop.xlane.xlu0 %1278
        %v1280 = vsel %vm790, %v1274, -inf
        %1281 = vmax.xlane.f32.xlu0 %v1280
        %v1282 = vpop.xlane.xlu0 %1281
        %v1283 = vsub.f32 %v1271, %v1279
        %v1284 = vsub.f32 %v1274, %v1282
        %v1285 = vmul.f32 %v1283, 1.442695
        %v1286 = vpow.pop %v1285
        %v1287 = vmul.f32 %v1284, 1.442695
        %v1288 = vpow.pop %v1287
        %v1289 = vsel %vm790, %v1286, 0.0
        %1290 = vadd.xlane.f32.xlu0 %v1289
        %v1291 = vpop.xlane.xlu0 %1290
        %v1292 = vsel %vm790, %v1288, 0.0
        %1293 = vadd.xlane.f32.xlu0 %v1292
        %v1294 = vpop.xlane.xlu0 %1293
        %v1295 = vrcp.pop %v1291
        %v1296 = vrcp.pop %v1294
        %v1297 = vpack.c.bf16 %v1288, %v1286
        %1298 = vrot.lane.b32.xlu0 %v723, 32
        %v1299 = vpop.permute.xlu0 %1298
        %v1302 = vsel %vm790, %v1297, 0
        %1304 = vmatprep.subr.bf16.mxu0 0
        %1305 = vmatpush1.bf16.msra.mxu0 0
        %1306 = vmatprep.subr.bf16.mxu0 0
        %1307 = vmatpush1.bf16.msra.mxu0 0
        %1308 = vmatprep.subr.bf16.mxu0 0
        %1309 = vmatpush1.bf16.msra.mxu0 0
        %1310 = vmatprep.subr.bf16.mxu0 0
        %1311 = vmatpush1.bf16.msra.mxu0 0
        %1312 = vmatprep.subr.bf16.mxu0 0
        %1313 = vmatpush1.bf16.msra.mxu0 0
        %1314 = vmatprep.subr.bf16.mxu0 0
        %1315 = vmatpush1.bf16.msra.mxu0 0
        %1316 = vmatprep.subr.bf16.mxu0 0
        %1317 = vmatpush1.bf16.msra.mxu0 0
        %1318 = vmatprep.subr.bf16.mxu0 0
        %1319 = vmatpush1.bf16.msra.mxu0 %v1299
        %1320 = vmatprep.subr.bf16.mxu0 0
        %1321 = vmatpush2.bf16.msra.mxu0 0
        %1322 = vmatprep.subr.bf16.mxu0 0
        %1323 = vmatpush2.bf16.msra.mxu0 0
        %1324 = vmatprep.subr.bf16.mxu0 0
        %1325 = vmatpush2.bf16.msra.mxu0 0
        %1326 = vmatprep.subr.bf16.mxu0 0
        %1327 = vmatpush2.bf16.msra.mxu0 0
        %1328 = vmatprep.subr.bf16.mxu0 0
        %1329 = vmatpush2.bf16.msra.mxu0 0
        %1330 = vmatprep.subr.bf16.mxu0 0
        %1331 = vmatpush2.bf16.msra.mxu0 0
        %1332 = vmatprep.subr.bf16.mxu0 0
        %1333 = vmatpush2.bf16.msra.mxu0 0
        %1334 = vmatprep.subr.bf16.mxu0 0
        %1335 = vmatpush2.bf16.msra.mxu0 0
        %1336 = vmatprep.mubr.bf16.mxu0 0
        %1337 = vmatmul.mubr.bf16.gmra.mxu0 %v1302
        %v1338 = vpop.f32.mrf.mxu0
        %v1339 = vadd.f32 0.0, %v1338
        %v1340 = vpop.f32.mrf.mxu0
        %v1341 = vpop.f32.mrf.mxu0
        %v1342 = vadd.f32 0.0, %v1341
        %v1343 = vpop.f32.mrf.mxu0
        %1344 = vdwg.mxu0
        %v1345 = vmul.f32 %v1339, %v1295
        %v1346 = vmul.f32 %v1342, %v1296
        %1347 = vrot.lane.b32.xlu0 %v722, 88
        %v1348 = vpop.permute.xlu0 %1347
        %1349 = vrot.lane.b32.xlu0 %v723, 88
        %v1350 = vpop.permute.xlu0 %1349
        %v1352 = vsel %vm742, %v1348, 0
        %v1355 = vsel %vm742, %v1350, 0
        %1357 = vmatprep.subr.bf16.mxu0 0
        %1358 = vmatpush1.bf16.xpose.msra.mxu0 0
        %1359 = vmatprep.subr.bf16.mxu0 0
        %1360 = vmatpush1.bf16.xpose.msra.mxu0 0
        %1361 = vmatprep.subr.bf16.mxu0 0
        %1362 = vmatpush1.bf16.xpose.msra.mxu0 0
        %1363 = vmatprep.subr.bf16.mxu0 0
        %1364 = vmatpush1.bf16.xpose.msra.mxu0 0
        %1365 = vmatprep.subr.bf16.mxu0 0
        %1366 = vmatpush1.bf16.xpose.msra.mxu0 0
        %1367 = vmatprep.subr.bf16.mxu0 0
        %1368 = vmatpush1.bf16.xpose.msra.mxu0 0
        %1369 = vmatprep.subr.bf16.mxu0 0
        %1370 = vmatpush1.bf16.xpose.msra.mxu0 0
        %1371 = vmatprep.subr.bf16.mxu0 0
        %1372 = vmatpush1.bf16.xpose.msra.mxu0 %v1355
        %1373 = vmatprep.subr.bf16.mxu0 0
        %1374 = vmatpush2.bf16.xpose.msra.mxu0 0
        %1375 = vmatprep.subr.bf16.mxu0 0
        %1376 = vmatpush2.bf16.xpose.msra.mxu0 0
        %1377 = vmatprep.subr.bf16.mxu0 0
        %1378 = vmatpush2.bf16.xpose.msra.mxu0 0
        %1379 = vmatprep.subr.bf16.mxu0 0
        %1380 = vmatpush2.bf16.xpose.msra.mxu0 0
        %1381 = vmatprep.subr.bf16.mxu0 0
        %1382 = vmatpush2.bf16.xpose.msra.mxu0 0
        %1383 = vmatprep.subr.bf16.mxu0 0
        %1384 = vmatpush2.bf16.xpose.msra.mxu0 0
        %1385 = vmatprep.subr.bf16.mxu0 0
        %1386 = vmatpush2.bf16.xpose.msra.mxu0 0
        %1387 = vmatprep.subr.bf16.mxu0 0
        %1388 = vmatpush2.bf16.xpose.msra.mxu0 0
        %1389 = vmatprep.mubr.bf16.mxu0 0
        %1390 = vmatmul.mubr.bf16.gmra.mxu0 %v1352
        %v1391 = vpop.f32.mrf.mxu0
        %v1392 = vadd.f32 %v736, %v1391
        %v1393 = vpop.f32.mrf.mxu0
        %v1394 = vpop.f32.mrf.mxu0
        %v1395 = vadd.f32 %v737, %v1394
        %v1396 = vpop.f32.mrf.mxu0
        %1397 = vdwg.mxu0
        %v1398 = vsel %vm790, %v1392, -inf
        %1399 = vmax.xlane.f32.xlu0 %v1398
        %v1400 = vpop.xlane.xlu0 %1399
        %v1401 = vsel %vm790, %v1395, -inf
        %1402 = vmax.xlane.f32.xlu0 %v1401
        %v1403 = vpop.xlane.xlu0 %1402
        %v1404 = vsub.f32 %v1392, %v1400
        %v1405 = vsub.f32 %v1395, %v1403
        %v1406 = vmul.f32 %v1404, 1.442695
        %v1407 = vpow.pop %v1406
        %v1408 = vmul.f32 %v1405, 1.442695
        %v1409 = vpow.pop %v1408
        %v1410 = vsel %vm790, %v1407, 0.0
        %1411 = vadd.xlane.f32.xlu0 %v1410
        %v1412 = vpop.xlane.xlu0 %1411
        %v1413 = vsel %vm790, %v1409, 0.0
        %1414 = vadd.xlane.f32.xlu0 %v1413
        %v1415 = vpop.xlane.xlu0 %1414
        %v1416 = vrcp.pop %v1412
        %v1417 = vrcp.pop %v1415
        %v1418 = vpack.c.bf16 %v1409, %v1407
        %1419 = vrot.lane.b32.xlu0 %v723, 24
        %v1420 = vpop.permute.xlu0 %1419
        %v1423 = vsel %vm790, %v1418, 0
        %1425 = vmatprep.subr.bf16.mxu0 0
        %1426 = vmatpush1.bf16.msra.mxu0 0
        %1427 = vmatprep.subr.bf16.mxu0 0
        %1428 = vmatpush1.bf16.msra.mxu0 0
        %1429 = vmatprep.subr.bf16.mxu0 0
        %1430 = vmatpush1.bf16.msra.mxu0 0
        %1431 = vmatprep.subr.bf16.mxu0 0
        %1432 = vmatpush1.bf16.msra.mxu0 0
        %1433 = vmatprep.subr.bf16.mxu0 0
        %1434 = vmatpush1.bf16.msra.mxu0 0
        %1435 = vmatprep.subr.bf16.mxu0 0
        %1436 = vmatpush1.bf16.msra.mxu0 0
        %1437 = vmatprep.subr.bf16.mxu0 0
        %1438 = vmatpush1.bf16.msra.mxu0 0
        %1439 = vmatprep.subr.bf16.mxu0 0
        %1440 = vmatpush1.bf16.msra.mxu0 %v1420
        %1441 = vmatprep.subr.bf16.mxu0 0
        %1442 = vmatpush2.bf16.msra.mxu0 0
        %1443 = vmatprep.subr.bf16.mxu0 0
        %1444 = vmatpush2.bf16.msra.mxu0 0
        %1445 = vmatprep.subr.bf16.mxu0 0
        %1446 = vmatpush2.bf16.msra.mxu0 0
        %1447 = vmatprep.subr.bf16.mxu0 0
        %1448 = vmatpush2.bf16.msra.mxu0 0
        %1449 = vmatprep.subr.bf16.mxu0 0
        %1450 = vmatpush2.bf16.msra.mxu0 0
        %1451 = vmatprep.subr.bf16.mxu0 0
        %1452 = vmatpush2.bf16.msra.mxu0 0
        %1453 = vmatprep.subr.bf16.mxu0 0
        %1454 = vmatpush2.bf16.msra.mxu0 0
        %1455 = vmatprep.subr.bf16.mxu0 0
        %1456 = vmatpush2.bf16.msra.mxu0 0
        %1457 = vmatprep.mubr.bf16.mxu0 0
        %1458 = vmatmul.mubr.bf16.gmra.mxu0 %v1423
        %v1459 = vpop.f32.mrf.mxu0
        %v1460 = vadd.f32 0.0, %v1459
        %v1461 = vpop.f32.mrf.mxu0
        %v1462 = vpop.f32.mrf.mxu0
        %v1463 = vadd.f32 0.0, %v1462
        %v1464 = vpop.f32.mrf.mxu0
        %1465 = vdwg.mxu0
        %v1466 = vmul.f32 %v1460, %v1416
        %v1467 = vmul.f32 %v1463, %v1417
        %1468 = vrot.lane.b32.xlu0 %v722, 80
        %v1469 = vpop.permute.xlu0 %1468
        %1470 = vrot.lane.b32.xlu0 %v723, 80
        %v1471 = vpop.permute.xlu0 %1470
        %v1473 = vsel %vm742, %v1469, 0
        %v1476 = vsel %vm742, %v1471, 0
        %1478 = vmatprep.subr.bf16.mxu0 0
        %1479 = vmatpush1.bf16.xpose.msra.mxu0 0
        %1480 = vmatprep.subr.bf16.mxu0 0
        %1481 = vmatpush1.bf16.xpose.msra.mxu0 0
        %1482 = vmatprep.subr.bf16.mxu0 0
        %1483 = vmatpush1.bf16.xpose.msra.mxu0 0
        %1484 = vmatprep.subr.bf16.mxu0 0
        %1485 = vmatpush1.bf16.xpose.msra.mxu0 0
        %1486 = vmatprep.subr.bf16.mxu0 0
        %1487 = vmatpush1.bf16.xpose.msra.mxu0 0
        %1488 = vmatprep.subr.bf16.mxu0 0
        %1489 = vmatpush1.bf16.xpose.msra.mxu0 0
        %1490 = vmatprep.subr.bf16.mxu0 0
        %1491 = vmatpush1.bf16.xpose.msra.mxu0 0
        %1492 = vmatprep.subr.bf16.mxu0 0
        %1493 = vmatpush1.bf16.xpose.msra.mxu0 %v1476
        %1494 = vmatprep.subr.bf16.mxu0 0
        %1495 = vmatpush2.bf16.xpose.msra.mxu0 0
        %1496 = vmatprep.subr.bf16.mxu0 0
        %1497 = vmatpush2.bf16.xpose.msra.mxu0 0
        %1498 = vmatprep.subr.bf16.mxu0 0
        %1499 = vmatpush2.bf16.xpose.msra.mxu0 0
        %1500 = vmatprep.subr.bf16.mxu0 0
        %1501 = vmatpush2.bf16.xpose.msra.mxu0 0
        %1502 = vmatprep.subr.bf16.mxu0 0
        %1503 = vmatpush2.bf16.xpose.msra.mxu0 0
        %1504 = vmatprep.subr.bf16.mxu0 0
        %1505 = vmatpush2.bf16.xpose.msra.mxu0 0
        %1506 = vmatprep.subr.bf16.mxu0 0
        %1507 = vmatpush2.bf16.xpose.msra.mxu0 0
        %1508 = vmatprep.subr.bf16.mxu0 0
        %1509 = vmatpush2.bf16.xpose.msra.mxu0 0
        %1510 = vmatprep.mubr.bf16.mxu0 0
        %1511 = vmatmul.mubr.bf16.gmra.mxu0 %v1473
        %v1512 = vpop.f32.mrf.mxu0
        %v1513 = vadd.f32 %v736, %v1512
        %v1514 = vpop.f32.mrf.mxu0
        %v1515 = vpop.f32.mrf.mxu0
        %v1516 = vadd.f32 %v737, %v1515
        %v1517 = vpop.f32.mrf.mxu0
        %1518 = vdwg.mxu0
        %v1519 = vsel %vm790, %v1513, -inf
        %1520 = vmax.xlane.f32.xlu0 %v1519
        %v1521 = vpop.xlane.xlu0 %1520
        %v1522 = vsel %vm790, %v1516, -inf
        %1523 = vmax.xlane.f32.xlu0 %v1522
        %v1524 = vpop.xlane.xlu0 %1523
        %v1525 = vsub.f32 %v1513, %v1521
        %v1526 = vsub.f32 %v1516, %v1524
        %v1527 = vmul.f32 %v1525, 1.442695
        %v1528 = vpow.pop %v1527
        %v1529 = vmul.f32 %v1526, 1.442695
        %v1530 = vpow.pop %v1529
        %v1531 = vsel %vm790, %v1528, 0.0
        %1532 = vadd.xlane.f32.xlu0 %v1531
        %v1533 = vpop.xlane.xlu0 %1532
        %v1534 = vsel %vm790, %v1530, 0.0
        %1535 = vadd.xlane.f32.xlu0 %v1534
        %v1536 = vpop.xlane.xlu0 %1535
        %v1537 = vrcp.pop %v1533
        %v1538 = vrcp.pop %v1536
        %v1539 = vpack.c.bf16 %v1530, %v1528
        %1540 = vrot.lane.b32.xlu0 %v723, 16
        %v1541 = vpop.permute.xlu0 %1540
        %v1544 = vsel %vm790, %v1539, 0
        %1546 = vmatprep.subr.bf16.mxu0 0
        %1547 = vmatpush1.bf16.msra.mxu0 0
        %1548 = vmatprep.subr.bf16.mxu0 0
        %1549 = vmatpush1.bf16.msra.mxu0 0
        %1550 = vmatprep.subr.bf16.mxu0 0
        %1551 = vmatpush1.bf16.msra.mxu0 0
        %1552 = vmatprep.subr.bf16.mxu0 0
        %1553 = vmatpush1.bf16.msra.mxu0 0
        %1554 = vmatprep.subr.bf16.mxu0 0
        %1555 = vmatpush1.bf16.msra.mxu0 0
        %1556 = vmatprep.subr.bf16.mxu0 0
        %1557 = vmatpush1.bf16.msra.mxu0 0
        %1558 = vmatprep.subr.bf16.mxu0 0
        %1559 = vmatpush1.bf16.msra.mxu0 0
        %1560 = vmatprep.subr.bf16.mxu0 0
        %1561 = vmatpush1.bf16.msra.mxu0 %v1541
        %1562 = vmatprep.subr.bf16.mxu0 0
        %1563 = vmatpush2.bf16.msra.mxu0 0
        %1564 = vmatprep.subr.bf16.mxu0 0
        %1565 = vmatpush2.bf16.msra.mxu0 0
        %1566 = vmatprep.subr.bf16.mxu0 0
        %1567 = vmatpush2.bf16.msra.mxu0 0
        %1568 = vmatprep.subr.bf16.mxu0 0
        %1569 = vmatpush2.bf16.msra.mxu0 0
        %1570 = vmatprep.subr.bf16.mxu0 0
        %1571 = vmatpush2.bf16.msra.mxu0 0
        %1572 = vmatprep.subr.bf16.mxu0 0
        %1573 = vmatpush2.bf16.msra.mxu0 0
        %1574 = vmatprep.subr.bf16.mxu0 0
        %1575 = vmatpush2.bf16.msra.mxu0 0
        %1576 = vmatprep.subr.bf16.mxu0 0
        %1577 = vmatpush2.bf16.msra.mxu0 0
        %1578 = vmatprep.mubr.bf16.mxu0 0
        %1579 = vmatmul.mubr.bf16.gmra.mxu0 %v1544
        %v1580 = vpop.f32.mrf.mxu0
        %v1581 = vadd.f32 0.0, %v1580
        %v1582 = vpop.f32.mrf.mxu0
        %v1583 = vpop.f32.mrf.mxu0
        %v1584 = vadd.f32 0.0, %v1583
        %v1585 = vpop.f32.mrf.mxu0
        %1586 = vdwg.mxu0
        %v1587 = vmul.f32 %v1581, %v1537
        %v1588 = vmul.f32 %v1584, %v1538
        %1589 = vrot.lane.b32.xlu0 %v722, 72
        %v1590 = vpop.permute.xlu0 %1589
        %1591 = vrot.lane.b32.xlu0 %v723, 72
        %v1592 = vpop.permute.xlu0 %1591
        %v1594 = vsel %vm742, %v1590, 0
        %v1597 = vsel %vm742, %v1592, 0
        %1599 = vmatprep.subr.bf16.mxu0 0
        %1600 = vmatpush1.bf16.xpose.msra.mxu0 0
        %1601 = vmatprep.subr.bf16.mxu0 0
        %1602 = vmatpush1.bf16.xpose.msra.mxu0 0
        %1603 = vmatprep.subr.bf16.mxu0 0
        %1604 = vmatpush1.bf16.xpose.msra.mxu0 0
        %1605 = vmatprep.subr.bf16.mxu0 0
        %1606 = vmatpush1.bf16.xpose.msra.mxu0 0
        %1607 = vmatprep.subr.bf16.mxu0 0
        %1608 = vmatpush1.bf16.xpose.msra.mxu0 0
        %1609 = vmatprep.subr.bf16.mxu0 0
        %1610 = vmatpush1.bf16.xpose.msra.mxu0 0
        %1611 = vmatprep.subr.bf16.mxu0 0
        %1612 = vmatpush1.bf16.xpose.msra.mxu0 0
        %1613 = vmatprep.subr.bf16.mxu0 0
        %1614 = vmatpush1.bf16.xpose.msra.mxu0 %v1597
        %1615 = vmatprep.subr.bf16.mxu0 0
        %1616 = vmatpush2.bf16.xpose.msra.mxu0 0
        %1617 = vmatprep.subr.bf16.mxu0 0
        %1618 = vmatpush2.bf16.xpose.msra.mxu0 0
        %1619 = vmatprep.subr.bf16.mxu0 0
        %1620 = vmatpush2.bf16.xpose.msra.mxu0 0
        %1621 = vmatprep.subr.bf16.mxu0 0
        %1622 = vmatpush2.bf16.xpose.msra.mxu0 0
        %1623 = vmatprep.subr.bf16.mxu0 0
        %1624 = vmatpush2.bf16.xpose.msra.mxu0 0
        %1625 = vmatprep.subr.bf16.mxu0 0
        %1626 = vmatpush2.bf16.xpose.msra.mxu0 0
        %1627 = vmatprep.subr.bf16.mxu0 0
        %1628 = vmatpush2.bf16.xpose.msra.mxu0 0
        %1629 = vmatprep.subr.bf16.mxu0 0
        %1630 = vmatpush2.bf16.xpose.msra.mxu0 0
        %1631 = vmatprep.mubr.bf16.mxu0 0
        %1632 = vmatmul.mubr.bf16.gmra.mxu0 %v1594
        %v1633 = vpop.f32.mrf.mxu0
        %v1634 = vadd.f32 %v736, %v1633
        %v1635 = vpop.f32.mrf.mxu0
        %v1636 = vpop.f32.mrf.mxu0
        %v1637 = vadd.f32 %v737, %v1636
        %v1638 = vpop.f32.mrf.mxu0
        %1639 = vdwg.mxu0
        %v1640 = vsel %vm790, %v1634, -inf
        %1641 = vmax.xlane.f32.xlu0 %v1640
        %v1642 = vpop.xlane.xlu0 %1641
        %v1643 = vsel %vm790, %v1637, -inf
        %1644 = vmax.xlane.f32.xlu0 %v1643
        %v1645 = vpop.xlane.xlu0 %1644
        %v1646 = vsub.f32 %v1634, %v1642
        %v1647 = vsub.f32 %v1637, %v1645
        %v1648 = vmul.f32 %v1646, 1.442695
        %v1649 = vpow.pop %v1648
        %v1650 = vmul.f32 %v1647, 1.442695
        %v1651 = vpow.pop %v1650
        %v1652 = vsel %vm790, %v1649, 0.0
        %1653 = vadd.xlane.f32.xlu0 %v1652
        %v1654 = vpop.xlane.xlu0 %1653
        %v1655 = vsel %vm790, %v1651, 0.0
        %1656 = vadd.xlane.f32.xlu0 %v1655
        %v1657 = vpop.xlane.xlu0 %1656
        %v1658 = vrcp.pop %v1654
        %v1659 = vrcp.pop %v1657
        %v1660 = vpack.c.bf16 %v1651, %v1649
        %1661 = vrot.lane.b32.xlu0 %v723, 8
        %v1662 = vpop.permute.xlu0 %1661
        %v1665 = vsel %vm790, %v1660, 0
        %1667 = vmatprep.subr.bf16.mxu0 0
        %1668 = vmatpush1.bf16.msra.mxu0 0
        %1669 = vmatprep.subr.bf16.mxu0 0
        %1670 = vmatpush1.bf16.msra.mxu0 0
        %1671 = vmatprep.subr.bf16.mxu0 0
        %1672 = vmatpush1.bf16.msra.mxu0 0
        %1673 = vmatprep.subr.bf16.mxu0 0
        %1674 = vmatpush1.bf16.msra.mxu0 0
        %1675 = vmatprep.subr.bf16.mxu0 0
        %1676 = vmatpush1.bf16.msra.mxu0 0
        %1677 = vmatprep.subr.bf16.mxu0 0
        %1678 = vmatpush1.bf16.msra.mxu0 0
        %1679 = vmatprep.subr.bf16.mxu0 0
        %1680 = vmatpush1.bf16.msra.mxu0 0
        %1681 = vmatprep.subr.bf16.mxu0 0
        %1682 = vmatpush1.bf16.msra.mxu0 %v1662
        %1683 = vmatprep.subr.bf16.mxu0 0
        %1684 = vmatpush2.bf16.msra.mxu0 0
        %1685 = vmatprep.subr.bf16.mxu0 0
        %1686 = vmatpush2.bf16.msra.mxu0 0
        %1687 = vmatprep.subr.bf16.mxu0 0
        %1688 = vmatpush2.bf16.msra.mxu0 0
        %1689 = vmatprep.subr.bf16.mxu0 0
        %1690 = vmatpush2.bf16.msra.mxu0 0
        %1691 = vmatprep.subr.bf16.mxu0 0
        %1692 = vmatpush2.bf16.msra.mxu0 0
        %1693 = vmatprep.subr.bf16.mxu0 0
        %1694 = vmatpush2.bf16.msra.mxu0 0
        %1695 = vmatprep.subr.bf16.mxu0 0
        %1696 = vmatpush2.bf16.msra.mxu0 0
        %1697 = vmatprep.subr.bf16.mxu0 0
        %1698 = vmatpush2.bf16.msra.mxu0 0
        %1699 = vmatprep.mubr.bf16.mxu0 0
        %1700 = vmatmul.mubr.bf16.gmra.mxu0 %v1665
        %v1701 = vpop.f32.mrf.mxu0
        %v1702 = vadd.f32 0.0, %v1701
        %v1703 = vpop.f32.mrf.mxu0
        %v1704 = vpop.f32.mrf.mxu0
        %v1705 = vadd.f32 0.0, %v1704
        %v1706 = vpop.f32.mrf.mxu0
        %1707 = vdwg.mxu0
        %v1708 = vmul.f32 %v1702, %v1658
        %v1709 = vmul.f32 %v1705, %v1659
        %1710 = vrot.lane.b32.xlu0 %v722, 64
        %v1711 = vpop.permute.xlu0 %1710
        %v1713 = vsel %vm742, %v1711, 0
        %v1716 = vsel %vm742, %v724, 0
        %1718 = vmatprep.subr.bf16.mxu0 0
        %1719 = vmatpush1.bf16.xpose.msra.mxu0 0
        %1720 = vmatprep.subr.bf16.mxu0 0
        %1721 = vmatpush1.bf16.xpose.msra.mxu0 0
        %1722 = vmatprep.subr.bf16.mxu0 0
        %1723 = vmatpush1.bf16.xpose.msra.mxu0 0
        %1724 = vmatprep.subr.bf16.mxu0 0
        %1725 = vmatpush1.bf16.xpose.msra.mxu0 0
        %1726 = vmatprep.subr.bf16.mxu0 0
        %1727 = vmatpush1.bf16.xpose.msra.mxu0 0
        %1728 = vmatprep.subr.bf16.mxu0 0
        %1729 = vmatpush1.bf16.xpose.msra.mxu0 0
        %1730 = vmatprep.subr.bf16.mxu0 0
        %1731 = vmatpush1.bf16.xpose.msra.mxu0 0
        %1732 = vmatprep.subr.bf16.mxu0 0
        %1733 = vmatpush1.bf16.xpose.msra.mxu0 %v1716
        %1734 = vmatprep.subr.bf16.mxu0 0
        %1735 = vmatpush2.bf16.xpose.msra.mxu0 0
        %1736 = vmatprep.subr.bf16.mxu0 0
        %1737 = vmatpush2.bf16.xpose.msra.mxu0 0
        %1738 = vmatprep.subr.bf16.mxu0 0
        %1739 = vmatpush2.bf16.xpose.msra.mxu0 0
        %1740 = vmatprep.subr.bf16.mxu0 0
        %1741 = vmatpush2.bf16.xpose.msra.mxu0 0
        %1742 = vmatprep.subr.bf16.mxu0 0
        %1743 = vmatpush2.bf16.xpose.msra.mxu0 0
        %1744 = vmatprep.subr.bf16.mxu0 0
        %1745 = vmatpush2.bf16.xpose.msra.mxu0 0
        %1746 = vmatprep.subr.bf16.mxu0 0
        %1747 = vmatpush2.bf16.xpose.msra.mxu0 0
        %1748 = vmatprep.subr.bf16.mxu0 0
        %1749 = vmatpush2.bf16.xpose.msra.mxu0 0
        %1750 = vmatprep.mubr.bf16.mxu0 0
        %1751 = vmatmul.mubr.bf16.gmra.mxu0 %v1713
        %v1752 = vpop.f32.mrf.mxu0
        %v1753 = vadd.f32 %v740, %v1752
        %v1754 = vpop.f32.mrf.mxu0
        %v1755 = vpop.f32.mrf.mxu0
        %v1756 = vadd.f32 %v741, %v1755
        %v1757 = vpop.f32.mrf.mxu0
        %1758 = vdwg.mxu0
        %v1759 = vsel %vm790, %v1753, -inf
        %1760 = vmax.xlane.f32.xlu0 %v1759
        %v1761 = vpop.xlane.xlu0 %1760
        %v1762 = vsel %vm790, %v1756, -inf
        %1763 = vmax.xlane.f32.xlu0 %v1762
        %v1764 = vpop.xlane.xlu0 %1763
        %v1765 = vsub.f32 %v1753, %v1761
        %v1766 = vsub.f32 %v1756, %v1764
        %v1767 = vmul.f32 %v1765, 1.442695
        %v1768 = vpow.pop %v1767
        %v1769 = vmul.f32 %v1766, 1.442695
        %v1770 = vpow.pop %v1769
        %v1771 = vsel %vm790, %v1768, 0.0
        %1772 = vadd.xlane.f32.xlu0 %v1771
        %v1773 = vpop.xlane.xlu0 %1772
        %v1774 = vsel %vm790, %v1770, 0.0
        %1775 = vadd.xlane.f32.xlu0 %v1774
        %v1776 = vpop.xlane.xlu0 %1775
        %v1777 = vrcp.pop %v1773
        %v1778 = vrcp.pop %v1776
        %v1779 = vpack.c.bf16 %v1770, %v1768
        %1781 = vrot.lane.b32.xlu0 %v724, 64
        %v1782 = vpop.permute.xlu0 %1781
        %v1785 = vsel %vm790, %v1779, 0
        %1787 = vmatprep.subr.bf16.mxu0 0
        %1788 = vmatpush1.bf16.msra.mxu0 0
        %1789 = vmatprep.subr.bf16.mxu0 0
        %1790 = vmatpush1.bf16.msra.mxu0 0
        %1791 = vmatprep.subr.bf16.mxu0 0
        %1792 = vmatpush1.bf16.msra.mxu0 0
        %1793 = vmatprep.subr.bf16.mxu0 0
        %1794 = vmatpush1.bf16.msra.mxu0 0
        %1795 = vmatprep.subr.bf16.mxu0 0
        %1796 = vmatpush1.bf16.msra.mxu0 0
        %1797 = vmatprep.subr.bf16.mxu0 0
        %1798 = vmatpush1.bf16.msra.mxu0 0
        %1799 = vmatprep.subr.bf16.mxu0 0
        %1800 = vmatpush1.bf16.msra.mxu0 0
        %1801 = vmatprep.subr.bf16.mxu0 0
        %1802 = vmatpush1.bf16.msra.mxu0 %v1782
        %1803 = vmatprep.subr.bf16.mxu0 0
        %1804 = vmatpush2.bf16.msra.mxu0 0
        %1805 = vmatprep.subr.bf16.mxu0 0
        %1806 = vmatpush2.bf16.msra.mxu0 0
        %1807 = vmatprep.subr.bf16.mxu0 0
        %1808 = vmatpush2.bf16.msra.mxu0 0
        %1809 = vmatprep.subr.bf16.mxu0 0
        %1810 = vmatpush2.bf16.msra.mxu0 0
        %1811 = vmatprep.subr.bf16.mxu0 0
        %1812 = vmatpush2.bf16.msra.mxu0 0
        %1813 = vmatprep.subr.bf16.mxu0 0
        %1814 = vmatpush2.bf16.msra.mxu0 0
        %1815 = vmatprep.subr.bf16.mxu0 0
        %1816 = vmatpush2.bf16.msra.mxu0 0
        %1817 = vmatprep.subr.bf16.mxu0 0
        %1818 = vmatpush2.bf16.msra.mxu0 0
        %1819 = vmatprep.mubr.bf16.mxu0 0
        %1820 = vmatmul.mubr.bf16.gmra.mxu0 %v1785
        %v1821 = vpop.f32.mrf.mxu0
        %v1822 = vadd.f32 0.0, %v1821
        %v1823 = vpop.f32.mrf.mxu0
        %v1824 = vpop.f32.mrf.mxu0
        %v1825 = vadd.f32 0.0, %v1824
        %v1826 = vpop.f32.mrf.mxu0
        %1827 = vdwg.mxu0
        %v1828 = vmul.f32 %v1822, %v1777
        %v1829 = vmul.f32 %v1825, %v1778
        %1830 = vrot.lane.b32.xlu0 %v722, 56
        %v1831 = vpop.permute.xlu0 %1830
        %1832 = vrot.lane.b32.xlu0 %v724, 120
        %v1833 = vpop.permute.xlu0 %1832
        %v1835 = vsel %vm742, %v1831, 0
        %v1838 = vsel %vm742, %v1833, 0
        %1840 = vmatprep.subr.bf16.mxu0 0
        %1841 = vmatpush1.bf16.xpose.msra.mxu0 0
        %1842 = vmatprep.subr.bf16.mxu0 0
        %1843 = vmatpush1.bf16.xpose.msra.mxu0 0
        %1844 = vmatprep.subr.bf16.mxu0 0
        %1845 = vmatpush1.bf16.xpose.msra.mxu0 0
        %1846 = vmatprep.subr.bf16.mxu0 0
        %1847 = vmatpush1.bf16.xpose.msra.mxu0 0
        %1848 = vmatprep.subr.bf16.mxu0 0
        %1849 = vmatpush1.bf16.xpose.msra.mxu0 0
        %1850 = vmatprep.subr.bf16.mxu0 0
        %1851 = vmatpush1.bf16.xpose.msra.mxu0 0
        %1852 = vmatprep.subr.bf16.mxu0 0
        %1853 = vmatpush1.bf16.xpose.msra.mxu0 0
        %1854 = vmatprep.subr.bf16.mxu0 0
        %1855 = vmatpush1.bf16.xpose.msra.mxu0 %v1838
        %1856 = vmatprep.subr.bf16.mxu0 0
        %1857 = vmatpush2.bf16.xpose.msra.mxu0 0
        %1858 = vmatprep.subr.bf16.mxu0 0
        %1859 = vmatpush2.bf16.xpose.msra.mxu0 0
        %1860 = vmatprep.subr.bf16.mxu0 0
        %1861 = vmatpush2.bf16.xpose.msra.mxu0 0
        %1862 = vmatprep.subr.bf16.mxu0 0
        %1863 = vmatpush2.bf16.xpose.msra.mxu0 0
        %1864 = vmatprep.subr.bf16.mxu0 0
        %1865 = vmatpush2.bf16.xpose.msra.mxu0 0
        %1866 = vmatprep.subr.bf16.mxu0 0
        %1867 = vmatpush2.bf16.xpose.msra.mxu0 0
        %1868 = vmatprep.subr.bf16.mxu0 0
        %1869 = vmatpush2.bf16.xpose.msra.mxu0 0
        %1870 = vmatprep.subr.bf16.mxu0 0
        %1871 = vmatpush2.bf16.xpose.msra.mxu0 0
        %1872 = vmatprep.mubr.bf16.mxu0 0
        %1873 = vmatmul.mubr.bf16.gmra.mxu0 %v1835
        %v1874 = vpop.f32.mrf.mxu0
        %v1875 = vadd.f32 %v740, %v1874
        %v1876 = vpop.f32.mrf.mxu0
        %v1877 = vpop.f32.mrf.mxu0
        %v1878 = vadd.f32 %v741, %v1877
        %v1879 = vpop.f32.mrf.mxu0
        %1880 = vdwg.mxu0
        %v1881 = vsel %vm790, %v1875, -inf
        %1882 = vmax.xlane.f32.xlu0 %v1881
        %v1883 = vpop.xlane.xlu0 %1882
        %v1884 = vsel %vm790, %v1878, -inf
        %1885 = vmax.xlane.f32.xlu0 %v1884
        %v1886 = vpop.xlane.xlu0 %1885
        %v1887 = vsub.f32 %v1875, %v1883
        %v1888 = vsub.f32 %v1878, %v1886
        %v1889 = vmul.f32 %v1887, 1.442695
        %v1890 = vpow.pop %v1889
        %v1891 = vmul.f32 %v1888, 1.442695
        %v1892 = vpow.pop %v1891
        %v1893 = vsel %vm790, %v1890, 0.0
        %1894 = vadd.xlane.f32.xlu0 %v1893
        %v1895 = vpop.xlane.xlu0 %1894
        %v1896 = vsel %vm790, %v1892, 0.0
        %1897 = vadd.xlane.f32.xlu0 %v1896
        %v1898 = vpop.xlane.xlu0 %1897
        %v1899 = vrcp.pop %v1895
        %v1900 = vrcp.pop %v1898
        %v1901 = vpack.c.bf16 %v1892, %v1890
        %1902 = vrot.lane.b32.xlu0 %v724, 56
        %v1903 = vpop.permute.xlu0 %1902
        %v1906 = vsel %vm790, %v1901, 0
        %1908 = vmatprep.subr.bf16.mxu0 0
        %1909 = vmatpush1.bf16.msra.mxu0 0
        %1910 = vmatprep.subr.bf16.mxu0 0
        %1911 = vmatpush1.bf16.msra.mxu0 0
        %1912 = vmatprep.subr.bf16.mxu0 0
        %1913 = vmatpush1.bf16.msra.mxu0 0
        %1914 = vmatprep.subr.bf16.mxu0 0
        %1915 = vmatpush1.bf16.msra.mxu0 0
        %1916 = vmatprep.subr.bf16.mxu0 0
        %1917 = vmatpush1.bf16.msra.mxu0 0
        %1918 = vmatprep.subr.bf16.mxu0 0
        %1919 = vmatpush1.bf16.msra.mxu0 0
        %1920 = vmatprep.subr.bf16.mxu0 0
        %1921 = vmatpush1.bf16.msra.mxu0 0
        %1922 = vmatprep.subr.bf16.mxu0 0
        %1923 = vmatpush1.bf16.msra.mxu0 %v1903
        %1924 = vmatprep.subr.bf16.mxu0 0
        %1925 = vmatpush2.bf16.msra.mxu0 0
        %1926 = vmatprep.subr.bf16.mxu0 0
        %1927 = vmatpush2.bf16.msra.mxu0 0
        %1928 = vmatprep.subr.bf16.mxu0 0
        %1929 = vmatpush2.bf16.msra.mxu0 0
        %1930 = vmatprep.subr.bf16.mxu0 0
        %1931 = vmatpush2.bf16.msra.mxu0 0
        %1932 = vmatprep.subr.bf16.mxu0 0
        %1933 = vmatpush2.bf16.msra.mxu0 0
        %1934 = vmatprep.subr.bf16.mxu0 0
        %1935 = vmatpush2.bf16.msra.mxu0 0
        %1936 = vmatprep.subr.bf16.mxu0 0
        %1937 = vmatpush2.bf16.msra.mxu0 0
        %1938 = vmatprep.subr.bf16.mxu0 0
        %1939 = vmatpush2.bf16.msra.mxu0 0
        %1940 = vmatprep.mubr.bf16.mxu0 0
        %1941 = vmatmul.mubr.bf16.gmra.mxu0 %v1906
        %v1942 = vpop.f32.mrf.mxu0
        %v1943 = vadd.f32 0.0, %v1942
        %v1944 = vpop.f32.mrf.mxu0
        %v1945 = vpop.f32.mrf.mxu0
        %v1946 = vadd.f32 0.0, %v1945
        %v1947 = vpop.f32.mrf.mxu0
        %1948 = vdwg.mxu0
        %v1949 = vmul.f32 %v1943, %v1899
        %v1950 = vmul.f32 %v1946, %v1900
        %1951 = vrot.lane.b32.xlu0 %v722, 48
        %v1952 = vpop.permute.xlu0 %1951
        %1953 = vrot.lane.b32.xlu0 %v724, 112
        %v1954 = vpop.permute.xlu0 %1953
        %v1956 = vsel %vm742, %v1952, 0
        %v1959 = vsel %vm742, %v1954, 0
        %1961 = vmatprep.subr.bf16.mxu0 0
        %1962 = vmatpush1.bf16.xpose.msra.mxu0 0
        %1963 = vmatprep.subr.bf16.mxu0 0
        %1964 = vmatpush1.bf16.xpose.msra.mxu0 0
        %1965 = vmatprep.subr.bf16.mxu0 0
        %1966 = vmatpush1.bf16.xpose.msra.mxu0 0
        %1967 = vmatprep.subr.bf16.mxu0 0
        %1968 = vmatpush1.bf16.xpose.msra.mxu0 0
        %1969 = vmatprep.subr.bf16.mxu0 0
        %1970 = vmatpush1.bf16.xpose.msra.mxu0 0
        %1971 = vmatprep.subr.bf16.mxu0 0
        %1972 = vmatpush1.bf16.xpose.msra.mxu0 0
        %1973 = vmatprep.subr.bf16.mxu0 0
        %1974 = vmatpush1.bf16.xpose.msra.mxu0 0
        %1975 = vmatprep.subr.bf16.mxu0 0
        %1976 = vmatpush1.bf16.xpose.msra.mxu0 %v1959
        %1977 = vmatprep.subr.bf16.mxu0 0
        %1978 = vmatpush2.bf16.xpose.msra.mxu0 0
        %1979 = vmatprep.subr.bf16.mxu0 0
        %1980 = vmatpush2.bf16.xpose.msra.mxu0 0
        %1981 = vmatprep.subr.bf16.mxu0 0
        %1982 = vmatpush2.bf16.xpose.msra.mxu0 0
        %1983 = vmatprep.subr.bf16.mxu0 0
        %1984 = vmatpush2.bf16.xpose.msra.mxu0 0
        %1985 = vmatprep.subr.bf16.mxu0 0
        %1986 = vmatpush2.bf16.xpose.msra.mxu0 0
        %1987 = vmatprep.subr.bf16.mxu0 0
        %1988 = vmatpush2.bf16.xpose.msra.mxu0 0
        %1989 = vmatprep.subr.bf16.mxu0 0
        %1990 = vmatpush2.bf16.xpose.msra.mxu0 0
        %1991 = vmatprep.subr.bf16.mxu0 0
        %1992 = vmatpush2.bf16.xpose.msra.mxu0 0
        %1993 = vmatprep.mubr.bf16.mxu0 0
        %1994 = vmatmul.mubr.bf16.gmra.mxu0 %v1956
        %v1995 = vpop.f32.mrf.mxu0
        %v1996 = vadd.f32 %v740, %v1995
        %v1997 = vpop.f32.mrf.mxu0
        %v1998 = vpop.f32.mrf.mxu0
        %v1999 = vadd.f32 %v741, %v1998
        %v2000 = vpop.f32.mrf.mxu0
        %2001 = vdwg.mxu0
        %v2002 = vsel %vm790, %v1996, -inf
        %2003 = vmax.xlane.f32.xlu0 %v2002
        %v2004 = vpop.xlane.xlu0 %2003
        %v2005 = vsel %vm790, %v1999, -inf
        %2006 = vmax.xlane.f32.xlu0 %v2005
        %v2007 = vpop.xlane.xlu0 %2006
        %v2008 = vsub.f32 %v1996, %v2004
        %v2009 = vsub.f32 %v1999, %v2007
        %v2010 = vmul.f32 %v2008, 1.442695
        %v2011 = vpow.pop %v2010
        %v2012 = vmul.f32 %v2009, 1.442695
        %v2013 = vpow.pop %v2012
        %v2014 = vsel %vm790, %v2011, 0.0
        %2015 = vadd.xlane.f32.xlu0 %v2014
        %v2016 = vpop.xlane.xlu0 %2015
        %v2017 = vsel %vm790, %v2013, 0.0
        %2018 = vadd.xlane.f32.xlu0 %v2017
        %v2019 = vpop.xlane.xlu0 %2018
        %v2020 = vrcp.pop %v2016
        %v2021 = vrcp.pop %v2019
        %v2022 = vpack.c.bf16 %v2013, %v2011
        %2023 = vrot.lane.b32.xlu0 %v724, 48
        %v2024 = vpop.permute.xlu0 %2023
        %v2027 = vsel %vm790, %v2022, 0
        %2029 = vmatprep.subr.bf16.mxu0 0
        %2030 = vmatpush1.bf16.msra.mxu0 0
        %2031 = vmatprep.subr.bf16.mxu0 0
        %2032 = vmatpush1.bf16.msra.mxu0 0
        %2033 = vmatprep.subr.bf16.mxu0 0
        %2034 = vmatpush1.bf16.msra.mxu0 0
        %2035 = vmatprep.subr.bf16.mxu0 0
        %2036 = vmatpush1.bf16.msra.mxu0 0
        %2037 = vmatprep.subr.bf16.mxu0 0
        %2038 = vmatpush1.bf16.msra.mxu0 0
        %2039 = vmatprep.subr.bf16.mxu0 0
        %2040 = vmatpush1.bf16.msra.mxu0 0
        %2041 = vmatprep.subr.bf16.mxu0 0
        %2042 = vmatpush1.bf16.msra.mxu0 0
        %2043 = vmatprep.subr.bf16.mxu0 0
        %2044 = vmatpush1.bf16.msra.mxu0 %v2024
        %2045 = vmatprep.subr.bf16.mxu0 0
        %2046 = vmatpush2.bf16.msra.mxu0 0
        %2047 = vmatprep.subr.bf16.mxu0 0
        %2048 = vmatpush2.bf16.msra.mxu0 0
        %2049 = vmatprep.subr.bf16.mxu0 0
        %2050 = vmatpush2.bf16.msra.mxu0 0
        %2051 = vmatprep.subr.bf16.mxu0 0
        %2052 = vmatpush2.bf16.msra.mxu0 0
        %2053 = vmatprep.subr.bf16.mxu0 0
        %2054 = vmatpush2.bf16.msra.mxu0 0
        %2055 = vmatprep.subr.bf16.mxu0 0
        %2056 = vmatpush2.bf16.msra.mxu0 0
        %2057 = vmatprep.subr.bf16.mxu0 0
        %2058 = vmatpush2.bf16.msra.mxu0 0
        %2059 = vmatprep.subr.bf16.mxu0 0
        %2060 = vmatpush2.bf16.msra.mxu0 0
        %2061 = vmatprep.mubr.bf16.mxu0 0
        %2062 = vmatmul.mubr.bf16.gmra.mxu0 %v2027
        %v2063 = vpop.f32.mrf.mxu0
        %v2064 = vadd.f32 0.0, %v2063
        %v2065 = vpop.f32.mrf.mxu0
        %v2066 = vpop.f32.mrf.mxu0
        %v2067 = vadd.f32 0.0, %v2066
        %v2068 = vpop.f32.mrf.mxu0
        %2069 = vdwg.mxu0
        %v2070 = vmul.f32 %v2064, %v2020
        %v2071 = vmul.f32 %v2067, %v2021
        %2072 = vrot.lane.b32.xlu0 %v722, 40
        %v2073 = vpop.permute.xlu0 %2072
        %2074 = vrot.lane.b32.xlu0 %v724, 104
        %v2075 = vpop.permute.xlu0 %2074
        %v2077 = vsel %vm742, %v2073, 0
        %v2080 = vsel %vm742, %v2075, 0
        %2082 = vmatprep.subr.bf16.mxu0 0
        %2083 = vmatpush1.bf16.xpose.msra.mxu0 0
        %2084 = vmatprep.subr.bf16.mxu0 0
        %2085 = vmatpush1.bf16.xpose.msra.mxu0 0
        %2086 = vmatprep.subr.bf16.mxu0 0
        %2087 = vmatpush1.bf16.xpose.msra.mxu0 0
        %2088 = vmatprep.subr.bf16.mxu0 0
        %2089 = vmatpush1.bf16.xpose.msra.mxu0 0
        %2090 = vmatprep.subr.bf16.mxu0 0
        %2091 = vmatpush1.bf16.xpose.msra.mxu0 0
        %2092 = vmatprep.subr.bf16.mxu0 0
        %2093 = vmatpush1.bf16.xpose.msra.mxu0 0
        %2094 = vmatprep.subr.bf16.mxu0 0
        %2095 = vmatpush1.bf16.xpose.msra.mxu0 0
        %2096 = vmatprep.subr.bf16.mxu0 0
        %2097 = vmatpush1.bf16.xpose.msra.mxu0 %v2080
        %2098 = vmatprep.subr.bf16.mxu0 0
        %2099 = vmatpush2.bf16.xpose.msra.mxu0 0
        %2100 = vmatprep.subr.bf16.mxu0 0
        %2101 = vmatpush2.bf16.xpose.msra.mxu0 0
        %2102 = vmatprep.subr.bf16.mxu0 0
        %2103 = vmatpush2.bf16.xpose.msra.mxu0 0
        %2104 = vmatprep.subr.bf16.mxu0 0
        %2105 = vmatpush2.bf16.xpose.msra.mxu0 0
        %2106 = vmatprep.subr.bf16.mxu0 0
        %2107 = vmatpush2.bf16.xpose.msra.mxu0 0
        %2108 = vmatprep.subr.bf16.mxu0 0
        %2109 = vmatpush2.bf16.xpose.msra.mxu0 0
        %2110 = vmatprep.subr.bf16.mxu0 0
        %2111 = vmatpush2.bf16.xpose.msra.mxu0 0
        %2112 = vmatprep.subr.bf16.mxu0 0
        %2113 = vmatpush2.bf16.xpose.msra.mxu0 0
        %2114 = vmatprep.mubr.bf16.mxu0 0
        %2115 = vmatmul.mubr.bf16.gmra.mxu0 %v2077
        %v2116 = vpop.f32.mrf.mxu0
        %v2117 = vadd.f32 %v740, %v2116
        %v2118 = vpop.f32.mrf.mxu0
        %v2119 = vpop.f32.mrf.mxu0
        %v2120 = vadd.f32 %v741, %v2119
        %v2121 = vpop.f32.mrf.mxu0
        %2122 = vdwg.mxu0
        %v2123 = vsel %vm790, %v2117, -inf
        %2124 = vmax.xlane.f32.xlu0 %v2123
        %v2125 = vpop.xlane.xlu0 %2124
        %v2126 = vsel %vm790, %v2120, -inf
        %2127 = vmax.xlane.f32.xlu0 %v2126
        %v2128 = vpop.xlane.xlu0 %2127
        %v2129 = vsub.f32 %v2117, %v2125
        %v2130 = vsub.f32 %v2120, %v2128
        %v2131 = vmul.f32 %v2129, 1.442695
        %v2132 = vpow.pop %v2131
        %v2133 = vmul.f32 %v2130, 1.442695
        %v2134 = vpow.pop %v2133
        %v2135 = vsel %vm790, %v2132, 0.0
        %2136 = vadd.xlane.f32.xlu0 %v2135
        %v2137 = vpop.xlane.xlu0 %2136
        %v2138 = vsel %vm790, %v2134, 0.0
        %2139 = vadd.xlane.f32.xlu0 %v2138
        %v2140 = vpop.xlane.xlu0 %2139
        %v2141 = vrcp.pop %v2137
        %v2142 = vrcp.pop %v2140
        %v2143 = vpack.c.bf16 %v2134, %v2132
        %2144 = vrot.lane.b32.xlu0 %v724, 40
        %v2145 = vpop.permute.xlu0 %2144
        %v2148 = vsel %vm790, %v2143, 0
        %2150 = vmatprep.subr.bf16.mxu0 0
        %2151 = vmatpush1.bf16.msra.mxu0 0
        %2152 = vmatprep.subr.bf16.mxu0 0
        %2153 = vmatpush1.bf16.msra.mxu0 0
        %2154 = vmatprep.subr.bf16.mxu0 0
        %2155 = vmatpush1.bf16.msra.mxu0 0
        %2156 = vmatprep.subr.bf16.mxu0 0
        %2157 = vmatpush1.bf16.msra.mxu0 0
        %2158 = vmatprep.subr.bf16.mxu0 0
        %2159 = vmatpush1.bf16.msra.mxu0 0
        %2160 = vmatprep.subr.bf16.mxu0 0
        %2161 = vmatpush1.bf16.msra.mxu0 0
        %2162 = vmatprep.subr.bf16.mxu0 0
        %2163 = vmatpush1.bf16.msra.mxu0 0
        %2164 = vmatprep.subr.bf16.mxu0 0
        %2165 = vmatpush1.bf16.msra.mxu0 %v2145
        %2166 = vmatprep.subr.bf16.mxu0 0
        %2167 = vmatpush2.bf16.msra.mxu0 0
        %2168 = vmatprep.subr.bf16.mxu0 0
        %2169 = vmatpush2.bf16.msra.mxu0 0
        %2170 = vmatprep.subr.bf16.mxu0 0
        %2171 = vmatpush2.bf16.msra.mxu0 0
        %2172 = vmatprep.subr.bf16.mxu0 0
        %2173 = vmatpush2.bf16.msra.mxu0 0
        %2174 = vmatprep.subr.bf16.mxu0 0
        %2175 = vmatpush2.bf16.msra.mxu0 0
        %2176 = vmatprep.subr.bf16.mxu0 0
        %2177 = vmatpush2.bf16.msra.mxu0 0
        %2178 = vmatprep.subr.bf16.mxu0 0
        %2179 = vmatpush2.bf16.msra.mxu0 0
        %2180 = vmatprep.subr.bf16.mxu0 0
        %2181 = vmatpush2.bf16.msra.mxu0 0
        %2182 = vmatprep.mubr.bf16.mxu0 0
        %2183 = vmatmul.mubr.bf16.gmra.mxu0 %v2148
        %v2184 = vpop.f32.mrf.mxu0
        %v2185 = vadd.f32 0.0, %v2184
        %v2186 = vpop.f32.mrf.mxu0
        %v2187 = vpop.f32.mrf.mxu0
        %v2188 = vadd.f32 0.0, %v2187
        %v2189 = vpop.f32.mrf.mxu0
        %2190 = vdwg.mxu0
        %v2191 = vmul.f32 %v2185, %v2141
        %v2192 = vmul.f32 %v2188, %v2142
        %2193 = vrot.lane.b32.xlu0 %v722, 32
        %v2194 = vpop.permute.xlu0 %2193
        %2195 = vrot.lane.b32.xlu0 %v724, 96
        %v2196 = vpop.permute.xlu0 %2195
        %v2198 = vsel %vm742, %v2194, 0
        %v2201 = vsel %vm742, %v2196, 0
        %2203 = vmatprep.subr.bf16.mxu0 0
        %2204 = vmatpush1.bf16.xpose.msra.mxu0 0
        %2205 = vmatprep.subr.bf16.mxu0 0
        %2206 = vmatpush1.bf16.xpose.msra.mxu0 0
        %2207 = vmatprep.subr.bf16.mxu0 0
        %2208 = vmatpush1.bf16.xpose.msra.mxu0 0
        %2209 = vmatprep.subr.bf16.mxu0 0
        %2210 = vmatpush1.bf16.xpose.msra.mxu0 0
        %2211 = vmatprep.subr.bf16.mxu0 0
        %2212 = vmatpush1.bf16.xpose.msra.mxu0 0
        %2213 = vmatprep.subr.bf16.mxu0 0
        %2214 = vmatpush1.bf16.xpose.msra.mxu0 0
        %2215 = vmatprep.subr.bf16.mxu0 0
        %2216 = vmatpush1.bf16.xpose.msra.mxu0 0
        %2217 = vmatprep.subr.bf16.mxu0 0
        %2218 = vmatpush1.bf16.xpose.msra.mxu0 %v2201
        %2219 = vmatprep.subr.bf16.mxu0 0
        %2220 = vmatpush2.bf16.xpose.msra.mxu0 0
        %2221 = vmatprep.subr.bf16.mxu0 0
        %2222 = vmatpush2.bf16.xpose.msra.mxu0 0
        %2223 = vmatprep.subr.bf16.mxu0 0
        %2224 = vmatpush2.bf16.xpose.msra.mxu0 0
        %2225 = vmatprep.subr.bf16.mxu0 0
        %2226 = vmatpush2.bf16.xpose.msra.mxu0 0
        %2227 = vmatprep.subr.bf16.mxu0 0
        %2228 = vmatpush2.bf16.xpose.msra.mxu0 0
        %2229 = vmatprep.subr.bf16.mxu0 0
        %2230 = vmatpush2.bf16.xpose.msra.mxu0 0
        %2231 = vmatprep.subr.bf16.mxu0 0
        %2232 = vmatpush2.bf16.xpose.msra.mxu0 0
        %2233 = vmatprep.subr.bf16.mxu0 0
        %2234 = vmatpush2.bf16.xpose.msra.mxu0 0
        %2235 = vmatprep.mubr.bf16.mxu0 0
        %2236 = vmatmul.mubr.bf16.gmra.mxu0 %v2198
        %v2237 = vpop.f32.mrf.mxu0
        %v2238 = vadd.f32 %v740, %v2237
        %v2239 = vpop.f32.mrf.mxu0
        %v2240 = vpop.f32.mrf.mxu0
        %v2241 = vadd.f32 %v741, %v2240
        %v2242 = vpop.f32.mrf.mxu0
        %2243 = vdwg.mxu0
        %v2244 = vsel %vm790, %v2238, -inf
        %2245 = vmax.xlane.f32.xlu0 %v2244
        %v2246 = vpop.xlane.xlu0 %2245
        %v2247 = vsel %vm790, %v2241, -inf
        %2248 = vmax.xlane.f32.xlu0 %v2247
        %v2249 = vpop.xlane.xlu0 %2248
        %v2250 = vsub.f32 %v2238, %v2246
        %v2251 = vsub.f32 %v2241, %v2249
        %v2252 = vmul.f32 %v2250, 1.442695
        %v2253 = vpow.pop %v2252
        %v2254 = vmul.f32 %v2251, 1.442695
        %v2255 = vpow.pop %v2254
        %v2256 = vsel %vm790, %v2253, 0.0
        %2257 = vadd.xlane.f32.xlu0 %v2256
        %v2258 = vpop.xlane.xlu0 %2257
        %v2259 = vsel %vm790, %v2255, 0.0
        %2260 = vadd.xlane.f32.xlu0 %v2259
        %v2261 = vpop.xlane.xlu0 %2260
        %v2262 = vrcp.pop %v2258
        %v2263 = vrcp.pop %v2261
        %v2264 = vpack.c.bf16 %v2255, %v2253
        %2265 = vrot.lane.b32.xlu0 %v724, 32
        %v2266 = vpop.permute.xlu0 %2265
        %v2269 = vsel %vm790, %v2264, 0
        %2271 = vmatprep.subr.bf16.mxu0 0
        %2272 = vmatpush1.bf16.msra.mxu0 0
        %2273 = vmatprep.subr.bf16.mxu0 0
        %2274 = vmatpush1.bf16.msra.mxu0 0
        %2275 = vmatprep.subr.bf16.mxu0 0
        %2276 = vmatpush1.bf16.msra.mxu0 0
        %2277 = vmatprep.subr.bf16.mxu0 0
        %2278 = vmatpush1.bf16.msra.mxu0 0
        %2279 = vmatprep.subr.bf16.mxu0 0
        %2280 = vmatpush1.bf16.msra.mxu0 0
        %2281 = vmatprep.subr.bf16.mxu0 0
        %2282 = vmatpush1.bf16.msra.mxu0 0
        %2283 = vmatprep.subr.bf16.mxu0 0
        %2284 = vmatpush1.bf16.msra.mxu0 0
        %2285 = vmatprep.subr.bf16.mxu0 0
        %2286 = vmatpush1.bf16.msra.mxu0 %v2266
        %2287 = vmatprep.subr.bf16.mxu0 0
        %2288 = vmatpush2.bf16.msra.mxu0 0
        %2289 = vmatprep.subr.bf16.mxu0 0
        %2290 = vmatpush2.bf16.msra.mxu0 0
        %2291 = vmatprep.subr.bf16.mxu0 0
        %2292 = vmatpush2.bf16.msra.mxu0 0
        %2293 = vmatprep.subr.bf16.mxu0 0
        %2294 = vmatpush2.bf16.msra.mxu0 0
        %2295 = vmatprep.subr.bf16.mxu0 0
        %2296 = vmatpush2.bf16.msra.mxu0 0
        %2297 = vmatprep.subr.bf16.mxu0 0
        %2298 = vmatpush2.bf16.msra.mxu0 0
        %2299 = vmatprep.subr.bf16.mxu0 0
        %2300 = vmatpush2.bf16.msra.mxu0 0
        %2301 = vmatprep.subr.bf16.mxu0 0
        %2302 = vmatpush2.bf16.msra.mxu0 0
        %2303 = vmatprep.mubr.bf16.mxu0 0
        %2304 = vmatmul.mubr.bf16.gmra.mxu0 %v2269
        %v2305 = vpop.f32.mrf.mxu0
        %v2306 = vadd.f32 0.0, %v2305
        %v2307 = vpop.f32.mrf.mxu0
        %v2308 = vpop.f32.mrf.mxu0
        %v2309 = vadd.f32 0.0, %v2308
        %v2310 = vpop.f32.mrf.mxu0
        %2311 = vdwg.mxu0
        %v2312 = vmul.f32 %v2306, %v2262
        %v2313 = vmul.f32 %v2309, %v2263
        %2314 = vrot.lane.b32.xlu0 %v722, 24
        %v2315 = vpop.permute.xlu0 %2314
        %2316 = vrot.lane.b32.xlu0 %v724, 88
        %v2317 = vpop.permute.xlu0 %2316
        %v2319 = vsel %vm742, %v2315, 0
        %v2322 = vsel %vm742, %v2317, 0
        %2324 = vmatprep.subr.bf16.mxu0 0
        %2325 = vmatpush1.bf16.xpose.msra.mxu0 0
        %2326 = vmatprep.subr.bf16.mxu0 0
        %2327 = vmatpush1.bf16.xpose.msra.mxu0 0
        %2328 = vmatprep.subr.bf16.mxu0 0
        %2329 = vmatpush1.bf16.xpose.msra.mxu0 0
        %2330 = vmatprep.subr.bf16.mxu0 0
        %2331 = vmatpush1.bf16.xpose.msra.mxu0 0
        %2332 = vmatprep.subr.bf16.mxu0 0
        %2333 = vmatpush1.bf16.xpose.msra.mxu0 0
        %2334 = vmatprep.subr.bf16.mxu0 0
        %2335 = vmatpush1.bf16.xpose.msra.mxu0 0
        %2336 = vmatprep.subr.bf16.mxu0 0
        %2337 = vmatpush1.bf16.xpose.msra.mxu0 0
        %2338 = vmatprep.subr.bf16.mxu0 0
        %2339 = vmatpush1.bf16.xpose.msra.mxu0 %v2322
        %2340 = vmatprep.subr.bf16.mxu0 0
        %2341 = vmatpush2.bf16.xpose.msra.mxu0 0
        %2342 = vmatprep.subr.bf16.mxu0 0
        %2343 = vmatpush2.bf16.xpose.msra.mxu0 0
        %2344 = vmatprep.subr.bf16.mxu0 0
        %2345 = vmatpush2.bf16.xpose.msra.mxu0 0
        %2346 = vmatprep.subr.bf16.mxu0 0
        %2347 = vmatpush2.bf16.xpose.msra.mxu0 0
        %2348 = vmatprep.subr.bf16.mxu0 0
        %2349 = vmatpush2.bf16.xpose.msra.mxu0 0
        %2350 = vmatprep.subr.bf16.mxu0 0
        %2351 = vmatpush2.bf16.xpose.msra.mxu0 0
        %2352 = vmatprep.subr.bf16.mxu0 0
        %2353 = vmatpush2.bf16.xpose.msra.mxu0 0
        %2354 = vmatprep.subr.bf16.mxu0 0
        %2355 = vmatpush2.bf16.xpose.msra.mxu0 0
        %2356 = vmatprep.mubr.bf16.mxu0 0
        %2357 = vmatmul.mubr.bf16.gmra.mxu0 %v2319
        %v2358 = vpop.f32.mrf.mxu0
        %v2359 = vadd.f32 %v740, %v2358
        %v2360 = vpop.f32.mrf.mxu0
        %v2361 = vpop.f32.mrf.mxu0
        %v2362 = vadd.f32 %v741, %v2361
        %v2363 = vpop.f32.mrf.mxu0
        %2364 = vdwg.mxu0
        %v2365 = vsel %vm790, %v2359, -inf
        %2366 = vmax.xlane.f32.xlu0 %v2365
        %v2367 = vpop.xlane.xlu0 %2366
        %v2368 = vsel %vm790, %v2362, -inf
        %2369 = vmax.xlane.f32.xlu0 %v2368
        %v2370 = vpop.xlane.xlu0 %2369
        %v2371 = vsub.f32 %v2359, %v2367
        %v2372 = vsub.f32 %v2362, %v2370
        %v2373 = vmul.f32 %v2371, 1.442695
        %v2374 = vpow.pop %v2373
        %v2375 = vmul.f32 %v2372, 1.442695
        %v2376 = vpow.pop %v2375
        %v2377 = vsel %vm790, %v2374, 0.0
        %2378 = vadd.xlane.f32.xlu0 %v2377
        %v2379 = vpop.xlane.xlu0 %2378
        %v2380 = vsel %vm790, %v2376, 0.0
        %2381 = vadd.xlane.f32.xlu0 %v2380
        %v2382 = vpop.xlane.xlu0 %2381
        %v2383 = vrcp.pop %v2379
        %v2384 = vrcp.pop %v2382
        %v2385 = vpack.c.bf16 %v2376, %v2374
        %2386 = vrot.lane.b32.xlu0 %v724, 24
        %v2387 = vpop.permute.xlu0 %2386
        %v2390 = vsel %vm790, %v2385, 0
        %2392 = vmatprep.subr.bf16.mxu0 0
        %2393 = vmatpush1.bf16.msra.mxu0 0
        %2394 = vmatprep.subr.bf16.mxu0 0
        %2395 = vmatpush1.bf16.msra.mxu0 0
        %2396 = vmatprep.subr.bf16.mxu0 0
        %2397 = vmatpush1.bf16.msra.mxu0 0
        %2398 = vmatprep.subr.bf16.mxu0 0
        %2399 = vmatpush1.bf16.msra.mxu0 0
        %2400 = vmatprep.subr.bf16.mxu0 0
        %2401 = vmatpush1.bf16.msra.mxu0 0
        %2402 = vmatprep.subr.bf16.mxu0 0
        %2403 = vmatpush1.bf16.msra.mxu0 0
        %2404 = vmatprep.subr.bf16.mxu0 0
        %2405 = vmatpush1.bf16.msra.mxu0 0
        %2406 = vmatprep.subr.bf16.mxu0 0
        %2407 = vmatpush1.bf16.msra.mxu0 %v2387
        %2408 = vmatprep.subr.bf16.mxu0 0
        %2409 = vmatpush2.bf16.msra.mxu0 0
        %2410 = vmatprep.subr.bf16.mxu0 0
        %2411 = vmatpush2.bf16.msra.mxu0 0
        %2412 = vmatprep.subr.bf16.mxu0 0
        %2413 = vmatpush2.bf16.msra.mxu0 0
        %2414 = vmatprep.subr.bf16.mxu0 0
        %2415 = vmatpush2.bf16.msra.mxu0 0
        %2416 = vmatprep.subr.bf16.mxu0 0
        %2417 = vmatpush2.bf16.msra.mxu0 0
        %2418 = vmatprep.subr.bf16.mxu0 0
        %2419 = vmatpush2.bf16.msra.mxu0 0
        %2420 = vmatprep.subr.bf16.mxu0 0
        %2421 = vmatpush2.bf16.msra.mxu0 0
        %2422 = vmatprep.subr.bf16.mxu0 0
        %2423 = vmatpush2.bf16.msra.mxu0 0
        %2424 = vmatprep.mubr.bf16.mxu0 0
        %2425 = vmatmul.mubr.bf16.gmra.mxu0 %v2390
        %v2426 = vpop.f32.mrf.mxu0
        %v2427 = vadd.f32 0.0, %v2426
        %v2428 = vpop.f32.mrf.mxu0
        %v2429 = vpop.f32.mrf.mxu0
        %v2430 = vadd.f32 0.0, %v2429
        %v2431 = vpop.f32.mrf.mxu0
        %2432 = vdwg.mxu0
        %v2433 = vmul.f32 %v2427, %v2383
        %v2434 = vmul.f32 %v2430, %v2384
        %2435 = vrot.lane.b32.xlu0 %v722, 16
        %v2436 = vpop.permute.xlu0 %2435
        %2437 = vrot.lane.b32.xlu0 %v724, 80
        %v2438 = vpop.permute.xlu0 %2437
        %v2440 = vsel %vm742, %v2436, 0
        %v2443 = vsel %vm742, %v2438, 0
        %2445 = vmatprep.subr.bf16.mxu0 0
        %2446 = vmatpush1.bf16.xpose.msra.mxu0 0
        %2447 = vmatprep.subr.bf16.mxu0 0
        %2448 = vmatpush1.bf16.xpose.msra.mxu0 0
        %2449 = vmatprep.subr.bf16.mxu0 0
        %2450 = vmatpush1.bf16.xpose.msra.mxu0 0
        %2451 = vmatprep.subr.bf16.mxu0 0
        %2452 = vmatpush1.bf16.xpose.msra.mxu0 0
        %2453 = vmatprep.subr.bf16.mxu0 0
        %2454 = vmatpush1.bf16.xpose.msra.mxu0 0
        %2455 = vmatprep.subr.bf16.mxu0 0
        %2456 = vmatpush1.bf16.xpose.msra.mxu0 0
        %2457 = vmatprep.subr.bf16.mxu0 0
        %2458 = vmatpush1.bf16.xpose.msra.mxu0 0
        %2459 = vmatprep.subr.bf16.mxu0 0
        %2460 = vmatpush1.bf16.xpose.msra.mxu0 %v2443
        %2461 = vmatprep.subr.bf16.mxu0 0
        %2462 = vmatpush2.bf16.xpose.msra.mxu0 0
        %2463 = vmatprep.subr.bf16.mxu0 0
        %2464 = vmatpush2.bf16.xpose.msra.mxu0 0
        %2465 = vmatprep.subr.bf16.mxu0 0
        %2466 = vmatpush2.bf16.xpose.msra.mxu0 0
        %2467 = vmatprep.subr.bf16.mxu0 0
        %2468 = vmatpush2.bf16.xpose.msra.mxu0 0
        %2469 = vmatprep.subr.bf16.mxu0 0
        %2470 = vmatpush2.bf16.xpose.msra.mxu0 0
        %2471 = vmatprep.subr.bf16.mxu0 0
        %2472 = vmatpush2.bf16.xpose.msra.mxu0 0
        %2473 = vmatprep.subr.bf16.mxu0 0
        %2474 = vmatpush2.bf16.xpose.msra.mxu0 0
        %2475 = vmatprep.subr.bf16.mxu0 0
        %2476 = vmatpush2.bf16.xpose.msra.mxu0 0
        %2477 = vmatprep.mubr.bf16.mxu0 0
        %2478 = vmatmul.mubr.bf16.gmra.mxu0 %v2440
        %v2479 = vpop.f32.mrf.mxu0
        %v2480 = vadd.f32 %v740, %v2479
        %v2481 = vpop.f32.mrf.mxu0
        %v2482 = vpop.f32.mrf.mxu0
        %v2483 = vadd.f32 %v741, %v2482
        %v2484 = vpop.f32.mrf.mxu0
        %2485 = vdwg.mxu0
        %v2486 = vsel %vm790, %v2480, -inf
        %2487 = vmax.xlane.f32.xlu0 %v2486
        %v2488 = vpop.xlane.xlu0 %2487
        %v2489 = vsel %vm790, %v2483, -inf
        %2490 = vmax.xlane.f32.xlu0 %v2489
        %v2491 = vpop.xlane.xlu0 %2490
        %v2492 = vsub.f32 %v2480, %v2488
        %v2493 = vsub.f32 %v2483, %v2491
        %v2494 = vmul.f32 %v2492, 1.442695
        %v2495 = vpow.pop %v2494
        %v2496 = vmul.f32 %v2493, 1.442695
        %v2497 = vpow.pop %v2496
        %v2498 = vsel %vm790, %v2495, 0.0
        %2499 = vadd.xlane.f32.xlu0 %v2498
        %v2500 = vpop.xlane.xlu0 %2499
        %v2501 = vsel %vm790, %v2497, 0.0
        %2502 = vadd.xlane.f32.xlu0 %v2501
        %v2503 = vpop.xlane.xlu0 %2502
        %v2504 = vrcp.pop %v2500
        %v2505 = vrcp.pop %v2503
        %v2506 = vpack.c.bf16 %v2497, %v2495
        %2507 = vrot.lane.b32.xlu0 %v724, 16
        %v2508 = vpop.permute.xlu0 %2507
        %v2511 = vsel %vm790, %v2506, 0
        %2513 = vmatprep.subr.bf16.mxu0 0
        %2514 = vmatpush1.bf16.msra.mxu0 0
        %2515 = vmatprep.subr.bf16.mxu0 0
        %2516 = vmatpush1.bf16.msra.mxu0 0
        %2517 = vmatprep.subr.bf16.mxu0 0
        %2518 = vmatpush1.bf16.msra.mxu0 0
        %2519 = vmatprep.subr.bf16.mxu0 0
        %2520 = vmatpush1.bf16.msra.mxu0 0
        %2521 = vmatprep.subr.bf16.mxu0 0
        %2522 = vmatpush1.bf16.msra.mxu0 0
        %2523 = vmatprep.subr.bf16.mxu0 0
        %2524 = vmatpush1.bf16.msra.mxu0 0
        %2525 = vmatprep.subr.bf16.mxu0 0
        %2526 = vmatpush1.bf16.msra.mxu0 0
        %2527 = vmatprep.subr.bf16.mxu0 0
        %2528 = vmatpush1.bf16.msra.mxu0 %v2508
        %2529 = vmatprep.subr.bf16.mxu0 0
        %2530 = vmatpush2.bf16.msra.mxu0 0
        %2531 = vmatprep.subr.bf16.mxu0 0
        %2532 = vmatpush2.bf16.msra.mxu0 0
        %2533 = vmatprep.subr.bf16.mxu0 0
        %2534 = vmatpush2.bf16.msra.mxu0 0
        %2535 = vmatprep.subr.bf16.mxu0 0
        %2536 = vmatpush2.bf16.msra.mxu0 0
        %2537 = vmatprep.subr.bf16.mxu0 0
        %2538 = vmatpush2.bf16.msra.mxu0 0
        %2539 = vmatprep.subr.bf16.mxu0 0
        %2540 = vmatpush2.bf16.msra.mxu0 0
        %2541 = vmatprep.subr.bf16.mxu0 0
        %2542 = vmatpush2.bf16.msra.mxu0 0
        %2543 = vmatprep.subr.bf16.mxu0 0
        %2544 = vmatpush2.bf16.msra.mxu0 0
        %2545 = vmatprep.mubr.bf16.mxu0 0
        %2546 = vmatmul.mubr.bf16.gmra.mxu0 %v2511
        %v2547 = vpop.f32.mrf.mxu0
        %v2548 = vadd.f32 0.0, %v2547
        %v2549 = vpop.f32.mrf.mxu0
        %v2550 = vpop.f32.mrf.mxu0
        %v2551 = vadd.f32 0.0, %v2550
        %v2552 = vpop.f32.mrf.mxu0
        %2553 = vdwg.mxu0
        %v2554 = vmul.f32 %v2548, %v2504
        %v2555 = vmul.f32 %v2551, %v2505
        %2556 = vrot.lane.b32.xlu0 %v722, 8
        %v2557 = vpop.permute.xlu0 %2556
        %2558 = vrot.lane.b32.xlu0 %v724, 72
        %v2559 = vpop.permute.xlu0 %2558
        %v2561 = vsel %vm742, %v2557, 0
        %v2564 = vsel %vm742, %v2559, 0
        %2566 = vmatprep.subr.bf16.mxu0 0
        %2567 = vmatpush1.bf16.xpose.msra.mxu0 0
        %2568 = vmatprep.subr.bf16.mxu0 0
        %2569 = vmatpush1.bf16.xpose.msra.mxu0 0
        %2570 = vmatprep.subr.bf16.mxu0 0
        %2571 = vmatpush1.bf16.xpose.msra.mxu0 0
        %2572 = vmatprep.subr.bf16.mxu0 0
        %2573 = vmatpush1.bf16.xpose.msra.mxu0 0
        %2574 = vmatprep.subr.bf16.mxu0 0
        %2575 = vmatpush1.bf16.xpose.msra.mxu0 0
        %2576 = vmatprep.subr.bf16.mxu0 0
        %2577 = vmatpush1.bf16.xpose.msra.mxu0 0
        %2578 = vmatprep.subr.bf16.mxu0 0
        %2579 = vmatpush1.bf16.xpose.msra.mxu0 0
        %2580 = vmatprep.subr.bf16.mxu0 0
        %2581 = vmatpush1.bf16.xpose.msra.mxu0 %v2564
        %2582 = vmatprep.subr.bf16.mxu0 0
        %2583 = vmatpush2.bf16.xpose.msra.mxu0 0
        %2584 = vmatprep.subr.bf16.mxu0 0
        %2585 = vmatpush2.bf16.xpose.msra.mxu0 0
        %2586 = vmatprep.subr.bf16.mxu0 0
        %2587 = vmatpush2.bf16.xpose.msra.mxu0 0
        %2588 = vmatprep.subr.bf16.mxu0 0
        %2589 = vmatpush2.bf16.xpose.msra.mxu0 0
        %2590 = vmatprep.subr.bf16.mxu0 0
        %2591 = vmatpush2.bf16.xpose.msra.mxu0 0
        %2592 = vmatprep.subr.bf16.mxu0 0
        %2593 = vmatpush2.bf16.xpose.msra.mxu0 0
        %2594 = vmatprep.subr.bf16.mxu0 0
        %2595 = vmatpush2.bf16.xpose.msra.mxu0 0
        %2596 = vmatprep.subr.bf16.mxu0 0
        %2597 = vmatpush2.bf16.xpose.msra.mxu0 0
        %2598 = vmatprep.mubr.bf16.mxu0 0
        %2599 = vmatmul.mubr.bf16.gmra.mxu0 %v2561
        %v2600 = vpop.f32.mrf.mxu0
        %v2601 = vadd.f32 %v740, %v2600
        %v2602 = vpop.f32.mrf.mxu0
        %v2603 = vpop.f32.mrf.mxu0
        %v2604 = vadd.f32 %v741, %v2603
        %v2605 = vpop.f32.mrf.mxu0
        %2606 = vdwg.mxu0
        %v2607 = vsel %vm790, %v2601, -inf
        %2608 = vmax.xlane.f32.xlu0 %v2607
        %v2609 = vpop.xlane.xlu0 %2608
        %v2610 = vsel %vm790, %v2604, -inf
        %2611 = vmax.xlane.f32.xlu0 %v2610
        %v2612 = vpop.xlane.xlu0 %2611
        %v2613 = vsub.f32 %v2601, %v2609
        %v2614 = vsub.f32 %v2604, %v2612
        %v2615 = vmul.f32 %v2613, 1.442695
        %v2616 = vpow.pop %v2615
        %v2617 = vmul.f32 %v2614, 1.442695
        %v2618 = vpow.pop %v2617
        %v2619 = vsel %vm790, %v2616, 0.0
        %2620 = vadd.xlane.f32.xlu0 %v2619
        %v2621 = vpop.xlane.xlu0 %2620
        %v2622 = vsel %vm790, %v2618, 0.0
        %2623 = vadd.xlane.f32.xlu0 %v2622
        %v2624 = vpop.xlane.xlu0 %2623
        %v2625 = vrcp.pop %v2621
        %v2626 = vrcp.pop %v2624
        %v2627 = vpack.c.bf16 %v2618, %v2616
        %2628 = vrot.lane.b32.xlu0 %v724, 8
        %v2629 = vpop.permute.xlu0 %2628
        %v2632 = vsel %vm790, %v2627, 0
        %2634 = vmatprep.subr.bf16.mxu0 0
        %2635 = vmatpush1.bf16.msra.mxu0 0
        %2636 = vmatprep.subr.bf16.mxu0 0
        %2637 = vmatpush1.bf16.msra.mxu0 0
        %2638 = vmatprep.subr.bf16.mxu0 0
        %2639 = vmatpush1.bf16.msra.mxu0 0
        %2640 = vmatprep.subr.bf16.mxu0 0
        %2641 = vmatpush1.bf16.msra.mxu0 0
        %2642 = vmatprep.subr.bf16.mxu0 0
        %2643 = vmatpush1.bf16.msra.mxu0 0
        %2644 = vmatprep.subr.bf16.mxu0 0
        %2645 = vmatpush1.bf16.msra.mxu0 0
        %2646 = vmatprep.subr.bf16.mxu0 0
        %2647 = vmatpush1.bf16.msra.mxu0 0
        %2648 = vmatprep.subr.bf16.mxu0 0
        %2649 = vmatpush1.bf16.msra.mxu0 %v2629
        %2650 = vmatprep.subr.bf16.mxu0 0
        %2651 = vmatpush2.bf16.msra.mxu0 0
        %2652 = vmatprep.subr.bf16.mxu0 0
        %2653 = vmatpush2.bf16.msra.mxu0 0
        %2654 = vmatprep.subr.bf16.mxu0 0
        %2655 = vmatpush2.bf16.msra.mxu0 0
        %2656 = vmatprep.subr.bf16.mxu0 0
        %2657 = vmatpush2.bf16.msra.mxu0 0
        %2658 = vmatprep.subr.bf16.mxu0 0
        %2659 = vmatpush2.bf16.msra.mxu0 0
        %2660 = vmatprep.subr.bf16.mxu0 0
        %2661 = vmatpush2.bf16.msra.mxu0 0
        %2662 = vmatprep.subr.bf16.mxu0 0
        %2663 = vmatpush2.bf16.msra.mxu0 0
        %2664 = vmatprep.subr.bf16.mxu0 0
        %2665 = vmatpush2.bf16.msra.mxu0 0
        %2666 = vmatprep.mubr.bf16.mxu0 0
        %2667 = vmatmul.mubr.bf16.gmra.mxu0 %v2632
        %v2668 = vpop.f32.mrf.mxu0
        %v2669 = vadd.f32 0.0, %v2668
        %v2670 = vpop.f32.mrf.mxu0
        %v2671 = vpop.f32.mrf.mxu0
        %v2672 = vadd.f32 0.0, %v2671
        %v2673 = vpop.f32.mrf.mxu0
        %2674 = vdwg.mxu0
        %v2675 = vmul.f32 %v2669, %v2625
        %v2676 = vmul.f32 %v2672, %v2626
        %2679 = vrot.lane.b32.xlu0 %v982, 8
        %v2680 = vpop.permute.xlu0 %2679
        %2681 = vrot.lane.b32.xlu0 %v983, 8
        %v2682 = vpop.permute.xlu0 %2681
        %2687 = vrot.lane.b32.xlu0 %v1103, 16
        %v2688 = vpop.permute.xlu0 %2687
        %2689 = vrot.lane.b32.xlu0 %v1104, 16
        %v2690 = vpop.permute.xlu0 %2689
        %2695 = vrot.lane.b32.xlu0 %v1224, 24
        %v2696 = vpop.permute.xlu0 %2695
        %2697 = vrot.lane.b32.xlu0 %v1225, 24
        %v2698 = vpop.permute.xlu0 %2697
        %2703 = vrot.lane.b32.xlu0 %v1345, 32
        %v2704 = vpop.permute.xlu0 %2703
        %2705 = vrot.lane.b32.xlu0 %v1346, 32
        %v2706 = vpop.permute.xlu0 %2705
        %2711 = vrot.lane.b32.xlu0 %v1466, 40
        %v2712 = vpop.permute.xlu0 %2711
        %2713 = vrot.lane.b32.xlu0 %v1467, 40
        %v2714 = vpop.permute.xlu0 %2713
        %2719 = vrot.lane.b32.xlu0 %v1587, 48
        %v2720 = vpop.permute.xlu0 %2719
        %2721 = vrot.lane.b32.xlu0 %v1588, 48
        %v2722 = vpop.permute.xlu0 %2721
        %2727 = vrot.lane.b32.xlu0 %v1708, 56
        %v2728 = vpop.permute.xlu0 %2727
        %2729 = vrot.lane.b32.xlu0 %v1709, 56
        %v2730 = vpop.permute.xlu0 %2729
        %v2733 = vsel %vm742, %v860, %v2680
        %v2734 = vsel %vm742, %v861, %v2682
        %v2735 = vsel %vm790, %v2733, %v2688
        %v2736 = vsel %vm790, %v2734, %v2690
        %vm2737 = vcmask 195584
        %v2738 = vsel %vm2737, %v2735, %v2696
        %v2739 = vsel %vm2737, %v2736, %v2698
        %vm2740 = vcmask 261120
        %v2741 = vsel %vm2740, %v2738, %v2704
        %v2742 = vsel %vm2740, %v2739, %v2706
        %vm2743 = vcmask 326656
        %v2744 = vsel %vm2743, %v2741, %v2712
        %v2745 = vsel %vm2743, %v2742, %v2714
        %vm2746 = vcmask 392192
        %v2747 = vsel %vm2746, %v2744, %v2720
        %v2748 = vsel %vm2746, %v2745, %v2722
        %vm2749 = vcmask 457728
        %v2750 = vsel %vm2749, %v2747, %v2728
        %v2751 = vsel %vm2749, %v2748, %v2730
        %v2752 = vpack.c.bf16 %v2751, %v2750
        %2755 = vrot.lane.b32.xlu0 %v1949, 8
        %v2756 = vpop.permute.xlu0 %2755
        %2757 = vrot.lane.b32.xlu0 %v1950, 8
        %v2758 = vpop.permute.xlu0 %2757
        %2763 = vrot.lane.b32.xlu0 %v2070, 16
        %v2764 = vpop.permute.xlu0 %2763
        %2765 = vrot.lane.b32.xlu0 %v2071, 16
        %v2766 = vpop.permute.xlu0 %2765
        %2771 = vrot.lane.b32.xlu0 %v2191, 24
        %v2772 = vpop.permute.xlu0 %2771
        %2773 = vrot.lane.b32.xlu0 %v2192, 24
        %v2774 = vpop.permute.xlu0 %2773
        %2779 = vrot.lane.b32.xlu0 %v2312, 32
        %v2780 = vpop.permute.xlu0 %2779
        %2781 = vrot.lane.b32.xlu0 %v2313, 32
        %v2782 = vpop.permute.xlu0 %2781
        %2787 = vrot.lane.b32.xlu0 %v2433, 40
        %v2788 = vpop.permute.xlu0 %2787
        %2789 = vrot.lane.b32.xlu0 %v2434, 40
        %v2790 = vpop.permute.xlu0 %2789
        %2795 = vrot.lane.b32.xlu0 %v2554, 48
        %v2796 = vpop.permute.xlu0 %2795
        %2797 = vrot.lane.b32.xlu0 %v2555, 48
        %v2798 = vpop.permute.xlu0 %2797
        %2803 = vrot.lane.b32.xlu0 %v2675, 56
        %v2804 = vpop.permute.xlu0 %2803
        %2805 = vrot.lane.b32.xlu0 %v2676, 56
        %v2806 = vpop.permute.xlu0 %2805
        %v2809 = vsel %vm742, %v1828, %v2756
        %v2810 = vsel %vm742, %v1829, %v2758
        %v2811 = vsel %vm790, %v2809, %v2764
        %v2812 = vsel %vm790, %v2810, %v2766
        %v2813 = vsel %vm2737, %v2811, %v2772
        %v2814 = vsel %vm2737, %v2812, %v2774
        %v2815 = vsel %vm2740, %v2813, %v2780
        %v2816 = vsel %vm2740, %v2814, %v2782
        %v2817 = vsel %vm2743, %v2815, %v2788
        %v2818 = vsel %vm2743, %v2816, %v2790
        %v2819 = vsel %vm2746, %v2817, %v2796
        %v2820 = vsel %vm2746, %v2818, %v2798
        %v2821 = vsel %vm2749, %v2819, %v2804
        %v2822 = vsel %vm2749, %v2820, %v2806
        %v2823 = vpack.c.bf16 %v2822, %v2821
        %v2824 = vld [vmem:[#allocation12] sm:$0xf]
        %v2825 = vld [vmem:[#allocation12 + $0x4] sm:$0xf]
        %v2826 = vld [vmem:[#allocation12 + $0x8] sm:$0xf]
        %v2827 = vld [vmem:[#allocation12 + $0xc] sm:$0xf]
        %v2828 = vld [vmem:[#allocation12 + $0x10] sm:$0xf]
        %v2829 = vld [vmem:[#allocation12 + $0x14] sm:$0xf]
        %v2830 = vld [vmem:[#allocation12 + $0x18] sm:$0xf]
        %v2831 = vld [vmem:[#allocation12 + $0x1c] sm:$0xf]
        %v2840 = vunpack.c.l.b16 %v2824
        %v2841 = vunpack.c.l.b16 %v2825
        %v2842 = vunpack.c.l.b16 %v2826
        %v2843 = vunpack.c.l.b16 %v2827
        %v2844 = vunpack.c.l.b16 %v2828
        %v2845 = vunpack.c.l.b16 %v2829
        %v2846 = vunpack.c.l.b16 %v2830
        %v2847 = vunpack.c.l.b16 %v2831
        %v2848 = vpack.c.b16 %v2841, %v2840
        %v2849 = vpack.c.b16 %v2843, %v2842
        %v2850 = vpack.c.b16 %v2845, %v2844
        %v2851 = vpack.c.b16 %v2847, %v2846
        %v2857 = vsel %vm571, %v2752, 0
        %2859 = vmatprep.subr.bf16.mxu0 0
        %2860 = vmatpush1.bf16.msra.mxu0 0
        %2861 = vmatprep.subr.bf16.mxu0 0
        %2862 = vmatpush1.bf16.msra.mxu0 0
        %2863 = vmatprep.subr.bf16.mxu0 0
        %2864 = vmatpush1.bf16.msra.mxu0 0
        %2865 = vmatprep.subr.bf16.mxu0 0
        %2866 = vmatpush1.bf16.msra.mxu0 0
        %2867 = vmatprep.subr.bf16.mxu0 0
        %2868 = vmatpush1.bf16.msra.mxu0 %v2851
        %2869 = vmatprep.subr.bf16.mxu0 0
        %2870 = vmatpush1.bf16.msra.mxu0 %v2850
        %2871 = vmatprep.subr.bf16.mxu0 0
        %2872 = vmatpush1.bf16.msra.mxu0 %v2849
        %2873 = vmatprep.subr.bf16.mxu0 0
        %2874 = vmatpush1.bf16.msra.mxu0 %v2848
        %2875 = vmatprep.subr.bf16.mxu0 0
        %2876 = vmatpush2.bf16.msra.mxu0 0
        %2877 = vmatprep.subr.bf16.mxu0 0
        %2878 = vmatpush2.bf16.msra.mxu0 0
        %2879 = vmatprep.subr.bf16.mxu0 0
        %2880 = vmatpush2.bf16.msra.mxu0 0
        %2881 = vmatprep.subr.bf16.mxu0 0
        %2882 = vmatpush2.bf16.msra.mxu0 0
        %2883 = vmatprep.subr.bf16.mxu0 0
        %2884 = vmatpush2.bf16.msra.mxu0 0
        %2885 = vmatprep.subr.bf16.mxu0 0
        %2886 = vmatpush2.bf16.msra.mxu0 0
        %2887 = vmatprep.subr.bf16.mxu0 0
        %2888 = vmatpush2.bf16.msra.mxu0 0
        %2889 = vmatprep.subr.bf16.mxu0 0
        %2890 = vmatpush2.bf16.msra.mxu0 0
        %2891 = vmatprep.mubr.bf16.mxu0 0
        %2892 = vmatmul.mubr.bf16.gmra.mxu0 %v2857
        %v2893 = vpop.f32.mrf.mxu0
        %v2894 = vadd.f32 0.0, %v2893
        %v2895 = vpop.f32.mrf.mxu0
        %v2896 = vpop.f32.mrf.mxu0
        %v2897 = vadd.f32 0.0, %v2896
        %v2898 = vpop.f32.mrf.mxu0
        %2899 = vdwg.mxu0
        %s2900 = scalar_lea.vmem [#allocation12], 32
        %v2901 = vld [vmem:[%s2900] sm:$0xf]
        %v2902 = vld [vmem:[%s2900 + $0x4] sm:$0xf]
        %v2903 = vld [vmem:[%s2900 + $0x8] sm:$0xf]
        %v2904 = vld [vmem:[%s2900 + $0xc] sm:$0xf]
        %v2905 = vld [vmem:[%s2900 + $0x10] sm:$0xf]
        %v2906 = vld [vmem:[%s2900 + $0x14] sm:$0xf]
        %v2907 = vld [vmem:[%s2900 + $0x18] sm:$0xf]
        %v2908 = vld [vmem:[%s2900 + $0x1c] sm:$0xf]
        %v2917 = vunpack.c.l.b16 %v2901
        %v2918 = vunpack.c.l.b16 %v2902
        %v2919 = vunpack.c.l.b16 %v2903
        %v2920 = vunpack.c.l.b16 %v2904
        %v2921 = vunpack.c.l.b16 %v2905
        %v2922 = vunpack.c.l.b16 %v2906
        %v2923 = vunpack.c.l.b16 %v2907
        %v2924 = vunpack.c.l.b16 %v2908
        %v2925 = vpack.c.b16 %v2918, %v2917
        %v2926 = vpack.c.b16 %v2920, %v2919
        %v2927 = vpack.c.b16 %v2922, %v2921
        %v2928 = vpack.c.b16 %v2924, %v2923
        %v2934 = vsel %vm571, %v2823, 0
        %2936 = vmatprep.subr.bf16.mxu0 0
        %2937 = vmatpush1.bf16.msra.mxu0 0
        %2938 = vmatprep.subr.bf16.mxu0 0
        %2939 = vmatpush1.bf16.msra.mxu0 0
        %2940 = vmatprep.subr.bf16.mxu0 0
        %2941 = vmatpush1.bf16.msra.mxu0 0
        %2942 = vmatprep.subr.bf16.mxu0 0
        %2943 = vmatpush1.bf16.msra.mxu0 0
        %2944 = vmatprep.subr.bf16.mxu0 0
        %2945 = vmatpush1.bf16.msra.mxu0 %v2928
        %2946 = vmatprep.subr.bf16.mxu0 0
        %2947 = vmatpush1.bf16.msra.mxu0 %v2927
        %2948 = vmatprep.subr.bf16.mxu0 0
        %2949 = vmatpush1.bf16.msra.mxu0 %v2926
        %2950 = vmatprep.subr.bf16.mxu0 0
        %2951 = vmatpush1.bf16.msra.mxu0 %v2925
        %2952 = vmatprep.subr.bf16.mxu0 0
        %2953 = vmatpush2.bf16.msra.mxu0 0
        %2954 = vmatprep.subr.bf16.mxu0 0
        %2955 = vmatpush2.bf16.msra.mxu0 0
        %2956 = vmatprep.subr.bf16.mxu0 0
        %2957 = vmatpush2.bf16.msra.mxu0 0
        %2958 = vmatprep.subr.bf16.mxu0 0
        %2959 = vmatpush2.bf16.msra.mxu0 0
        %2960 = vmatprep.subr.bf16.mxu0 0
        %2961 = vmatpush2.bf16.msra.mxu0 0
        %2962 = vmatprep.subr.bf16.mxu0 0
        %2963 = vmatpush2.bf16.msra.mxu0 0
        %2964 = vmatprep.subr.bf16.mxu0 0
        %2965 = vmatpush2.bf16.msra.mxu0 0
        %2966 = vmatprep.subr.bf16.mxu0 0
        %2967 = vmatpush2.bf16.msra.mxu0 0
        %2968 = vmatprep.mubr.bf16.mxu0 0
        %2969 = vmatmul.mubr.bf16.gmra.mxu0 %v2934
        %v2970 = vpop.f32.mrf.mxu0
        %v2971 = vadd.f32 0.0, %v2970
        %v2972 = vpop.f32.mrf.mxu0
        %v2973 = vpop.f32.mrf.mxu0
        %v2974 = vadd.f32 0.0, %v2973
        %v2975 = vpop.f32.mrf.mxu0
        %2976 = vdwg.mxu0
        %2979 = vrot.lane.b32.xlu0 %v2971, 64
        %v2980 = vpop.permute.xlu0 %2979
        %2981 = vrot.lane.b32.xlu0 %v2974, 64
        %v2982 = vpop.permute.xlu0 %2981
        %v2985 = vsel %vm571, %v2894, %v2980
        %v2986 = vsel %vm571, %v2897, %v2982
        %v2987 = vld [vmem:[%s9] sm:$0x1]
        %v2989 = vlaneseq
        %v2990 = vshrl.u32 %v2989, 7
        %v2991 = vsub.s32 0, %v2990
        %v2992 = vrot.slane %v2987, %v2991
        %v2994 = vadd.f32 %v2985, %v2992
        %v2995 = vadd.f32 %v2986, %v2992
        %2996 = vst [vmem:[%s513] sm:$0xff] %v2994
        %2997 = vst [vmem:[%s513 + $0x8] sm:$0xff] %v2995
        %s2998 = sand.u32 %s279, 1
        %s2999 = scalar_lea.sflag [#allocation4], %s2998
        %s3000 = sand.u32 %s279, 1
        %s3001 = smul.addr %s3000, 16
        %s3002 = scalar_lea.vmem [#allocation14], %s3001
        // Predicated region
        $region89: #{tpu_custom_call.1} parent=59 // pred_check
          %p3003 = pneg %p289
        $region90: #{tpu_custom_call.1} parent=59 // pred_check_branch
          %3005 = sbr.rel (%p3003) target = $region92
        $region91: #{tpu_custom_call.1} parent=59 // pred_region
          %s3006 = smul.u32 2, %s35
          %s3008 = ssub.s32 256, 256
          %3009 = vsyncadd %s2999, %s3008
          %s3010 = smul.addr %s34, 2
          %s3011 = sadd.s32 %s3006, %s3010
          %s3012 = smul.addr %s3011, 128
          %s3013 = scalar_lea.hbm %s10, %s3012
          %s3014 = sshll.u32 %s3002, 4
          %s3015 = int_to_ptr.vmem [resolvable:$true] %s3014
          %3020 = dma.vmem_to_hbm [thread:$0]  %s3015, 256, %s3013, %s2999, 128, 128, 8
        $region92: #{tpu_custom_call.1} parent=59 // pred_fallthru
          _
      $region60: #{tpu_custom_call.1} parent=5 // pred_fallthru
        _
      %p3021 = scmp.le.s32.totalorder 2, %s25
      // Predicated region
      $region93: #{tpu_custom_call.1} parent=5 // pred_check
        %p3022 = pneg %p3021
      $region94: #{tpu_custom_call.1} parent=5 // pred_check_branch
        %3024 = sbr.rel (%p3022) target = $region96
      $region95: #{tpu_custom_call.1} parent=5 // pred_region
        %s3025 = ssub.s32 %s25, 2
        // Predicated region
        $region97: #{tpu_custom_call.1} parent=95 // pred_check
          %p3026 = pneg %p295
        $region98: #{tpu_custom_call.1} parent=95 // pred_check_branch
          %3028 = sbr.rel (%p3026) target = $region100
        $region99: #{tpu_custom_call.1} parent=95 // pred_region
          %s3029 = sand.u32 %s280, 1
          %s3030 = scalar_lea.sflag [#allocation4], %s3029
          %s3031 = sand.u32 %s280, 1
          %s3032 = smul.addr %s3031, 16
          %s3033 = scalar_lea.vmem [#allocation14], %s3032
          %3034 = dma.done %s3030, 256
        $region100: #{tpu_custom_call.1} parent=95 // pred_fallthru
          _
      $region96: #{tpu_custom_call.1} parent=5 // pred_fallthru
        _
    $region6: #{tpu_custom_call.1} parent=1 // loop_footer
      %s29 = sadd.s32 1, %s25
    $region7: #{tpu_custom_call.1} parent=1 // loop_footer_branch
      %24 = sbr.rel target = $region3
    $region8: #{tpu_custom_call.1} parent=1 // loop_exit
      _
    %3035 = vsyncpa [#allocation3], 1
    %s3036 = scalar_lea.sflag [#allocation3], 1
    %3037 = vsyncpa %s3036, 1
    %3038 = vsyncpa [#allocation6], 1
    %3039 = vsyncpa [#allocation10], 1
    %3040 = vsyncpa [#allocation13], 1
    %3041 = vsyncpa [#allocation4], 1
    %s3042 = scalar_lea.sflag [#allocation4], 1
    %3043 = vsyncpa %s3042, 1

</llo_original>
